<compile_context>
chip_gen: v7x
topology: tpu7x:2x2x1
jax: 0.10.0
libtpu: 0.0.40
codegen_flags: <defaults>
</compile_context>

<pallas_src>
import functools

import jax
import jax.numpy as jnp
from jax.experimental import pallas as pl
from jax.experimental.pallas import tpu as pltpu


def _round_up(x, m):
    return (x + m - 1) // m * m


# ---------------------------------------------------------------------------
# Stage 1: hoisted linear projections  xl = x @ W_l + b_l, xr = x @ W_r + b_r
# One big matmul over M = batch * node_pad rows, tiled along M.
# ---------------------------------------------------------------------------
def _proj_kernel(x_ref, wl_ref, bl_ref, wr_ref, br_ref, xl_ref, xr_ref):
    x = x_ref[...]                                                    # (TM, H)
    xl_ref[...] = (jnp.dot(x, wl_ref[...], preferred_element_type=jnp.float32)
                   + bl_ref[...])
    xr_ref[...] = (jnp.dot(x, wr_ref[...], preferred_element_type=jnp.float32)
                   + br_ref[...])


# ---------------------------------------------------------------------------
# Stage 2: dense GATv2 attention + aggregation for one (batch, target-tile).
#   e[i, j] = att . leaky_relu(xr[i] + xl[j]);  softmax over sources j;
#   out[i]  = sum_j alpha[i, j] * xl[j] + bias
# ---------------------------------------------------------------------------
def _gatv2_attn_kernel(mask_ref, xr_ref, xl_ref, att_ref, bias_ref, o_ref):
    xr = xr_ref[0]                                                    # (TI, O)
    xl = xl_ref[0]                                                    # (Np, O)

    # Pairwise scores for this TI-row slab of targets only (bounded VMEM).
    s = xr[:, None, :] + xl[None, :, :]                               # (TI, Np, O)
    s = jnp.where(s > 0.0, s, 0.2 * s)                                # LeakyReLU(0.2)
    # O is padded to a 128 multiple -> whole-vreg lane reduction.
    e = jnp.sum(s * att_ref[0][None, None, :], axis=-1)               # (TI, Np)

    # Additive mask (0 on edges incl. self loops, -1e30 elsewhere & padding).
    e = e + mask_ref[...]
    e = e - jnp.max(e, axis=-1, keepdims=True)
    p = jnp.exp(e)
    # approx=False keeps the 1e-4 tolerance (see review correctness note).
    alpha = p * pl.reciprocal(jnp.sum(p, axis=-1, keepdims=True), approx=False)

    out = jnp.dot(alpha, xl, preferred_element_type=jnp.float32) + bias_ref[...]
    o_ref[0] = out.astype(o_ref.dtype)                                # (TI, O) lane-dense


@functools.partial(jax.jit, static_argnames=("batch", "node", "hidden", "inp"))
def gatv2_f_forward(z, adj, wl, bl, wr, br, att, bias, *, batch, node, hidden, inp):
    f32 = jnp.float32
    out_ch = hidden * inp

    # ---- hardware-friendly padded shapes ---------------------------------
    TI = 16                                   # target-node tile (8-aligned sublanes)
    node_p = _round_up(node, TI)              # padded node count
    out_p = _round_up(out_ch, 128)            # lane-dense feature dim

    x = z.reshape(batch, node, hidden).astype(f32)
    x_p = jnp.zeros((batch, node_p, hidden), f32).at[:, :node, :].set(x)

    wl_p = jnp.zeros((hidden, out_p), f32).at[:, :out_ch].set(wl)
    wr_p = jnp.zeros((hidden, out_p), f32).at[:, :out_ch].set(wr)
    bl_p = jnp.zeros((1, out_p), f32).at[:, :out_ch].set(bl)
    br_p = jnp.zeros((1, out_p), f32).at[:, :out_ch].set(br)
    att_p = jnp.zeros((1, out_p), f32).at[:, :out_ch].set(att)
    bias_p = jnp.zeros((1, out_p), f32).at[:, :out_ch].set(bias)

    # Additive attention mask: 0 on edges, -1e30 elsewhere; padded rows/cols
    # are fully masked (safe because every real row has a self loop).
    mask = jnp.full((node_p, node_p), -1e30, f32)
    mask = mask.at[:node, :node].set(jnp.where(adj > 0, 0.0, -1e30))

    # ---- Stage 1: projections as one big tiled matmul --------------------
    M = batch * node_p
    x_flat = x_p.reshape(M, hidden)
    TM = 512
    while M % TM:                              # M is a multiple of TI=16
        TM //= 2

    xl_flat, xr_flat = pl.pallas_call(
        _proj_kernel,
        out_shape=(jax.ShapeDtypeStruct((M, out_p), f32),
                   jax.ShapeDtypeStruct((M, out_p), f32)),
        grid_spec=pltpu.PrefetchScalarGridSpec(
            num_scalar_prefetch=0,
            grid=(M // TM,),
            in_specs=[
                pl.BlockSpec((TM, hidden), lambda m: (m, 0)),
                pl.BlockSpec((hidden, out_p), lambda m: (0, 0)),      # W_l
                pl.BlockSpec((1, out_p), lambda m: (0, 0)),           # b_l
                pl.BlockSpec((hidden, out_p), lambda m: (0, 0)),      # W_r
                pl.BlockSpec((1, out_p), lambda m: (0, 0)),           # b_r
            ],
            out_specs=[
                pl.BlockSpec((TM, out_p), lambda m: (m, 0)),
                pl.BlockSpec((TM, out_p), lambda m: (m, 0)),
            ],
        ),
        compiler_params=pltpu.CompilerParams(
            dimension_semantics=("parallel",),
            vmem_limit_bytes=32 * 1024 * 1024),
    )(x_flat, wl_p, bl_p, wr_p, br_p)

    xl = xl_flat.reshape(batch, node_p, out_p)
    xr = xr_flat.reshape(batch, node_p, out_p)

    # ---- Stage 2: tiled GATv2 attention + aggregation --------------------
    # VMEM/step (prod. N_pad=320, O_pad=128): s slab 16*320*128*4 ~= 2.6 MB,
    # plus double-buffered xl (160 KB), xr/mask/out (<50 KB) -> well under the
    # 32 MiB scoped budget, also fine on v7x (64 MiB physical).
    n_tiles = node_p // TI
    out_pad = pl.pallas_call(
        _gatv2_attn_kernel,
        out_shape=jax.ShapeDtypeStruct((batch, node_p, out_p), f32),
        grid_spec=pltpu.PrefetchScalarGridSpec(
            num_scalar_prefetch=0,
            grid=(batch, n_tiles),
            in_specs=[
                pl.BlockSpec((TI, node_p), lambda b, t: (t, 0)),          # mask rows
                pl.BlockSpec((1, TI, out_p), lambda b, t: (b, t, 0)),     # xr (targets)
                pl.BlockSpec((1, node_p, out_p), lambda b, t: (b, 0, 0)), # xl (sources)
                pl.BlockSpec((1, out_p), lambda b, t: (0, 0)),            # att
                pl.BlockSpec((1, out_p), lambda b, t: (0, 0)),            # output bias
            ],
            out_specs=pl.BlockSpec((1, TI, out_p), lambda b, t: (b, t, 0)),
        ),
        compiler_params=pltpu.CompilerParams(
            dimension_semantics=("parallel", "parallel"),
            vmem_limit_bytes=32 * 1024 * 1024),
    )(mask, xr, xl, att_p, bias_p)

    out = out_pad[:, :node, :out_ch]
    # torch: x1.reshape(batch*node, hidden, input_channels) — row-major, matches jnp.
    return out.reshape(batch * node, hidden, inp)


def _reference(z, adj, wl, bl, wr, br, att, bias, batch, node, hidden, inp):
    x = z.reshape(batch, node, hidden)
    xl = x @ wl + bl                                         # (B, N, O)
    xr = x @ wr + br
    s = xr[:, :, None, :] + xl[:, None, :, :]
    s = jnp.where(s > 0, s, 0.2 * s)
    e = jnp.sum(s * att[0][None, None, None, :], axis=-1)    # (B, N, N)
    e = jnp.where(adj[None] > 0, e, -1e30)
    e = e - jnp.max(e, axis=-1, keepdims=True)
    p = jnp.exp(e)
    alpha = p / jnp.sum(p, axis=-1, keepdims=True)
    out = jnp.einsum("bij,bjo->bio", alpha, xl) + bias
    return out.reshape(batch * node, hidden, inp)


if __name__ == "__main__":
    # Small shapes consistent with the module (module hardcodes batch=64,
    # node=307; scaled down for the synthetic test). NODE=20 exercises the
    # node-padding (20 -> 32) and multi-tile (2 target tiles) paths.
    BATCH, NODE, HIDDEN, INPUT = 2, 20, 8, 4
    OUT = HIDDEN * INPUT

    key = jax.random.PRNGKey(0)
    k_z, k_wl, k_wr, k_att, k_bl, k_br, k_b = jax.random.split(key, 7)

    z = jax.random.normal(k_z, (BATCH * NODE, HIDDEN), dtype=jnp.float32)

    # Deterministic "glorot-ish" parameter init (shapes from GATv2Conv(H, H*I)).
    scale = (2.0 / (HIDDEN + OUT)) ** 0.5
    wl = scale * jax.random.normal(k_wl, (HIDDEN, OUT), dtype=jnp.float32)
    wr = scale * jax.random.normal(k_wr, (HIDDEN, OUT), dtype=jnp.float32)
    att = scale * jax.random.normal(k_att, (1, OUT), dtype=jnp.float32)
    bl = 0.01 * jax.random.normal(k_bl, (1, OUT), dtype=jnp.float32)
    br = 0.01 * jax.random.normal(k_br, (1, OUT), dtype=jnp.float32)
    bias = 0.01 * jax.random.normal(k_b, (1, OUT), dtype=jnp.float32)

    # Synthetic deterministic edge list (directed ring both ways), + self loops.
    # adj[target, source] = 1  (PyG flow: source -> target).
    src = jnp.concatenate([jnp.arange(NODE), (jnp.arange(NODE) + 1) % NODE])
    dst = jnp.concatenate([(jnp.arange(NODE) + 1) % NODE, jnp.arange(NODE)])
    adj = jnp.zeros((NODE, NODE), dtype=jnp.float32)
    adj = adj.at[dst, src].set(1.0)
    adj = adj.at[jnp.arange(NODE), jnp.arange(NODE)].set(1.0)   # add_self_loops=True

    out = gatv2_f_forward(z, adj, wl, bl, wr, br, att, bias,
                          batch=BATCH, node=NODE, hidden=HIDDEN, inp=INPUT)
    out = jax.block_until_ready(out)

    ref = _reference(z, adj, wl, bl, wr, br, att, bias, BATCH, NODE, HIDDEN, INPUT)
    assert out.shape == (BATCH * NODE, HIDDEN, INPUT), out.shape
    assert jnp.allclose(out, ref, atol=1e-4, rtol=1e-4), float(jnp.max(jnp.abs(out - ref)))

    print("KERNEL_OK")
</pallas_src>

<mosaic_0001>
module attributes {stable_mosaic.version = 11 : i64} {
  func.func @_proj_kernel(%arg0: i32, %arg1: memref<64x8xf32, #tpu.memory_space<vmem>>, %arg2: memref<8x128xf32, #tpu.memory_space<vmem>>, %arg3: memref<1x128xf32, #tpu.memory_space<vmem>>, %arg4: memref<8x128xf32, #tpu.memory_space<vmem>>, %arg5: memref<1x128xf32, #tpu.memory_space<vmem>>, %arg6: memref<64x128xf32, #tpu.memory_space<vmem>>, %arg7: memref<64x128xf32, #tpu.memory_space<vmem>>) attributes {dimension_semantics = [#tpu.dimension_semantics<parallel>], iteration_bounds = array<i64: 1>, scalar_prefetch = 0 : i64, scratch_operands = 0 : i64, tpu.core_type = #tpu.core_type<tc>, window_params = [{transform_indices = @transform_0, window_bounds = array<i64: 64, 8>}, {pipeline_mode = #tpu.pipeline_mode<synchronous>, transform_indices = @transform_1, window_bounds = array<i64: 8, 128>}, {pipeline_mode = #tpu.pipeline_mode<synchronous>, transform_indices = @transform_2, window_bounds = array<i64: 1, 128>}, {pipeline_mode = #tpu.pipeline_mode<synchronous>, transform_indices = @transform_3, window_bounds = array<i64: 8, 128>}, {pipeline_mode = #tpu.pipeline_mode<synchronous>, transform_indices = @transform_4, window_bounds = array<i64: 1, 128>}, {transform_indices = @transform_5, window_bounds = array<i64: 64, 128>}, {transform_indices = @transform_6, window_bounds = array<i64: 64, 128>}]} {
    %c0 = arith.constant 0 : index
    %c0_0 = arith.constant 0 : index
    %0 = vector.load %arg1[%c0, %c0_0] : memref<64x8xf32, #tpu.memory_space<vmem>>, vector<64x8xf32>
    %c0_1 = arith.constant 0 : index
    %c0_2 = arith.constant 0 : index
    %1 = vector.load %arg2[%c0_1, %c0_2] : memref<8x128xf32, #tpu.memory_space<vmem>>, vector<8x128xf32>
    %cst = arith.constant dense<0.000000e+00> : vector<64x128xf32>
    %2 = tpu.matmul %0, %1, %cst {dimension_numbers = #tpu.dot_dimension_numbers<[1], [0], [0], [1], [0, 0, 1, 1], [], []>} : vector<64x8xf32>, vector<8x128xf32>, vector<64x128xf32> -> vector<64x128xf32>
    %c0_3 = arith.constant 0 : index
    %c0_4 = arith.constant 0 : index
    %3 = vector.load %arg3[%c0_3, %c0_4] : memref<1x128xf32, #tpu.memory_space<vmem>>, vector<1x128xf32>
    %4 = vector.broadcast %3 : vector<1x128xf32> to vector<64x128xf32>
    %5 = arith.addf %2, %4 : vector<64x128xf32>
    %c0_5 = arith.constant 0 : index
    %c0_6 = arith.constant 0 : index
    %6 = vector.load %arg6[%c0_5, %c0_6] : memref<64x128xf32, #tpu.memory_space<vmem>>, vector<64x128xf32>
    tpu.vector_store %arg6[%c0_5, %c0_6], %5 {strides = array<i32>} : memref<64x128xf32, #tpu.memory_space<vmem>>, vector<64x128xf32>,
    %c0_7 = arith.constant 0 : index
    %c0_8 = arith.constant 0 : index
    %7 = vector.load %arg4[%c0_7, %c0_8] : memref<8x128xf32, #tpu.memory_space<vmem>>, vector<8x128xf32>
    %cst_9 = arith.constant dense<0.000000e+00> : vector<64x128xf32>
    %8 = tpu.matmul %0, %7, %cst_9 {dimension_numbers = #tpu.dot_dimension_numbers<[1], [0], [0], [1], [0, 0, 1, 1], [], []>} : vector<64x8xf32>, vector<8x128xf32>, vector<64x128xf32> -> vector<64x128xf32>
    %c0_10 = arith.constant 0 : index
    %c0_11 = arith.constant 0 : index
    %9 = vector.load %arg5[%c0_10, %c0_11] : memref<1x128xf32, #tpu.memory_space<vmem>>, vector<1x128xf32>
    %10 = vector.broadcast %9 : vector<1x128xf32> to vector<64x128xf32>
    %11 = arith.addf %8, %10 : vector<64x128xf32>
    %c0_12 = arith.constant 0 : index
    %c0_13 = arith.constant 0 : index
    %12 = vector.load %arg7[%c0_12, %c0_13] : memref<64x128xf32, #tpu.memory_space<vmem>>, vector<64x128xf32>
    tpu.vector_store %arg7[%c0_12, %c0_13], %11 {strides = array<i32>} : memref<64x128xf32, #tpu.memory_space<vmem>>, vector<64x128xf32>,
    return
  }
  func.func @transform_0(%arg0: i32) -> (i32, i32) {
    %c0_i32 = arith.constant 0 : i32
    %c0_i32_0 = arith.constant 0 : i32
    return %arg0, %c0_i32 : i32, i32
  }
  func.func @transform_1(%arg0: i32) -> (i32, i32) {
    %c0_i32 = arith.constant 0 : i32
    %c0_i32_0 = arith.constant 0 : i32
    %c0_i32_1 = arith.constant 0 : i32
    return %c0_i32, %c0_i32_0 : i32, i32
  }
  func.func @transform_2(%arg0: i32) -> (i32, i32) {
    %c0_i32 = arith.constant 0 : i32
    %c0_i32_0 = arith.constant 0 : i32
    %c0_i32_1 = arith.constant 0 : i32
    return %c0_i32, %c0_i32_0 : i32, i32
  }
  func.func @transform_3(%arg0: i32) -> (i32, i32) {
    %c0_i32 = arith.constant 0 : i32
    %c0_i32_0 = arith.constant 0 : i32
    %c0_i32_1 = arith.constant 0 : i32
    return %c0_i32, %c0_i32_0 : i32, i32
  }
  func.func @transform_4(%arg0: i32) -> (i32, i32) {
    %c0_i32 = arith.constant 0 : i32
    %c0_i32_0 = arith.constant 0 : i32
    %c0_i32_1 = arith.constant 0 : i32
    return %c0_i32, %c0_i32_0 : i32, i32
  }
  func.func @transform_5(%arg0: i32) -> (i32, i32) {
    %c0_i32 = arith.constant 0 : i32
    %c0_i32_0 = arith.constant 0 : i32
    return %arg0, %c0_i32 : i32, i32
  }
  func.func @transform_6(%arg0: i32) -> (i32, i32) {
    %c0_i32 = arith.constant 0 : i32
    %c0_i32_0 = arith.constant 0 : i32
    return %arg0, %c0_i32 : i32, i32
  }
}

module attributes {stable_mosaic.version = 11 : i64} {
  func.func @_gatv2_attn_kernel(%arg0: i32, %arg1: i32, %arg2: memref<16x32xf32, #tpu.memory_space<vmem>>, %arg3: memref<1x16x128xf32, #tpu.memory_space<vmem>>, %arg4: memref<1x32x128xf32, #tpu.memory_space<vmem>>, %arg5: memref<1x128xf32, #tpu.memory_space<vmem>>, %arg6: memref<1x128xf32, #tpu.memory_space<vmem>>, %arg7: memref<1x16x128xf32, #tpu.memory_space<vmem>>) attributes {dimension_semantics = [#tpu.dimension_semantics<parallel>, #tpu.dimension_semantics<parallel>], iteration_bounds = array<i64: 2, 2>, scalar_prefetch = 0 : i64, scratch_operands = 0 : i64, tpu.core_type = #tpu.core_type<tc>, window_params = [{transform_indices = @transform_0, window_bounds = array<i64: 16, 32>}, {transform_indices = @transform_1, window_bounds = array<i64: 1, 16, 128>}, {transform_indices = @transform_2, window_bounds = array<i64: 1, 32, 128>}, {pipeline_mode = #tpu.pipeline_mode<synchronous>, transform_indices = @transform_3, window_bounds = array<i64: 1, 128>}, {pipeline_mode = #tpu.pipeline_mode<synchronous>, transform_indices = @transform_4, window_bounds = array<i64: 1, 128>}, {transform_indices = @transform_5, window_bounds = array<i64: 1, 16, 128>}]} {
    %c0 = arith.constant 0 : index
    %c0_0 = arith.constant 0 : index
    %c0_1 = arith.constant 0 : index
    %0 = vector.load %arg3[%c0, %c0_0, %c0_1] : memref<1x16x128xf32, #tpu.memory_space<vmem>>, vector<1x16x128xf32>
    %1 = vector.shape_cast %0 : vector<1x16x128xf32> to vector<16x128xf32>
    %c0_2 = arith.constant 0 : index
    %c0_3 = arith.constant 0 : index
    %c0_4 = arith.constant 0 : index
    %2 = vector.load %arg4[%c0_2, %c0_3, %c0_4] : memref<1x32x128xf32, #tpu.memory_space<vmem>>, vector<1x32x128xf32>
    %3 = vector.shape_cast %2 : vector<1x32x128xf32> to vector<32x128xf32>
    %4 = vector.shape_cast %1 : vector<16x128xf32> to vector<16x1x128xf32>
    %5 = vector.shape_cast %3 : vector<32x128xf32> to vector<1x32x128xf32>
    %6 = vector.broadcast %4 : vector<16x1x128xf32> to vector<16x32x128xf32>
    %7 = vector.broadcast %5 : vector<1x32x128xf32> to vector<16x32x128xf32>
    %8 = arith.addf %6, %7 : vector<16x32x128xf32>
    %cst = arith.constant 0.000000e+00 : f32
    %9 = vector.broadcast %cst : f32 to vector<16x32x128xf32>
    %10 = arith.cmpf ogt, %8, %9 : vector<16x32x128xf32>
    %cst_5 = arith.constant 2.000000e-01 : f32
    %11 = vector.broadcast %cst_5 : f32 to vector<16x32x128xf32>
    %12 = arith.mulf %11, %8 : vector<16x32x128xf32>
    %13 = arith.select %10, %8, %12 : vector<16x32x128xi1>, vector<16x32x128xf32>
    %c0_6 = arith.constant 0 : index
    %c0_7 = arith.constant 0 : index
    %14 = vector.load %arg5[%c0_6, %c0_7] : memref<1x128xf32, #tpu.memory_space<vmem>>, vector<1x128xf32>
    %15 = vector.shape_cast %14 : vector<1x128xf32> to vector<128xf32>
    %16 = vector.shape_cast %15 : vector<128xf32> to vector<1x1x128xf32>
    %17 = vector.broadcast %16 : vector<1x1x128xf32> to vector<16x32x128xf32>
    %18 = arith.mulf %13, %17 : vector<16x32x128xf32>
    %cst_8 = arith.constant dense<0.000000e+00> : vector<16x32xf32>
    %19 = vector.multi_reduction <add>, %18, %cst_8 [2] : vector<16x32x128xf32> to vector<16x32xf32>
    %c0_9 = arith.constant 0 : index
    %c0_10 = arith.constant 0 : index
    %20 = vector.load %arg2[%c0_9, %c0_10] : memref<16x32xf32, #tpu.memory_space<vmem>>, vector<16x32xf32>
    %21 = arith.addf %19, %20 : vector<16x32xf32>
    %cst_11 = arith.constant dense<0xFF800000> : vector<16xf32>
    %22 = vector.multi_reduction <maximumf>, %21, %cst_11 [1] : vector<16x32xf32> to vector<16xf32>
    %23 = vector.shape_cast %22 : vector<16xf32> to vector<16x1xf32>
    %24 = vector.broadcast %23 : vector<16x1xf32> to vector<16x32xf32>
    %25 = arith.subf %21, %24 : vector<16x32xf32>
    %26 = math.exp %25 : vector<16x32xf32>
    %cst_12 = arith.constant dense<0.000000e+00> : vector<16xf32>
    %27 = vector.multi_reduction <add>, %26, %cst_12 [1] : vector<16x32xf32> to vector<16xf32>
    %28 = vector.shape_cast %27 : vector<16xf32> to vector<16x1xf32>
    %29 = tpu.reciprocal %28 : vector<16x1xf32> -> vector<16x1xf32>
    %30 = vector.broadcast %29 : vector<16x1xf32> to vector<16x32xf32>
    %31 = arith.mulf %26, %30 : vector<16x32xf32>
    %cst_13 = arith.constant dense<0.000000e+00> : vector<16x128xf32>
    %32 = tpu.matmul %31, %3, %cst_13 {dimension_numbers = #tpu.dot_dimension_numbers<[1], [0], [0], [1], [0, 0, 1, 1], [], []>} : vector<16x32xf32>, vector<32x128xf32>, vector<16x128xf32> -> vector<16x128xf32>
    %c0_14 = arith.constant 0 : index
    %c0_15 = arith.constant 0 : index
    %33 = vector.load %arg6[%c0_14, %c0_15] : memref<1x128xf32, #tpu.memory_space<vmem>>, vector<1x128xf32>
    %34 = vector.broadcast %33 : vector<1x128xf32> to vector<16x128xf32>
    %35 = arith.addf %32, %34 : vector<16x128xf32>
    %c0_16 = arith.constant 0 : index
    %c0_17 = arith.constant 0 : index
    %c0_18 = arith.constant 0 : index
    %36 = vector.load %arg7[%c0_16, %c0_17, %c0_18] : memref<1x16x128xf32, #tpu.memory_space<vmem>>, vector<1x16x128xf32>
    %37 = vector.shape_cast %36 : vector<1x16x128xf32> to vector<16x128xf32>
    %38 = vector.shape_cast %35 : vector<16x128xf32> to vector<1x16x128xf32>
    tpu.vector_store %arg7[%c0_16, %c0_17, %c0_18], %38 {strides = array<i32>} : memref<1x16x128xf32, #tpu.memory_space<vmem>>, vector<1x16x128xf32>,
    return
  }
  func.func @transform_0(%arg0: i32, %arg1: i32) -> (i32, i32) {
    %c0_i32 = arith.constant 0 : i32
    %c0_i32_0 = arith.constant 0 : i32
    return %arg1, %c0_i32 : i32, i32
  }
  func.func @transform_1(%arg0: i32, %arg1: i32) -> (i32, i32, i32) {
    %c0_i32 = arith.constant 0 : i32
    %c0_i32_0 = arith.constant 0 : i32
    return %arg0, %arg1, %c0_i32 : i32, i32, i32
  }
  func.func @transform_2(%arg0: i32, %arg1: i32) -> (i32, i32, i32) {
    %c0_i32 = arith.constant 0 : i32
    %c0_i32_0 = arith.constant 0 : i32
    %c0_i32_1 = arith.constant 0 : i32
    return %arg0, %c0_i32, %c0_i32_0 : i32, i32, i32
  }
  func.func @transform_3(%arg0: i32, %arg1: i32) -> (i32, i32) {
    %c0_i32 = arith.constant 0 : i32
    %c0_i32_0 = arith.constant 0 : i32
    %c0_i32_1 = arith.constant 0 : i32
    return %c0_i32, %c0_i32_0 : i32, i32
  }
  func.func @transform_4(%arg0: i32, %arg1: i32) -> (i32, i32) {
    %c0_i32 = arith.constant 0 : i32
    %c0_i32_0 = arith.constant 0 : i32
    %c0_i32_1 = arith.constant 0 : i32
    return %c0_i32, %c0_i32_0 : i32, i32
  }
  func.func @transform_5(%arg0: i32, %arg1: i32) -> (i32, i32, i32) {
    %c0_i32 = arith.constant 0 : i32
    %c0_i32_0 = arith.constant 0 : i32
    return %arg0, %arg1, %c0_i32 : i32, i32, i32
  }
}

</mosaic_0001>

<llo_original>
// kernel: gatv2_f_forward.2
$region0: #{gatv2_f_forward.2}
  #allocation0 [shape = 'u32[]', space=smem, size = 0x4, offset = 0x4, fixed_abs, tag = 'smem constant byte address 0x4 - core index']
  #allocation1 [shape = 'u32[144,128]{1,0:T(1,128)}', space=vmem, size = 0x12000, scoped, tag = 'internal scratch']
  %s0 = inlined_call_operand.vmem [shape: f32[64,8], index: 0, kind: input, shape index: {}]
  %s1 = inlined_call_operand.vmem [shape: f32[8,128], index: 1, kind: input, shape index: {}]
  %s2 = inlined_call_operand.vmem [shape: f32[1,128], index: 2, kind: input, shape index: {}]
  %s3 = inlined_call_operand.vmem [shape: f32[8,128], index: 3, kind: input, shape index: {}]
  %s4 = inlined_call_operand.vmem [shape: f32[1,128], index: 4, kind: input, shape index: {}]
  %s5 = inlined_call_operand.vmem [shape: f32[64,128], index: 5, kind: output, shape index: {0}]
  %s6 = inlined_call_operand.vmem [shape: f32[64,128], index: 6, kind: output, shape index: {1}]
  %7 = xla_tuple %s5, %s6
  %s8 = sld [smem:[#allocation0]]
  $region38: #{gatv2_f_forward.2} parent=0
    _
  %s10 = ssub.s32 1, %s8
  %s11 = scalar_select 0, %s10, %s8
  // Predicated region
  $region2: #{gatv2_f_forward.2} parent=0 // pred_check
    _
  $region3: #{gatv2_f_forward.2} parent=0 // pred_check_branch
    %13 = sbr.rel (0) target = $region5
  $region4: #{gatv2_f_forward.2} parent=0 // pred_region
    _
  $region5: #{gatv2_f_forward.2} parent=0 // pred_fallthru
    _
  // Predicated region
  $region6: #{gatv2_f_forward.2} parent=0 // pred_check
    _
  $region7: #{gatv2_f_forward.2} parent=0 // pred_check_branch
    %15 = sbr.rel (0) target = $region9
  $region8: #{gatv2_f_forward.2} parent=0 // pred_region
    _
  $region9: #{gatv2_f_forward.2} parent=0 // pred_fallthru
    _
  // Predicated region
  $region10: #{gatv2_f_forward.2} parent=0 // pred_check
    _
  $region11: #{gatv2_f_forward.2} parent=0 // pred_check_branch
    %17 = sbr.rel (0) target = $region13
  $region12: #{gatv2_f_forward.2} parent=0 // pred_region
    _
  $region13: #{gatv2_f_forward.2} parent=0 // pred_fallthru
    _
  // Predicated region
  $region14: #{gatv2_f_forward.2} parent=0 // pred_check
    _
  $region15: #{gatv2_f_forward.2} parent=0 // pred_check_branch
    %19 = sbr.rel (0) target = $region17
  $region16: #{gatv2_f_forward.2} parent=0 // pred_region
    _
  $region17: #{gatv2_f_forward.2} parent=0 // pred_fallthru
    _
  // Predicated region
  $region18: #{gatv2_f_forward.2} parent=0 // pred_check
    _
  $region19: #{gatv2_f_forward.2} parent=0 // pred_check_branch
    %21 = sbr.rel (0) target = $region21
  $region20: #{gatv2_f_forward.2} parent=0 // pred_region
    _
  $region21: #{gatv2_f_forward.2} parent=0 // pred_fallthru
    _
  %v22 = vld [vmem:[%s0] sm:$0xff]
  %v23 = vld [vmem:[%s0 + $0x8] sm:$0xff]
  %v24 = vld [vmem:[%s0 + $0x10] sm:$0xff]
  %v25 = vld [vmem:[%s0 + $0x18] sm:$0xff]
  %v26 = vld [vmem:[%s0 + $0x20] sm:$0xff]
  %v27 = vld [vmem:[%s0 + $0x28] sm:$0xff]
  %v28 = vld [vmem:[%s0 + $0x30] sm:$0xff]
  %v29 = vld [vmem:[%s0 + $0x38] sm:$0xff]
  %v30 = vld [vmem:[%s1] sm:$0xff]
  %v31 = vld [vmem:[%s2] sm:$0x1]
  %v33 = vlaneseq
  %v34 = vshrl.u32 %v33, 7
  %v35 = vsub.s32 0, %v34
  %v36 = vrot.slane %v31, %v35
  %vm38 = vcmask 64512
  %v40 = vsel %vm38, %v22, 0
  %v43 = vsel %vm38, %v23, 0
  %v46 = vsel %vm38, %v24, 0
  %v49 = vsel %vm38, %v25, 0
  %v52 = vsel %vm38, %v26, 0
  %v55 = vsel %vm38, %v27, 0
  %v58 = vsel %vm38, %v28, 0
  %v61 = vsel %vm38, %v29, 0
  %63 = vmatprep.subr.mxu0 0.0
  %64 = vmatpush1.msra.mxu0 %v30
  %65 = vmatprep.subr.mxu0 0.0
  %66 = vmatpush1.msra.mxu0 0.0
  %67 = vmatprep.subr.mxu0 0.0
  %68 = vmatpush1.msra.mxu0 0.0
  %69 = vmatprep.subr.mxu0 0.0
  %70 = vmatpush1.msra.mxu0 0.0
  %71 = vmatprep.subr.mxu0 0.0
  %72 = vmatpush1.msra.mxu0 0.0
  %73 = vmatprep.subr.mxu0 0.0
  %74 = vmatpush1.msra.mxu0 0.0
  %75 = vmatprep.subr.mxu0 0.0
  %76 = vmatpush1.msra.mxu0 0.0
  %77 = vmatprep.subr.mxu0 0.0
  %78 = vmatpush1.msra.mxu0 0.0
  %79 = vmatprep.subr.mxu0 0.0
  %80 = vmatpush1.msra.mxu0 0.0
  %81 = vmatprep.subr.mxu0 0.0
  %82 = vmatpush1.msra.mxu0 0.0
  %83 = vmatprep.subr.mxu0 0.0
  %84 = vmatpush1.msra.mxu0 0.0
  %85 = vmatprep.subr.mxu0 0.0
  %86 = vmatpush1.msra.mxu0 0.0
  %87 = vmatprep.subr.mxu0 0.0
  %88 = vmatpush1.msra.mxu0 0.0
  %89 = vmatprep.subr.mxu0 0.0
  %90 = vmatpush1.msra.mxu0 0.0
  %91 = vmatprep.subr.mxu0 0.0
  %92 = vmatpush1.msra.mxu0 0.0
  %93 = vmatprep.subr.mxu0 0.0
  %94 = vmatpush1.msra.mxu0 0.0
  %95 = vmatprep.subr.mxu0 0.0
  %96 = vmatpush1.msra.mxu0 0.0
  %97 = vmatprep.subr.mxu0 0.0
  %98 = vmatpush1.msra.mxu0 0.0
  %99 = vmatprep.subr.mxu0 0.0
  %100 = vmatpush1.msra.mxu0 0.0
  %101 = vmatprep.subr.mxu0 0.0
  %102 = vmatpush1.msra.mxu0 0.0
  %103 = vmatprep.subr.mxu0 0.0
  %104 = vmatpush1.msra.mxu0 0.0
  %105 = vmatprep.subr.mxu0 0.0
  %106 = vmatpush1.msra.mxu0 0.0
  %107 = vmatprep.subr.mxu0 0.0
  %108 = vmatpush1.msra.mxu0 0.0
  %109 = vmatprep.subr.mxu0 0.0
  %110 = vmatpush1.msra.mxu0 0.0
  %111 = vmatprep.subr.mxu0 0.0
  %112 = vmatpush1.msra.mxu0 0.0
  %113 = vmatprep.subr.mxu0 0.0
  %114 = vmatpush1.msra.mxu0 0.0
  %115 = vmatprep.subr.mxu0 0.0
  %116 = vmatpush1.msra.mxu0 0.0
  %117 = vmatprep.subr.mxu0 0.0
  %118 = vmatpush1.msra.mxu0 0.0
  %119 = vmatprep.subr.mxu0 0.0
  %120 = vmatpush1.msra.mxu0 0.0
  %121 = vmatprep.subr.mxu0 0.0
  %122 = vmatpush1.msra.mxu0 0.0
  %123 = vmatprep.subr.mxu0 0.0
  %124 = vmatpush1.msra.mxu0 0.0
  %125 = vmatprep.subr.mxu0 0.0
  %126 = vmatpush1.msra.mxu0 0.0
  %127 = vmatprep.mubr.f32.mxu0 0.0
  %128 = vmatmul.mubr.f32.gmra.mrb[0].mxu0 %v40
  %v129 = vpop.f32.mrb[0].mxu0
  %v130 = vadd.f32 %v36, %v129
  %v131 = vpop.f32.mrb[0].mxu0
  %132 = vmatprep.mubr.f32.mxu0 0.0
  %133 = vmatmul.mubr.f32.gmra.mrb[0].mxu0 %v43
  %v134 = vpop.f32.mrb[0].mxu0
  %v135 = vadd.f32 %v36, %v134
  %v136 = vpop.f32.mrb[0].mxu0
  %137 = vmatprep.mubr.f32.mxu0 0.0
  %138 = vmatmul.mubr.f32.gmra.mrb[0].mxu0 %v46
  %v139 = vpop.f32.mrb[0].mxu0
  %v140 = vadd.f32 %v36, %v139
  %v141 = vpop.f32.mrb[0].mxu0
  %142 = vmatprep.mubr.f32.mxu0 0.0
  %143 = vmatmul.mubr.f32.gmra.mrb[0].mxu0 %v49
  %v144 = vpop.f32.mrb[0].mxu0
  %v145 = vadd.f32 %v36, %v144
  %v146 = vpop.f32.mrb[0].mxu0
  %147 = vmatprep.mubr.f32.mxu0 0.0
  %148 = vmatmul.mubr.f32.gmra.mrb[0].mxu0 %v52
  %v149 = vpop.f32.mrb[0].mxu0
  %v150 = vadd.f32 %v36, %v149
  %v151 = vpop.f32.mrb[0].mxu0
  %152 = vmatprep.mubr.f32.mxu0 0.0
  %153 = vmatmul.mubr.f32.gmra.mrb[0].mxu0 %v55
  %v154 = vpop.f32.mrb[0].mxu0
  %v155 = vadd.f32 %v36, %v154
  %v156 = vpop.f32.mrb[0].mxu0
  %157 = vmatprep.mubr.f32.mxu0 0.0
  %158 = vmatmul.mubr.f32.gmra.mrb[0].mxu0 %v58
  %v159 = vpop.f32.mrb[0].mxu0
  %v160 = vadd.f32 %v36, %v159
  %v161 = vpop.f32.mrb[0].mxu0
  %162 = vmatprep.mubr.f32.mxu0 0.0
  %163 = vmatmul.mubr.f32.gmra.mrb[0].mxu0 %v61
  %v164 = vpop.f32.mrb[0].mxu0
  %v165 = vadd.f32 %v36, %v164
  %v166 = vpop.f32.mrb[0].mxu0
  %167 = vdwg.mxu0
  %168 = vst [vmem:[%s5] sm:$0xff] %v130
  %169 = vst [vmem:[%s5 + $0x8] sm:$0xff] %v135
  %170 = vst [vmem:[%s5 + $0x10] sm:$0xff] %v140
  %171 = vst [vmem:[%s5 + $0x18] sm:$0xff] %v145
  %172 = vst [vmem:[%s5 + $0x20] sm:$0xff] %v150
  %173 = vst [vmem:[%s5 + $0x28] sm:$0xff] %v155
  %174 = vst [vmem:[%s5 + $0x30] sm:$0xff] %v160
  %175 = vst [vmem:[%s5 + $0x38] sm:$0xff] %v165
  %v176 = vld [vmem:[%s3] sm:$0xff]
  %v177 = vld [vmem:[%s4] sm:$0x1]
  %v179 = vlaneseq
  %v180 = vshrl.u32 %v179, 7
  %v181 = vsub.s32 0, %v180
  %v182 = vrot.slane %v177, %v181
  %184 = vmatprep.subr.mxu0 0.0
  %185 = vmatpush1.msra.mxu0 %v176
  %186 = vmatprep.subr.mxu0 0.0
  %187 = vmatpush1.msra.mxu0 0.0
  %188 = vmatprep.subr.mxu0 0.0
  %189 = vmatpush1.msra.mxu0 0.0
  %190 = vmatprep.subr.mxu0 0.0
  %191 = vmatpush1.msra.mxu0 0.0
  %192 = vmatprep.subr.mxu0 0.0
  %193 = vmatpush1.msra.mxu0 0.0
  %194 = vmatprep.subr.mxu0 0.0
  %195 = vmatpush1.msra.mxu0 0.0
  %196 = vmatprep.subr.mxu0 0.0
  %197 = vmatpush1.msra.mxu0 0.0
  %198 = vmatprep.subr.mxu0 0.0
  %199 = vmatpush1.msra.mxu0 0.0
  %200 = vmatprep.subr.mxu0 0.0
  %201 = vmatpush1.msra.mxu0 0.0
  %202 = vmatprep.subr.mxu0 0.0
  %203 = vmatpush1.msra.mxu0 0.0
  %204 = vmatprep.subr.mxu0 0.0
  %205 = vmatpush1.msra.mxu0 0.0
  %206 = vmatprep.subr.mxu0 0.0
  %207 = vmatpush1.msra.mxu0 0.0
  %208 = vmatprep.subr.mxu0 0.0
  %209 = vmatpush1.msra.mxu0 0.0
  %210 = vmatprep.subr.mxu0 0.0
  %211 = vmatpush1.msra.mxu0 0.0
  %212 = vmatprep.subr.mxu0 0.0
  %213 = vmatpush1.msra.mxu0 0.0
  %214 = vmatprep.subr.mxu0 0.0
  %215 = vmatpush1.msra.mxu0 0.0
  %216 = vmatprep.subr.mxu0 0.0
  %217 = vmatpush1.msra.mxu0 0.0
  %218 = vmatprep.subr.mxu0 0.0
  %219 = vmatpush1.msra.mxu0 0.0
  %220 = vmatprep.subr.mxu0 0.0
  %221 = vmatpush1.msra.mxu0 0.0
  %222 = vmatprep.subr.mxu0 0.0
  %223 = vmatpush1.msra.mxu0 0.0
  %224 = vmatprep.subr.mxu0 0.0
  %225 = vmatpush1.msra.mxu0 0.0
  %226 = vmatprep.subr.mxu0 0.0
  %227 = vmatpush1.msra.mxu0 0.0
  %228 = vmatprep.subr.mxu0 0.0
  %229 = vmatpush1.msra.mxu0 0.0
  %230 = vmatprep.subr.mxu0 0.0
  %231 = vmatpush1.msra.mxu0 0.0
  %232 = vmatprep.subr.mxu0 0.0
  %233 = vmatpush1.msra.mxu0 0.0
  %234 = vmatprep.subr.mxu0 0.0
  %235 = vmatpush1.msra.mxu0 0.0
  %236 = vmatprep.subr.mxu0 0.0
  %237 = vmatpush1.msra.mxu0 0.0
  %238 = vmatprep.subr.mxu0 0.0
  %239 = vmatpush1.msra.mxu0 0.0
  %240 = vmatprep.subr.mxu0 0.0
  %241 = vmatpush1.msra.mxu0 0.0
  %242 = vmatprep.subr.mxu0 0.0
  %243 = vmatpush1.msra.mxu0 0.0
  %244 = vmatprep.subr.mxu0 0.0
  %245 = vmatpush1.msra.mxu0 0.0
  %246 = vmatprep.subr.mxu0 0.0
  %247 = vmatpush1.msra.mxu0 0.0
  %248 = vmatprep.mubr.f32.mxu0 0.0
  %249 = vmatmul.mubr.f32.gmra.mrb[0].mxu0 %v40
  %v250 = vpop.f32.mrb[0].mxu0
  %v251 = vadd.f32 %v182, %v250
  %v252 = vpop.f32.mrb[0].mxu0
  %253 = vmatprep.mubr.f32.mxu0 0.0
  %254 = vmatmul.mubr.f32.gmra.mrb[0].mxu0 %v43
  %v255 = vpop.f32.mrb[0].mxu0
  %v256 = vadd.f32 %v182, %v255
  %v257 = vpop.f32.mrb[0].mxu0
  %258 = vmatprep.mubr.f32.mxu0 0.0
  %259 = vmatmul.mubr.f32.gmra.mrb[0].mxu0 %v46
  %v260 = vpop.f32.mrb[0].mxu0
  %v261 = vadd.f32 %v182, %v260
  %v262 = vpop.f32.mrb[0].mxu0
  %263 = vmatprep.mubr.f32.mxu0 0.0
  %264 = vmatmul.mubr.f32.gmra.mrb[0].mxu0 %v49
  %v265 = vpop.f32.mrb[0].mxu0
  %v266 = vadd.f32 %v182, %v265
  %v267 = vpop.f32.mrb[0].mxu0
  %268 = vmatprep.mubr.f32.mxu0 0.0
  %269 = vmatmul.mubr.f32.gmra.mrb[0].mxu0 %v52
  %v270 = vpop.f32.mrb[0].mxu0
  %v271 = vadd.f32 %v182, %v270
  %v272 = vpop.f32.mrb[0].mxu0
  %273 = vmatprep.mubr.f32.mxu0 0.0
  %274 = vmatmul.mubr.f32.gmra.mrb[0].mxu0 %v55
  %v275 = vpop.f32.mrb[0].mxu0
  %v276 = vadd.f32 %v182, %v275
  %v277 = vpop.f32.mrb[0].mxu0
  %278 = vmatprep.mubr.f32.mxu0 0.0
  %279 = vmatmul.mubr.f32.gmra.mrb[0].mxu0 %v58
  %v280 = vpop.f32.mrb[0].mxu0
  %v281 = vadd.f32 %v182, %v280
  %v282 = vpop.f32.mrb[0].mxu0
  %283 = vmatprep.mubr.f32.mxu0 0.0
  %284 = vmatmul.mubr.f32.gmra.mrb[0].mxu0 %v61
  %v285 = vpop.f32.mrb[0].mxu0
  %v286 = vadd.f32 %v182, %v285
  %v287 = vpop.f32.mrb[0].mxu0
  %288 = vdwg.mxu0
  %289 = vst [vmem:[%s6] sm:$0xff] %v251
  %290 = vst [vmem:[%s6 + $0x8] sm:$0xff] %v256
  %291 = vst [vmem:[%s6 + $0x10] sm:$0xff] %v261
  %292 = vst [vmem:[%s6 + $0x18] sm:$0xff] %v266
  %293 = vst [vmem:[%s6 + $0x20] sm:$0xff] %v271
  %294 = vst [vmem:[%s6 + $0x28] sm:$0xff] %v276
  %295 = vst [vmem:[%s6 + $0x30] sm:$0xff] %v281
  %296 = vst [vmem:[%s6 + $0x38] sm:$0xff] %v286
  // Predicated region
  $region22: #{gatv2_f_forward.2} parent=0 // pred_check
    _
  $region23: #{gatv2_f_forward.2} parent=0 // pred_check_branch
    %298 = sbr.rel (0) target = $region25
  $region24: #{gatv2_f_forward.2} parent=0 // pred_region
    _
  $region25: #{gatv2_f_forward.2} parent=0 // pred_fallthru
    _
  // Predicated region
  $region26: #{gatv2_f_forward.2} parent=0 // pred_check
    _
  $region27: #{gatv2_f_forward.2} parent=0 // pred_check_branch
    %300 = sbr.rel (0) target = $region29
  $region28: #{gatv2_f_forward.2} parent=0 // pred_region
    _
  $region29: #{gatv2_f_forward.2} parent=0 // pred_fallthru
    _
  // Predicated region
  $region30: #{gatv2_f_forward.2} parent=0 // pred_check
    _
  $region31: #{gatv2_f_forward.2} parent=0 // pred_check_branch
    %302 = sbr.rel (0) target = $region33
  $region32: #{gatv2_f_forward.2} parent=0 // pred_region
    _
  $region33: #{gatv2_f_forward.2} parent=0 // pred_fallthru
    _
  // Predicated region
  $region34: #{gatv2_f_forward.2} parent=0 // pred_check
    _
  $region35: #{gatv2_f_forward.2} parent=0 // pred_check_branch
    %304 = sbr.rel (0) target = $region37
  $region36: #{gatv2_f_forward.2} parent=0 // pred_region
    _
  $region37: #{gatv2_f_forward.2} parent=0 // pred_fallthru
    _

// kernel: gatv2_f_forward.3
$region0: #{gatv2_f_forward.3}
  #allocation0 [shape = 'u32[]', space=smem, size = 0x4, offset = 0x4, fixed_abs, tag = 'smem constant byte address 0x4 - core index']
  #allocation1 [shape = 'u32[144,128]{1,0:T(1,128)}', space=vmem, size = 0x12000, scoped, tag = 'internal scratch']
  %s0 = inlined_call_operand.vmem [shape: f32[32,32], index: 0, kind: input, shape index: {}]
  %s1 = inlined_call_operand.vmem [shape: f32[2,32,128], index: 1, kind: input, shape index: {}]
  %s2 = inlined_call_operand.vmem [shape: f32[2,32,128], index: 2, kind: input, shape index: {}]
  %s3 = inlined_call_operand.vmem [shape: f32[1,128], index: 3, kind: input, shape index: {}]
  %s4 = inlined_call_operand.vmem [shape: f32[1,128], index: 4, kind: input, shape index: {}]
  %s5 = inlined_call_operand.vmem [shape: f32[2,32,128], index: 5, kind: output, shape index: {}]
  %s6 = sld [smem:[#allocation0]]
  $region53: #{gatv2_f_forward.3} parent=0
    _
  %s8 = ssub.s32 1, %s6
  %s9 = scalar_select 0, %s8, %s6
  loop: start=0, step=1, limit=6
  $region2: #{gatv2_f_forward.3} parent=0 // loop_pre_header
    _
  $region3: #{gatv2_f_forward.3} parent=0 // loop_header
    %s11 = sphi 0, %s15
    %p12 = scmp.ge.s32.totalorder %s11, 6
    %s18 = sphi 0, %s30
    %s19 = sphi 0, %s26
    %s20 = sphi 0, %s18
    %s21 = sphi 0, %s19
    %s22 = sphi 0, %s20
    %s23 = sphi 0, %s21
    %s33 = sphi 0, %s35
    %s36 = sphi 0, %s33
    %s37 = sphi 0, %s36
    %s53 = sphi 0, %s37
    %s61 = sphi 0, %s63
    %s64 = sphi 0, %s61
    %s65 = sphi 0, %s64
    %s81 = sphi 0, %s65
    %s87 = sphi 0, %s89
    %s90 = sphi 0, %s87
    %s91 = sphi 0, %s90
    %s107 = sphi 0, %s91
    %s111 = sphi 0, %s111
    %s113 = sphi 0, %s111
    %s114 = sphi 0, %s113
    %s128 = sphi 0, %s114
    %s132 = sphi 0, %s132
    %s134 = sphi 0, %s132
    %s135 = sphi 0, %s134
    %s149 = sphi 0, %s135
    %s157 = sphi 0, %s159
    %s160 = sphi 0, %s157
    %s161 = sphi 0, %s160
    %s177 = sphi 0, %s161
  $region4: #{gatv2_f_forward.3} parent=0 // loop_header_branch
    %14 = sbr.rel (%p12) target = $region8
  $region5: #{gatv2_f_forward.3} parent=0 // loop_body
    %s16 = ssub.s32 %s11, 1
    %s17 = ssub.s32 %s11, 2
    %s24 = sadd.s32 1, %s19
    %p25 = scmp.ge.s32.totalorder %s24, 2
    %s26 = scalar_select %p25, 0, %s24
    %s27 = sadd.s32 1, %s18
    %s28 = scalar_select %p25, %s27, %s18
    %p29 = scmp.ge.s32.totalorder %s28, 2
    %s30 = scalar_select %p29, 0, %s28
    %s31 = ssub.s32 %s19, %s26
    %p32 = scmp.eq.s32.totalorder %s31, 0
    %s34 = sadd.s32 %s33, 1
    %s35 = scalar_select %p32, %s33, %s34
    %p38 = pneg %p32
    %p39 = scmp.eq.s32.totalorder %s11, 3
    %p40 = por %p38, %p39
    %p41 = scmp.ne.s32.totalorder %s33, %s36
    %p42 = scmp.eq.s32.totalorder %s11, 0
    %p43 = por %p41, %p42
    %p44 = scmp.ne.s32.totalorder %s33, %s36
    %p45 = scmp.eq.s32.totalorder %s16, 3
    %p46 = por %p44, %p45
    %p47 = scmp.ne.s32.totalorder %s36, %s37
    %p48 = scmp.eq.s32.totalorder %s16, 0
    %p49 = por %p47, %p48
    %p50 = scmp.ne.s32.totalorder %s36, %s37
    %p51 = scmp.eq.s32.totalorder %s17, 3
    %p52 = por %p50, %p51
    %p54 = scmp.ne.s32.totalorder %s37, %s53
    %p55 = scmp.eq.s32.totalorder %s17, 0
    %p56 = por %p54, %p55
    %s57 = ssub.s32 %s18, %s30
    %s58 = ssub.s32 %s19, %s26
    %s59 = sor.u32 %s57, %s58
    %p60 = scmp.eq.s32.totalorder %s59, 0
    %s62 = sadd.s32 %s61, 1
    %s63 = scalar_select %p60, %s61, %s62
    %p66 = pneg %p60
    %p67 = scmp.eq.s32.totalorder %s11, 3
    %p68 = por %p66, %p67
    %p69 = scmp.ne.s32.totalorder %s61, %s64
    %p70 = scmp.eq.s32.totalorder %s11, 0
    %p71 = por %p69, %p70
    %p72 = scmp.ne.s32.totalorder %s61, %s64
    %p73 = scmp.eq.s32.totalorder %s16, 3
    %p74 = por %p72, %p73
    %p75 = scmp.ne.s32.totalorder %s64, %s65
    %p76 = scmp.eq.s32.totalorder %s16, 0
    %p77 = por %p75, %p76
    %p78 = scmp.ne.s32.totalorder %s64, %s65
    %p79 = scmp.eq.s32.totalorder %s17, 3
    %p80 = por %p78, %p79
    %p82 = scmp.ne.s32.totalorder %s65, %s81
    %p83 = scmp.eq.s32.totalorder %s17, 0
    %p84 = por %p82, %p83
    %s85 = ssub.s32 %s18, %s30
    %p86 = scmp.eq.s32.totalorder %s85, 0
    %s88 = sadd.s32 %s87, 1
    %s89 = scalar_select %p86, %s87, %s88
    %p92 = pneg %p86
    %p93 = scmp.eq.s32.totalorder %s11, 3
    %p94 = por %p92, %p93
    %p95 = scmp.ne.s32.totalorder %s87, %s90
    %p96 = scmp.eq.s32.totalorder %s11, 0
    %p97 = por %p95, %p96
    %p98 = scmp.ne.s32.totalorder %s87, %s90
    %p99 = scmp.eq.s32.totalorder %s16, 3
    %p100 = por %p98, %p99
    %p101 = scmp.ne.s32.totalorder %s90, %s91
    %p102 = scmp.eq.s32.totalorder %s16, 0
    %p103 = por %p101, %p102
    %p104 = scmp.ne.s32.totalorder %s90, %s91
    %p105 = scmp.eq.s32.totalorder %s17, 3
    %p106 = por %p104, %p105
    %p108 = scmp.ne.s32.totalorder %s91, %s107
    %p109 = scmp.eq.s32.totalorder %s17, 0
    %p110 = por %p108, %p109
    %s112 = sadd.s32 %s111, 1
    %p115 = scmp.eq.s32.totalorder %s11, 3
    %p116 = scmp.ne.s32.totalorder %s111, %s113
    %p117 = scmp.eq.s32.totalorder %s11, 0
    %p118 = por %p116, %p117
    %p119 = scmp.ne.s32.totalorder %s111, %s113
    %p120 = scmp.eq.s32.totalorder %s16, 3
    %p121 = por %p119, %p120
    %p122 = scmp.ne.s32.totalorder %s113, %s114
    %p123 = scmp.eq.s32.totalorder %s16, 0
    %p124 = por %p122, %p123
    %p125 = scmp.ne.s32.totalorder %s113, %s114
    %p126 = scmp.eq.s32.totalorder %s17, 3
    %p127 = por %p125, %p126
    %p129 = scmp.ne.s32.totalorder %s114, %s128
    %p130 = scmp.eq.s32.totalorder %s17, 0
    %p131 = por %p129, %p130
    %s133 = sadd.s32 %s132, 1
    %p136 = scmp.eq.s32.totalorder %s11, 3
    %p137 = scmp.ne.s32.totalorder %s132, %s134
    %p138 = scmp.eq.s32.totalorder %s11, 0
    %p139 = por %p137, %p138
    %p140 = scmp.ne.s32.totalorder %s132, %s134
    %p141 = scmp.eq.s32.totalorder %s16, 3
    %p142 = por %p140, %p141
    %p143 = scmp.ne.s32.totalorder %s134, %s135
    %p144 = scmp.eq.s32.totalorder %s16, 0
    %p145 = por %p143, %p144
    %p146 = scmp.ne.s32.totalorder %s134, %s135
    %p147 = scmp.eq.s32.totalorder %s17, 3
    %p148 = por %p146, %p147
    %p150 = scmp.ne.s32.totalorder %s135, %s149
    %p151 = scmp.eq.s32.totalorder %s17, 0
    %p152 = por %p150, %p151
    %s153 = ssub.s32 %s18, %s30
    %s154 = ssub.s32 %s19, %s26
    %s155 = sor.u32 %s153, %s154
    %p156 = scmp.eq.s32.totalorder %s155, 0
    %s158 = sadd.s32 %s157, 1
    %s159 = scalar_select %p156, %s157, %s158
    %p162 = pneg %p156
    %p163 = scmp.eq.s32.totalorder %s11, 3
    %p164 = por %p162, %p163
    %p165 = scmp.ne.s32.totalorder %s157, %s160
    %p166 = scmp.eq.s32.totalorder %s11, 0
    %p167 = por %p165, %p166
    %p168 = scmp.ne.s32.totalorder %s157, %s160
    %p169 = scmp.eq.s32.totalorder %s16, 3
    %p170 = por %p168, %p169
    %p171 = scmp.ne.s32.totalorder %s160, %s161
    %p172 = scmp.eq.s32.totalorder %s16, 0
    %p173 = por %p171, %p172
    %p174 = scmp.ne.s32.totalorder %s160, %s161
    %p175 = scmp.eq.s32.totalorder %s17, 3
    %p176 = por %p174, %p175
    %p178 = scmp.ne.s32.totalorder %s161, %s177
    %p179 = scmp.eq.s32.totalorder %s17, 0
    %p180 = por %p178, %p179
    %p181 = scmp.le.s32.totalorder 1, %s11
    %p182 = scmp.lt.s32.totalorder %s11, 5
    %p183 = pnand %p181, %p182
    %p184 = pneg %p183
    // Predicated region
    $region9: #{gatv2_f_forward.3} parent=5 // pred_check
      _
    $region10: #{gatv2_f_forward.3} parent=5 // pred_check_branch
      %186 = sbr.rel (%p183) target = $region12
    $region11: #{gatv2_f_forward.3} parent=5 // pred_region
      %s187 = ssub.s32 %s11, 1
      // Predicated region
      $region13: #{gatv2_f_forward.3} parent=11 // pred_check
        %p188 = pneg %p124
      $region14: #{gatv2_f_forward.3} parent=11 // pred_check_branch
        %190 = sbr.rel (%p188) target = $region16
      $region15: #{gatv2_f_forward.3} parent=11 // pred_region
        _
      $region16: #{gatv2_f_forward.3} parent=11 // pred_fallthru
        _
      // Predicated region
      $region17: #{gatv2_f_forward.3} parent=11 // pred_check
        %p191 = pneg %p145
      $region18: #{gatv2_f_forward.3} parent=11 // pred_check_branch
        %193 = sbr.rel (%p191) target = $region20
      $region19: #{gatv2_f_forward.3} parent=11 // pred_region
        _
      $region20: #{gatv2_f_forward.3} parent=11 // pred_fallthru
        _
    $region12: #{gatv2_f_forward.3} parent=5 // pred_fallthru
      _
    %p194 = scmp.lt.s32.totalorder %s11, 4
    // Predicated region
    $region21: #{gatv2_f_forward.3} parent=5 // pred_check
      %p195 = pneg %p194
    $region22: #{gatv2_f_forward.3} parent=5 // pred_check_branch
      %197 = sbr.rel (%p195) target = $region24
    $region23: #{gatv2_f_forward.3} parent=5 // pred_region
      // Predicated region
      $region25: #{gatv2_f_forward.3} parent=23 // pred_check
        %p198 = pneg %p43
      $region26: #{gatv2_f_forward.3} parent=23 // pred_check_branch
        %200 = sbr.rel (%p198) target = $region28
      $region27: #{gatv2_f_forward.3} parent=23 // pred_region
        %s201 = smul.u32 2, %s19
        %p202 = scmp.lt.s32.totalorder %s201, 3
        %s203 = scalar_select %p202, %s201, 3
        %s204 = smul.addr %s203, 8
        %s205 = scalar_lea.vmem %s0, %s204
        %s206 = smul.u32 2, %s19
      $region28: #{gatv2_f_forward.3} parent=23 // pred_fallthru
        _
      // Predicated region
      $region29: #{gatv2_f_forward.3} parent=23 // pred_check
        %p207 = pneg %p71
      $region30: #{gatv2_f_forward.3} parent=23 // pred_check_branch
        %209 = sbr.rel (%p207) target = $region32
      $region31: #{gatv2_f_forward.3} parent=23 // pred_region
        %s210 = smul.u32 2, %s19
        %p211 = scmp.lt.s32.totalorder %s18, 1
        %s212 = scalar_select %p211, %s18, 1
        %p213 = scmp.lt.s32.totalorder %s210, 3
        %s214 = scalar_select %p213, %s210, 3
        %s215 = smul.addr %s212, 4
        %s216 = sadd.s32 %s214, %s215
        %s217 = smul.addr %s216, 8
        %s218 = scalar_lea.vmem %s1, %s217
        %s219 = smul.u32 2, %s19
      $region32: #{gatv2_f_forward.3} parent=23 // pred_fallthru
        _
      // Predicated region
      $region33: #{gatv2_f_forward.3} parent=23 // pred_check
        %p220 = pneg %p97
      $region34: #{gatv2_f_forward.3} parent=23 // pred_check_branch
        %222 = sbr.rel (%p220) target = $region36
      $region35: #{gatv2_f_forward.3} parent=23 // pred_region
        %p223 = scmp.lt.s32.totalorder %s18, 1
        %s224 = scalar_select %p223, %s18, 1
        %s225 = smul.addr %s224, 4
        %s226 = smul.addr %s225, 8
        %s227 = scalar_lea.vmem %s2, %s226
      $region36: #{gatv2_f_forward.3} parent=23 // pred_fallthru
        _
    $region24: #{gatv2_f_forward.3} parent=5 // pred_fallthru
      _
    %p228 = scmp.le.s32.totalorder 1, %s11
    %p229 = scmp.lt.s32.totalorder %s11, 5
    %p230 = pnand %p228, %p229
    %p231 = pneg %p230
    // Predicated region
    $region37: #{gatv2_f_forward.3} parent=5 // pred_check
      _
    $region38: #{gatv2_f_forward.3} parent=5 // pred_check_branch
      %233 = sbr.rel (%p230) target = $region40
    $region39: #{gatv2_f_forward.3} parent=5 // pred_region
      %s234 = ssub.s32 %s11, 1
      %s235 = smul.u32 2, %s21
      %p236 = scmp.lt.s32.totalorder %s235, 3
      %s237 = scalar_select %p236, %s235, 3
      %s238 = smul.addr %s237, 8
      %s239 = scalar_lea.vmem %s0, %s238
      %p240 = pneg %p49
      %p241 = pneg %p46
      %s242 = smul.u32 2, %s21
      %p243 = scmp.lt.s32.totalorder %s20, 1
      %s244 = scalar_select %p243, %s20, 1
      %p245 = scmp.lt.s32.totalorder %s242, 3
      %s246 = scalar_select %p245, %s242, 3
      %s247 = smul.addr %s244, 4
      %s248 = sadd.s32 %s246, %s247
      %s249 = smul.addr %s248, 8
      %s250 = scalar_lea.vmem %s1, %s249
      %p251 = pneg %p77
      %p252 = pneg %p74
      %p253 = scmp.lt.s32.totalorder %s20, 1
      %s254 = scalar_select %p253, %s20, 1
      %s255 = smul.addr %s254, 4
      %s256 = smul.addr %s255, 8
      %s257 = scalar_lea.vmem %s2, %s256
      %p258 = pneg %p103
      %p259 = pneg %p100
      %p260 = pneg %p124
      %p261 = pneg %p121
      %p262 = pneg %p145
      %p263 = pneg %p142
      %p264 = pneg %p173
      %p265 = pneg %p170
      %s266 = smul.u32 2, %s21
      %p267 = scmp.lt.s32.totalorder %s20, 1
      %s268 = scalar_select %p267, %s20, 1
      %p269 = scmp.lt.s32.totalorder %s266, 3
      %s270 = scalar_select %p269, %s266, 3
      %s271 = smul.addr %s268, 4
      %s272 = sadd.s32 %s270, %s271
      %s273 = smul.addr %s272, 8
      %s274 = scalar_lea.vmem %s5, %s273
      %s275 = smul.u32 2, %s21
      %p276 = scmp.lt.s32.totalorder %s275, 3
      %s277 = scalar_select %p276, %s275, 3
      %s278 = smul.addr %s277, 8
      %s279 = scalar_lea.vmem %s0, %s278
      %s280 = smul.u32 2, %s21
      %s281 = smul.u32 2, %s21
      %p282 = scmp.lt.s32.totalorder %s20, 1
      %s283 = scalar_select %p282, %s20, 1
      %p284 = scmp.lt.s32.totalorder %s281, 3
      %s285 = scalar_select %p284, %s281, 3
      %s286 = smul.addr %s283, 4
      %s287 = sadd.s32 %s285, %s286
      %s288 = smul.addr %s287, 8
      %s289 = scalar_lea.vmem %s1, %s288
      %s290 = smul.u32 2, %s21
      %p291 = scmp.lt.s32.totalorder %s20, 1
      %s292 = scalar_select %p291, %s20, 1
      %s293 = smul.addr %s292, 4
      %s294 = smul.addr %s293, 8
      %s295 = scalar_lea.vmem %s2, %s294
      %s296 = smul.u32 2, %s21
      %p297 = scmp.lt.s32.totalorder %s20, 1
      %s298 = scalar_select %p297, %s20, 1
      %p299 = scmp.lt.s32.totalorder %s296, 3
      %s300 = scalar_select %p299, %s296, 3
      %s301 = smul.addr %s298, 4
      %s302 = sadd.s32 %s300, %s301
      %s303 = smul.addr %s302, 8
      %s304 = scalar_lea.vmem %s5, %s303
      %s305 = smul.u32 2, %s21
      %v306 = vld [vmem:[%s289] sm:$0xff]
      %v307 = vld [vmem:[%s289 + $0x8] sm:$0xff]
      %v308 = vld [vmem:[%s295] sm:$0xff]
      %v309 = vld [vmem:[%s295 + $0x8] sm:$0xff]
      %v310 = vld [vmem:[%s295 + $0x10] sm:$0xff]
      %v311 = vld [vmem:[%s295 + $0x18] sm:$0xff]
      %v314 = vcombine.high %v306, %v306
      %v316 = vunpack.c.l.s4 1966171168
      %v317 = vunpack.c.0.s8 %v316
      %v318 = vlaneseq
      %v319 = vshrl.u32 %v318, 7
      %v320 = vsub.s32 %v317, %v319
      %v321 = vrot.slane %v306, %v320
      %v323 = vunpack.c.l.s4 1966171168
      %v324 = vunpack.c.0.s8 %v323
      %v325 = vlaneseq
      %v326 = vshrl.u32 %v325, 7
      %v327 = vsub.s32 %v324, %v326
      %v328 = vrot.slane %v314, %v327
      %v329 = vcombine.high %v321, %v321
      %v330 = vcombine.high %v328, %v328
      %v332 = vunpack.c.l.s4 1966171168
      %v333 = vunpack.c.0.s8 %v332
      %v334 = vlaneseq
      %v335 = vshrl.u32 %v334, 7
      %v336 = vsub.s32 %v333, %v335
      %v337 = vrot.slane %v321, %v336
      %v339 = vunpack.c.l.s4 1966171168
      %v340 = vunpack.c.0.s8 %v339
      %v341 = vlaneseq
      %v342 = vshrl.u32 %v341, 7
      %v343 = vsub.s32 %v340, %v342
      %v344 = vrot.slane %v328, %v343
      %v346 = vunpack.c.l.s4 1966171168
      %v347 = vunpack.c.0.s8 %v346
      %v348 = vlaneseq
      %v349 = vshrl.u32 %v348, 7
      %v350 = vsub.s32 %v347, %v349
      %v351 = vrot.slane %v329, %v350
      %v353 = vunpack.c.l.s4 1966171168
      %v354 = vunpack.c.0.s8 %v353
      %v355 = vlaneseq
      %v356 = vshrl.u32 %v355, 7
      %v357 = vsub.s32 %v354, %v356
      %v358 = vrot.slane %v330, %v357
      %v359 = vcombine.high %v337, %v337
      %v360 = vcombine.high %v344, %v344
      %v361 = vcombine.high %v351, %v351
      %v362 = vcombine.high %v358, %v358
      %v363 = vcombine.high %v307, %v307
      %v365 = vunpack.c.l.s4 1966171168
      %v366 = vunpack.c.0.s8 %v365
      %v367 = vlaneseq
      %v368 = vshrl.u32 %v367, 7
      %v369 = vsub.s32 %v366, %v368
      %v370 = vrot.slane %v307, %v369
      %v372 = vunpack.c.l.s4 1966171168
      %v373 = vunpack.c.0.s8 %v372
      %v374 = vlaneseq
      %v375 = vshrl.u32 %v374, 7
      %v376 = vsub.s32 %v373, %v375
      %v377 = vrot.slane %v363, %v376
      %v378 = vcombine.high %v370, %v370
      %v379 = vcombine.high %v377, %v377
      %v381 = vunpack.c.l.s4 1966171168
      %v382 = vunpack.c.0.s8 %v381
      %v383 = vlaneseq
      %v384 = vshrl.u32 %v383, 7
      %v385 = vsub.s32 %v382, %v384
      %v386 = vrot.slane %v370, %v385
      %v388 = vunpack.c.l.s4 1966171168
      %v389 = vunpack.c.0.s8 %v388
      %v390 = vlaneseq
      %v391 = vshrl.u32 %v390, 7
      %v392 = vsub.s32 %v389, %v391
      %v393 = vrot.slane %v377, %v392
      %v395 = vunpack.c.l.s4 1966171168
      %v396 = vunpack.c.0.s8 %v395
      %v397 = vlaneseq
      %v398 = vshrl.u32 %v397, 7
      %v399 = vsub.s32 %v396, %v398
      %v400 = vrot.slane %v378, %v399
      %v402 = vunpack.c.l.s4 1966171168
      %v403 = vunpack.c.0.s8 %v402
      %v404 = vlaneseq
      %v405 = vshrl.u32 %v404, 7
      %v406 = vsub.s32 %v403, %v405
      %v407 = vrot.slane %v379, %v406
      %v408 = vcombine.high %v386, %v386
      %v409 = vcombine.high %v393, %v393
      %v410 = vcombine.high %v400, %v400
      %v411 = vcombine.high %v407, %v407
      %v412 = vlaneseq
      %v413 = vshrl.u32 %v412, 7
      %v414 = vsub.s32 0, %v413
      %v415 = vrot.slane %v337, %v414
      %v416 = vlaneseq
      %v417 = vshrl.u32 %v416, 7
      %v418 = vsub.s32 0, %v417
      %v419 = vrot.slane %v351, %v418
      %v420 = vlaneseq
      %v421 = vshrl.u32 %v420, 7
      %v422 = vsub.s32 0, %v421
      %v423 = vrot.slane %v359, %v422
      %v424 = vlaneseq
      %v425 = vshrl.u32 %v424, 7
      %v426 = vsub.s32 0, %v425
      %v427 = vrot.slane %v361, %v426
      %v428 = vlaneseq
      %v429 = vshrl.u32 %v428, 7
      %v430 = vsub.s32 0, %v429
      %v431 = vrot.slane %v344, %v430
      %v432 = vlaneseq
      %v433 = vshrl.u32 %v432, 7
      %v434 = vsub.s32 0, %v433
      %v435 = vrot.slane %v358, %v434
      %v436 = vlaneseq
      %v437 = vshrl.u32 %v436, 7
      %v438 = vsub.s32 0, %v437
      %v439 = vrot.slane %v360, %v438
      %v440 = vlaneseq
      %v441 = vshrl.u32 %v440, 7
      %v442 = vsub.s32 0, %v441
      %v443 = vrot.slane %v362, %v442
      %v444 = vlaneseq
      %v445 = vshrl.u32 %v444, 7
      %v446 = vsub.s32 0, %v445
      %v447 = vrot.slane %v386, %v446
      %v448 = vlaneseq
      %v449 = vshrl.u32 %v448, 7
      %v450 = vsub.s32 0, %v449
      %v451 = vrot.slane %v400, %v450
      %v452 = vlaneseq
      %v453 = vshrl.u32 %v452, 7
      %v454 = vsub.s32 0, %v453
      %v455 = vrot.slane %v408, %v454
      %v456 = vlaneseq
      %v457 = vshrl.u32 %v456, 7
      %v458 = vsub.s32 0, %v457
      %v459 = vrot.slane %v410, %v458
      %v460 = vlaneseq
      %v461 = vshrl.u32 %v460, 7
      %v462 = vsub.s32 0, %v461
      %v463 = vrot.slane %v393, %v462
      %v464 = vlaneseq
      %v465 = vshrl.u32 %v464, 7
      %v466 = vsub.s32 0, %v465
      %v467 = vrot.slane %v407, %v466
      %v468 = vlaneseq
      %v469 = vshrl.u32 %v468, 7
      %v470 = vsub.s32 0, %v469
      %v471 = vrot.slane %v409, %v470
      %v472 = vlaneseq
      %v473 = vshrl.u32 %v472, 7
      %v474 = vsub.s32 0, %v473
      %v475 = vrot.slane %v411, %v474
      %v492 = vadd.f32 %v415, %v308
      %v493 = vadd.f32 %v415, %v309
      %v494 = vadd.f32 %v415, %v310
      %v495 = vadd.f32 %v415, %v311
      %v496 = vadd.f32 %v419, %v308
      %v497 = vadd.f32 %v419, %v309
      %v498 = vadd.f32 %v419, %v310
      %v499 = vadd.f32 %v419, %v311
      %v500 = vadd.f32 %v423, %v308
      %v501 = vadd.f32 %v423, %v309
      %v502 = vadd.f32 %v423, %v310
      %v503 = vadd.f32 %v423, %v311
      %v504 = vadd.f32 %v427, %v308
      %v505 = vadd.f32 %v427, %v309
      %v506 = vadd.f32 %v427, %v310
      %v507 = vadd.f32 %v427, %v311
      %v508 = vadd.f32 %v431, %v308
      %v509 = vadd.f32 %v431, %v309
      %v510 = vadd.f32 %v431, %v310
      %v511 = vadd.f32 %v431, %v311
      %v512 = vadd.f32 %v435, %v308
      %v513 = vadd.f32 %v435, %v309
      %v514 = vadd.f32 %v435, %v310
      %v515 = vadd.f32 %v435, %v311
      %v516 = vadd.f32 %v439, %v308
      %v517 = vadd.f32 %v439, %v309
      %v518 = vadd.f32 %v439, %v310
      %v519 = vadd.f32 %v439, %v311
      %v520 = vadd.f32 %v443, %v308
      %v521 = vadd.f32 %v443, %v309
      %v522 = vadd.f32 %v443, %v310
      %v523 = vadd.f32 %v443, %v311
      %v524 = vadd.f32 %v447, %v308
      %v525 = vadd.f32 %v447, %v309
      %v526 = vadd.f32 %v447, %v310
      %v527 = vadd.f32 %v447, %v311
      %v528 = vadd.f32 %v451, %v308
      %v529 = vadd.f32 %v451, %v309
      %v530 = vadd.f32 %v451, %v310
      %v531 = vadd.f32 %v451, %v311
      %v532 = vadd.f32 %v455, %v308
      %v533 = vadd.f32 %v455, %v309
      %v534 = vadd.f32 %v455, %v310
      %v535 = vadd.f32 %v455, %v311
      %v536 = vadd.f32 %v459, %v308
      %v537 = vadd.f32 %v459, %v309
      %v538 = vadd.f32 %v459, %v310
      %v539 = vadd.f32 %v459, %v311
      %v540 = vadd.f32 %v463, %v308
      %v541 = vadd.f32 %v463, %v309
      %v542 = vadd.f32 %v463, %v310
      %v543 = vadd.f32 %v463, %v311
      %v544 = vadd.f32 %v467, %v308
      %v545 = vadd.f32 %v467, %v309
      %v546 = vadd.f32 %v467, %v310
      %v547 = vadd.f32 %v467, %v311
      %v548 = vadd.f32 %v471, %v308
      %v549 = vadd.f32 %v471, %v309
      %v550 = vadd.f32 %v471, %v310
      %v551 = vadd.f32 %v471, %v311
      %v552 = vadd.f32 %v475, %v308
      %v553 = vadd.f32 %v475, %v309
      %v554 = vadd.f32 %v475, %v310
      %v555 = vadd.f32 %v475, %v311
      %vm556 = vcmp.gt.f32.partialorder %v492, 0.0
      %vm557 = vcmp.gt.f32.partialorder %v493, 0.0
      %vm558 = vcmp.gt.f32.partialorder %v494, 0.0
      %vm559 = vcmp.gt.f32.partialorder %v495, 0.0
      %vm560 = vcmp.gt.f32.partialorder %v496, 0.0
      %vm561 = vcmp.gt.f32.partialorder %v497, 0.0
      %vm562 = vcmp.gt.f32.partialorder %v498, 0.0
      %vm563 = vcmp.gt.f32.partialorder %v499, 0.0
      %vm564 = vcmp.gt.f32.partialorder %v500, 0.0
      %vm565 = vcmp.gt.f32.partialorder %v501, 0.0
      %vm566 = vcmp.gt.f32.partialorder %v502, 0.0
      %vm567 = vcmp.gt.f32.partialorder %v503, 0.0
      %vm568 = vcmp.gt.f32.partialorder %v504, 0.0
      %vm569 = vcmp.gt.f32.partialorder %v505, 0.0
      %vm570 = vcmp.gt.f32.partialorder %v506, 0.0
      %vm571 = vcmp.gt.f32.partialorder %v507, 0.0
      %vm572 = vcmp.gt.f32.partialorder %v508, 0.0
      %vm573 = vcmp.gt.f32.partialorder %v509, 0.0
      %vm574 = vcmp.gt.f32.partialorder %v510, 0.0
      %vm575 = vcmp.gt.f32.partialorder %v511, 0.0
      %vm576 = vcmp.gt.f32.partialorder %v512, 0.0
      %vm577 = vcmp.gt.f32.partialorder %v513, 0.0
      %vm578 = vcmp.gt.f32.partialorder %v514, 0.0
      %vm579 = vcmp.gt.f32.partialorder %v515, 0.0
      %vm580 = vcmp.gt.f32.partialorder %v516, 0.0
      %vm581 = vcmp.gt.f32.partialorder %v517, 0.0
      %vm582 = vcmp.gt.f32.partialorder %v518, 0.0
      %vm583 = vcmp.gt.f32.partialorder %v519, 0.0
      %vm584 = vcmp.gt.f32.partialorder %v520, 0.0
      %vm585 = vcmp.gt.f32.partialorder %v521, 0.0
      %vm586 = vcmp.gt.f32.partialorder %v522, 0.0
      %vm587 = vcmp.gt.f32.partialorder %v523, 0.0
      %vm588 = vcmp.gt.f32.partialorder %v524, 0.0
      %vm589 = vcmp.gt.f32.partialorder %v525, 0.0
      %vm590 = vcmp.gt.f32.partialorder %v526, 0.0
      %vm591 = vcmp.gt.f32.partialorder %v527, 0.0
      %vm592 = vcmp.gt.f32.partialorder %v528, 0.0
      %vm593 = vcmp.gt.f32.partialorder %v529, 0.0
      %vm594 = vcmp.gt.f32.partialorder %v530, 0.0
      %vm595 = vcmp.gt.f32.partialorder %v531, 0.0
      %vm596 = vcmp.gt.f32.partialorder %v532, 0.0
      %vm597 = vcmp.gt.f32.partialorder %v533, 0.0
      %vm598 = vcmp.gt.f32.partialorder %v534, 0.0
      %vm599 = vcmp.gt.f32.partialorder %v535, 0.0
      %vm600 = vcmp.gt.f32.partialorder %v536, 0.0
      %vm601 = vcmp.gt.f32.partialorder %v537, 0.0
      %vm602 = vcmp.gt.f32.partialorder %v538, 0.0
      %vm603 = vcmp.gt.f32.partialorder %v539, 0.0
      %vm604 = vcmp.gt.f32.partialorder %v540, 0.0
      %vm605 = vcmp.gt.f32.partialorder %v541, 0.0
      %vm606 = vcmp.gt.f32.partialorder %v542, 0.0
      %vm607 = vcmp.gt.f32.partialorder %v543, 0.0
      %vm608 = vcmp.gt.f32.partialorder %v544, 0.0
      %vm609 = vcmp.gt.f32.partialorder %v545, 0.0
      %vm610 = vcmp.gt.f32.partialorder %v546, 0.0
      %vm611 = vcmp.gt.f32.partialorder %v547, 0.0
      %vm612 = vcmp.gt.f32.partialorder %v548, 0.0
      %vm613 = vcmp.gt.f32.partialorder %v549, 0.0
      %vm614 = vcmp.gt.f32.partialorder %v550, 0.0
      %vm615 = vcmp.gt.f32.partialorder %v551, 0.0
      %vm616 = vcmp.gt.f32.partialorder %v552, 0.0
      %vm617 = vcmp.gt.f32.partialorder %v553, 0.0
      %vm618 = vcmp.gt.f32.partialorder %v554, 0.0
      %vm619 = vcmp.gt.f32.partialorder %v555, 0.0
      %v620 = vmul.f32 %v492, 0.2
      %v621 = vmul.f32 %v493, 0.2
      %v622 = vmul.f32 %v494, 0.2
      %v623 = vmul.f32 %v495, 0.2
      %v624 = vmul.f32 %v496, 0.2
      %v625 = vmul.f32 %v497, 0.2
      %v626 = vmul.f32 %v498, 0.2
      %v627 = vmul.f32 %v499, 0.2
      %v628 = vmul.f32 %v500, 0.2
      %v629 = vmul.f32 %v501, 0.2
      %v630 = vmul.f32 %v502, 0.2
      %v631 = vmul.f32 %v503, 0.2
      %v632 = vmul.f32 %v504, 0.2
      %v633 = vmul.f32 %v505, 0.2
      %v634 = vmul.f32 %v506, 0.2
      %v635 = vmul.f32 %v507, 0.2
      %v636 = vmul.f32 %v508, 0.2
      %v637 = vmul.f32 %v509, 0.2
      %v638 = vmul.f32 %v510, 0.2
      %v639 = vmul.f32 %v511, 0.2
      %v640 = vmul.f32 %v512, 0.2
      %v641 = vmul.f32 %v513, 0.2
      %v642 = vmul.f32 %v514, 0.2
      %v643 = vmul.f32 %v515, 0.2
      %v644 = vmul.f32 %v516, 0.2
      %v645 = vmul.f32 %v517, 0.2
      %v646 = vmul.f32 %v518, 0.2
      %v647 = vmul.f32 %v519, 0.2
      %v648 = vmul.f32 %v520, 0.2
      %v649 = vmul.f32 %v521, 0.2
      %v650 = vmul.f32 %v522, 0.2
      %v651 = vmul.f32 %v523, 0.2
      %v652 = vmul.f32 %v524, 0.2
      %v653 = vmul.f32 %v525, 0.2
      %v654 = vmul.f32 %v526, 0.2
      %v655 = vmul.f32 %v527, 0.2
      %v656 = vmul.f32 %v528, 0.2
      %v657 = vmul.f32 %v529, 0.2
      %v658 = vmul.f32 %v530, 0.2
      %v659 = vmul.f32 %v531, 0.2
      %v660 = vmul.f32 %v532, 0.2
      %v661 = vmul.f32 %v533, 0.2
      %v662 = vmul.f32 %v534, 0.2
      %v663 = vmul.f32 %v535, 0.2
      %v664 = vmul.f32 %v536, 0.2
      %v665 = vmul.f32 %v537, 0.2
      %v666 = vmul.f32 %v538, 0.2
      %v667 = vmul.f32 %v539, 0.2
      %v668 = vmul.f32 %v540, 0.2
      %v669 = vmul.f32 %v541, 0.2
      %v670 = vmul.f32 %v542, 0.2
      %v671 = vmul.f32 %v543, 0.2
      %v672 = vmul.f32 %v544, 0.2
      %v673 = vmul.f32 %v545, 0.2
      %v674 = vmul.f32 %v546, 0.2
      %v675 = vmul.f32 %v547, 0.2
      %v676 = vmul.f32 %v548, 0.2
      %v677 = vmul.f32 %v549, 0.2
      %v678 = vmul.f32 %v550, 0.2
      %v679 = vmul.f32 %v551, 0.2
      %v680 = vmul.f32 %v552, 0.2
      %v681 = vmul.f32 %v553, 0.2
      %v682 = vmul.f32 %v554, 0.2
      %v683 = vmul.f32 %v555, 0.2
      %v684 = vsel %vm556, %v492, %v620
      %v685 = vsel %vm557, %v493, %v621
      %v686 = vsel %vm558, %v494, %v622
      %v687 = vsel %vm559, %v495, %v623
      %v688 = vsel %vm560, %v496, %v624
      %v689 = vsel %vm561, %v497, %v625
      %v690 = vsel %vm562, %v498, %v626
      %v691 = vsel %vm563, %v499, %v627
      %v692 = vsel %vm564, %v500, %v628
      %v693 = vsel %vm565, %v501, %v629
      %v694 = vsel %vm566, %v502, %v630
      %v695 = vsel %vm567, %v503, %v631
      %v696 = vsel %vm568, %v504, %v632
      %v697 = vsel %vm569, %v505, %v633
      %v698 = vsel %vm570, %v506, %v634
      %v699 = vsel %vm571, %v507, %v635
      %v700 = vsel %vm572, %v508, %v636
      %v701 = vsel %vm573, %v509, %v637
      %v702 = vsel %vm574, %v510, %v638
      %v703 = vsel %vm575, %v511, %v639
      %v704 = vsel %vm576, %v512, %v640
      %v705 = vsel %vm577, %v513, %v641
      %v706 = vsel %vm578, %v514, %v642
      %v707 = vsel %vm579, %v515, %v643
      %v708 = vsel %vm580, %v516, %v644
      %v709 = vsel %vm581, %v517, %v645
      %v710 = vsel %vm582, %v518, %v646
      %v711 = vsel %vm583, %v519, %v647
      %v712 = vsel %vm584, %v520, %v648
      %v713 = vsel %vm585, %v521, %v649
      %v714 = vsel %vm586, %v522, %v650
      %v715 = vsel %vm587, %v523, %v651
      %v716 = vsel %vm588, %v524, %v652
      %v717 = vsel %vm589, %v525, %v653
      %v718 = vsel %vm590, %v526, %v654
      %v719 = vsel %vm591, %v527, %v655
      %v720 = vsel %vm592, %v528, %v656
      %v721 = vsel %vm593, %v529, %v657
      %v722 = vsel %vm594, %v530, %v658
      %v723 = vsel %vm595, %v531, %v659
      %v724 = vsel %vm596, %v532, %v660
      %v725 = vsel %vm597, %v533, %v661
      %v726 = vsel %vm598, %v534, %v662
      %v727 = vsel %vm599, %v535, %v663
      %v728 = vsel %vm600, %v536, %v664
      %v729 = vsel %vm601, %v537, %v665
      %v730 = vsel %vm602, %v538, %v666
      %v731 = vsel %vm603, %v539, %v667
      %v732 = vsel %vm604, %v540, %v668
      %v733 = vsel %vm605, %v541, %v669
      %v734 = vsel %vm606, %v542, %v670
      %v735 = vsel %vm607, %v543, %v671
      %v736 = vsel %vm608, %v544, %v672
      %v737 = vsel %vm609, %v545, %v673
      %v738 = vsel %vm610, %v546, %v674
      %v739 = vsel %vm611, %v547, %v675
      %v740 = vsel %vm612, %v548, %v676
      %v741 = vsel %vm613, %v549, %v677
      %v742 = vsel %vm614, %v550, %v678
      %v743 = vsel %vm615, %v551, %v679
      %v744 = vsel %vm616, %v552, %v680
      %v745 = vsel %vm617, %v553, %v681
      %v746 = vsel %vm618, %v554, %v682
      %v747 = vsel %vm619, %v555, %v683
      %v748 = vld [vmem:[%s3] sm:$0x1]
      %v750 = vlaneseq
      %v751 = vshrl.u32 %v750, 7
      %v752 = vsub.s32 0, %v751
      %v753 = vrot.slane %v748, %v752
      %v755 = vmul.f32 %v684, %v753
      %v756 = vmul.f32 %v685, %v753
      %v757 = vmul.f32 %v686, %v753
      %v758 = vmul.f32 %v687, %v753
      %v759 = vmul.f32 %v688, %v753
      %v760 = vmul.f32 %v689, %v753
      %v761 = vmul.f32 %v690, %v753
      %v762 = vmul.f32 %v691, %v753
      %v763 = vmul.f32 %v692, %v753
      %v764 = vmul.f32 %v693, %v753
      %v765 = vmul.f32 %v694, %v753
      %v766 = vmul.f32 %v695, %v753
      %v767 = vmul.f32 %v696, %v753
      %v768 = vmul.f32 %v697, %v753
      %v769 = vmul.f32 %v698, %v753
      %v770 = vmul.f32 %v699, %v753
      %v771 = vmul.f32 %v700, %v753
      %v772 = vmul.f32 %v701, %v753
      %v773 = vmul.f32 %v702, %v753
      %v774 = vmul.f32 %v703, %v753
      %v775 = vmul.f32 %v704, %v753
      %v776 = vmul.f32 %v705, %v753
      %v777 = vmul.f32 %v706, %v753
      %v778 = vmul.f32 %v707, %v753
      %v779 = vmul.f32 %v708, %v753
      %v780 = vmul.f32 %v709, %v753
      %v781 = vmul.f32 %v710, %v753
      %v782 = vmul.f32 %v711, %v753
      %v783 = vmul.f32 %v712, %v753
      %v784 = vmul.f32 %v713, %v753
      %v785 = vmul.f32 %v714, %v753
      %v786 = vmul.f32 %v715, %v753
      %v787 = vmul.f32 %v716, %v753
      %v788 = vmul.f32 %v717, %v753
      %v789 = vmul.f32 %v718, %v753
      %v790 = vmul.f32 %v719, %v753
      %v791 = vmul.f32 %v720, %v753
      %v792 = vmul.f32 %v721, %v753
      %v793 = vmul.f32 %v722, %v753
      %v794 = vmul.f32 %v723, %v753
      %v795 = vmul.f32 %v724, %v753
      %v796 = vmul.f32 %v725, %v753
      %v797 = vmul.f32 %v726, %v753
      %v798 = vmul.f32 %v727, %v753
      %v799 = vmul.f32 %v728, %v753
      %v800 = vmul.f32 %v729, %v753
      %v801 = vmul.f32 %v730, %v753
      %v802 = vmul.f32 %v731, %v753
      %v803 = vmul.f32 %v732, %v753
      %v804 = vmul.f32 %v733, %v753
      %v805 = vmul.f32 %v734, %v753
      %v806 = vmul.f32 %v735, %v753
      %v807 = vmul.f32 %v736, %v753
      %v808 = vmul.f32 %v737, %v753
      %v809 = vmul.f32 %v738, %v753
      %v810 = vmul.f32 %v739, %v753
      %v811 = vmul.f32 %v740, %v753
      %v812 = vmul.f32 %v741, %v753
      %v813 = vmul.f32 %v742, %v753
      %v814 = vmul.f32 %v743, %v753
      %v815 = vmul.f32 %v744, %v753
      %v816 = vmul.f32 %v745, %v753
      %v817 = vmul.f32 %v746, %v753
      %v818 = vmul.f32 %v747, %v753
      %819 = vadd.xlane.f32.xlu0 %v755
      %v820 = vpop.xlane.xlu0 %819
      %821 = vadd.xlane.f32.xlu0 %v756
      %v822 = vpop.xlane.xlu0 %821
      %823 = vadd.xlane.f32.xlu0 %v757
      %v824 = vpop.xlane.xlu0 %823
      %825 = vadd.xlane.f32.xlu0 %v758
      %v826 = vpop.xlane.xlu0 %825
      %827 = vadd.xlane.f32.xlu0 %v759
      %v828 = vpop.xlane.xlu0 %827
      %829 = vadd.xlane.f32.xlu0 %v760
      %v830 = vpop.xlane.xlu0 %829
      %831 = vadd.xlane.f32.xlu0 %v761
      %v832 = vpop.xlane.xlu0 %831
      %833 = vadd.xlane.f32.xlu0 %v762
      %v834 = vpop.xlane.xlu0 %833
      %835 = vadd.xlane.f32.xlu0 %v763
      %v836 = vpop.xlane.xlu0 %835
      %837 = vadd.xlane.f32.xlu0 %v764
      %v838 = vpop.xlane.xlu0 %837
      %839 = vadd.xlane.f32.xlu0 %v765
      %v840 = vpop.xlane.xlu0 %839
      %841 = vadd.xlane.f32.xlu0 %v766
      %v842 = vpop.xlane.xlu0 %841
      %843 = vadd.xlane.f32.xlu0 %v767
      %v844 = vpop.xlane.xlu0 %843
      %845 = vadd.xlane.f32.xlu0 %v768
      %v846 = vpop.xlane.xlu0 %845
      %847 = vadd.xlane.f32.xlu0 %v769
      %v848 = vpop.xlane.xlu0 %847
      %849 = vadd.xlane.f32.xlu0 %v770
      %v850 = vpop.xlane.xlu0 %849
      %851 = vadd.xlane.f32.xlu0 %v771
      %v852 = vpop.xlane.xlu0 %851
      %853 = vadd.xlane.f32.xlu0 %v772
      %v854 = vpop.xlane.xlu0 %853
      %855 = vadd.xlane.f32.xlu0 %v773
      %v856 = vpop.xlane.xlu0 %855
      %857 = vadd.xlane.f32.xlu0 %v774
      %v858 = vpop.xlane.xlu0 %857
      %859 = vadd.xlane.f32.xlu0 %v775
      %v860 = vpop.xlane.xlu0 %859
      %861 = vadd.xlane.f32.xlu0 %v776
      %v862 = vpop.xlane.xlu0 %861
      %863 = vadd.xlane.f32.xlu0 %v777
      %v864 = vpop.xlane.xlu0 %863
      %865 = vadd.xlane.f32.xlu0 %v778
      %v866 = vpop.xlane.xlu0 %865
      %867 = vadd.xlane.f32.xlu0 %v779
      %v868 = vpop.xlane.xlu0 %867
      %869 = vadd.xlane.f32.xlu0 %v780
      %v870 = vpop.xlane.xlu0 %869
      %871 = vadd.xlane.f32.xlu0 %v781
      %v872 = vpop.xlane.xlu0 %871
      %873 = vadd.xlane.f32.xlu0 %v782
      %v874 = vpop.xlane.xlu0 %873
      %875 = vadd.xlane.f32.xlu0 %v783
      %v876 = vpop.xlane.xlu0 %875
      %877 = vadd.xlane.f32.xlu0 %v784
      %v878 = vpop.xlane.xlu0 %877
      %879 = vadd.xlane.f32.xlu0 %v785
      %v880 = vpop.xlane.xlu0 %879
      %881 = vadd.xlane.f32.xlu0 %v786
      %v882 = vpop.xlane.xlu0 %881
      %883 = vadd.xlane.f32.xlu0 %v787
      %v884 = vpop.xlane.xlu0 %883
      %885 = vadd.xlane.f32.xlu0 %v788
      %v886 = vpop.xlane.xlu0 %885
      %887 = vadd.xlane.f32.xlu0 %v789
      %v888 = vpop.xlane.xlu0 %887
      %889 = vadd.xlane.f32.xlu0 %v790
      %v890 = vpop.xlane.xlu0 %889
      %891 = vadd.xlane.f32.xlu0 %v791
      %v892 = vpop.xlane.xlu0 %891
      %893 = vadd.xlane.f32.xlu0 %v792
      %v894 = vpop.xlane.xlu0 %893
      %895 = vadd.xlane.f32.xlu0 %v793
      %v896 = vpop.xlane.xlu0 %895
      %897 = vadd.xlane.f32.xlu0 %v794
      %v898 = vpop.xlane.xlu0 %897
      %899 = vadd.xlane.f32.xlu0 %v795
      %v900 = vpop.xlane.xlu0 %899
      %901 = vadd.xlane.f32.xlu0 %v796
      %v902 = vpop.xlane.xlu0 %901
      %903 = vadd.xlane.f32.xlu0 %v797
      %v904 = vpop.xlane.xlu0 %903
      %905 = vadd.xlane.f32.xlu0 %v798
      %v906 = vpop.xlane.xlu0 %905
      %907 = vadd.xlane.f32.xlu0 %v799
      %v908 = vpop.xlane.xlu0 %907
      %909 = vadd.xlane.f32.xlu0 %v800
      %v910 = vpop.xlane.xlu0 %909
      %911 = vadd.xlane.f32.xlu0 %v801
      %v912 = vpop.xlane.xlu0 %911
      %913 = vadd.xlane.f32.xlu0 %v802
      %v914 = vpop.xlane.xlu0 %913
      %915 = vadd.xlane.f32.xlu0 %v803
      %v916 = vpop.xlane.xlu0 %915
      %917 = vadd.xlane.f32.xlu0 %v804
      %v918 = vpop.xlane.xlu0 %917
      %919 = vadd.xlane.f32.xlu0 %v805
      %v920 = vpop.xlane.xlu0 %919
      %921 = vadd.xlane.f32.xlu0 %v806
      %v922 = vpop.xlane.xlu0 %921
      %923 = vadd.xlane.f32.xlu0 %v807
      %v924 = vpop.xlane.xlu0 %923
      %925 = vadd.xlane.f32.xlu0 %v808
      %v926 = vpop.xlane.xlu0 %925
      %927 = vadd.xlane.f32.xlu0 %v809
      %v928 = vpop.xlane.xlu0 %927
      %929 = vadd.xlane.f32.xlu0 %v810
      %v930 = vpop.xlane.xlu0 %929
      %931 = vadd.xlane.f32.xlu0 %v811
      %v932 = vpop.xlane.xlu0 %931
      %933 = vadd.xlane.f32.xlu0 %v812
      %v934 = vpop.xlane.xlu0 %933
      %935 = vadd.xlane.f32.xlu0 %v813
      %v936 = vpop.xlane.xlu0 %935
      %937 = vadd.xlane.f32.xlu0 %v814
      %v938 = vpop.xlane.xlu0 %937
      %939 = vadd.xlane.f32.xlu0 %v815
      %v940 = vpop.xlane.xlu0 %939
      %941 = vadd.xlane.f32.xlu0 %v816
      %v942 = vpop.xlane.xlu0 %941
      %943 = vadd.xlane.f32.xlu0 %v817
      %v944 = vpop.xlane.xlu0 %943
      %945 = vadd.xlane.f32.xlu0 %v818
      %v946 = vpop.xlane.xlu0 %945
      %v947 = vld [vmem:[%s279] sm:$0xff]
      %v948 = vld [vmem:[%s279 + $0x8] sm:$0xff]
      %v951 = vlaneseq
      %v952 = vshrl.u32 %v951, 7
      %v953 = vsub.s32 0, %v952
      %v954 = vrot.slane %v947, %v953
      %956 = vbcast.lane.b32.xlu0 %v954, 256
      %v957 = vpop.permute.xlu0 %956
      %s959 = sor.u32 256, 8
      %960 = vbcast.lane.b32.xlu0 %v954, %s959
      %v961 = vpop.permute.xlu0 %960
      %s963 = sor.u32 256, 16
      %964 = vbcast.lane.b32.xlu0 %v954, %s963
      %v965 = vpop.permute.xlu0 %964
      %s967 = sor.u32 256, 24
      %968 = vbcast.lane.b32.xlu0 %v954, %s967
      %v969 = vpop.permute.xlu0 %968
      %v970 = vlaneseq
      %v971 = vshrl.u32 %v970, 7
      %v972 = vsub.s32 1, %v971
      %v973 = vrot.slane %v947, %v972
      %975 = vbcast.lane.b32.xlu0 %v973, 256
      %v976 = vpop.permute.xlu0 %975
      %s978 = sor.u32 256, 8
      %979 = vbcast.lane.b32.xlu0 %v973, %s978
      %v980 = vpop.permute.xlu0 %979
      %s982 = sor.u32 256, 16
      %983 = vbcast.lane.b32.xlu0 %v973, %s982
      %v984 = vpop.permute.xlu0 %983
      %s986 = sor.u32 256, 24
      %987 = vbcast.lane.b32.xlu0 %v973, %s986
      %v988 = vpop.permute.xlu0 %987
      %v989 = vlaneseq
      %v990 = vshrl.u32 %v989, 7
      %v991 = vsub.s32 2, %v990
      %v992 = vrot.slane %v947, %v991
      %994 = vbcast.lane.b32.xlu0 %v992, 256
      %v995 = vpop.permute.xlu0 %994
      %s997 = sor.u32 256, 8
      %998 = vbcast.lane.b32.xlu0 %v992, %s997
      %v999 = vpop.permute.xlu0 %998
      %s1001 = sor.u32 256, 16
      %1002 = vbcast.lane.b32.xlu0 %v992, %s1001
      %v1003 = vpop.permute.xlu0 %1002
      %s1005 = sor.u32 256, 24
      %1006 = vbcast.lane.b32.xlu0 %v992, %s1005
      %v1007 = vpop.permute.xlu0 %1006
      %v1008 = vlaneseq
      %v1009 = vshrl.u32 %v1008, 7
      %v1010 = vsub.s32 3, %v1009
      %v1011 = vrot.slane %v947, %v1010
      %1013 = vbcast.lane.b32.xlu0 %v1011, 256
      %v1014 = vpop.permute.xlu0 %1013
      %s1016 = sor.u32 256, 8
      %1017 = vbcast.lane.b32.xlu0 %v1011, %s1016
      %v1018 = vpop.permute.xlu0 %1017
      %s1020 = sor.u32 256, 16
      %1021 = vbcast.lane.b32.xlu0 %v1011, %s1020
      %v1022 = vpop.permute.xlu0 %1021
      %s1024 = sor.u32 256, 24
      %1025 = vbcast.lane.b32.xlu0 %v1011, %s1024
      %v1026 = vpop.permute.xlu0 %1025
      %v1027 = vlaneseq
      %v1028 = vshrl.u32 %v1027, 7
      %v1029 = vsub.s32 4, %v1028
      %v1030 = vrot.slane %v947, %v1029
      %1032 = vbcast.lane.b32.xlu0 %v1030, 256
      %v1033 = vpop.permute.xlu0 %1032
      %s1035 = sor.u32 256, 8
      %1036 = vbcast.lane.b32.xlu0 %v1030, %s1035
      %v1037 = vpop.permute.xlu0 %1036
      %s1039 = sor.u32 256, 16
      %1040 = vbcast.lane.b32.xlu0 %v1030, %s1039
      %v1041 = vpop.permute.xlu0 %1040
      %s1043 = sor.u32 256, 24
      %1044 = vbcast.lane.b32.xlu0 %v1030, %s1043
      %v1045 = vpop.permute.xlu0 %1044
      %v1046 = vlaneseq
      %v1047 = vshrl.u32 %v1046, 7
      %v1048 = vsub.s32 5, %v1047
      %v1049 = vrot.slane %v947, %v1048
      %1051 = vbcast.lane.b32.xlu0 %v1049, 256
      %v1052 = vpop.permute.xlu0 %1051
      %s1054 = sor.u32 256, 8
      %1055 = vbcast.lane.b32.xlu0 %v1049, %s1054
      %v1056 = vpop.permute.xlu0 %1055
      %s1058 = sor.u32 256, 16
      %1059 = vbcast.lane.b32.xlu0 %v1049, %s1058
      %v1060 = vpop.permute.xlu0 %1059
      %s1062 = sor.u32 256, 24
      %1063 = vbcast.lane.b32.xlu0 %v1049, %s1062
      %v1064 = vpop.permute.xlu0 %1063
      %v1065 = vlaneseq
      %v1066 = vshrl.u32 %v1065, 7
      %v1067 = vsub.s32 6, %v1066
      %v1068 = vrot.slane %v947, %v1067
      %1070 = vbcast.lane.b32.xlu0 %v1068, 256
      %v1071 = vpop.permute.xlu0 %1070
      %s1073 = sor.u32 256, 8
      %1074 = vbcast.lane.b32.xlu0 %v1068, %s1073
      %v1075 = vpop.permute.xlu0 %1074
      %s1077 = sor.u32 256, 16
      %1078 = vbcast.lane.b32.xlu0 %v1068, %s1077
      %v1079 = vpop.permute.xlu0 %1078
      %s1081 = sor.u32 256, 24
      %1082 = vbcast.lane.b32.xlu0 %v1068, %s1081
      %v1083 = vpop.permute.xlu0 %1082
      %v1084 = vlaneseq
      %v1085 = vshrl.u32 %v1084, 7
      %v1086 = vsub.s32 7, %v1085
      %v1087 = vrot.slane %v947, %v1086
      %1089 = vbcast.lane.b32.xlu0 %v1087, 256
      %v1090 = vpop.permute.xlu0 %1089
      %s1092 = sor.u32 256, 8
      %1093 = vbcast.lane.b32.xlu0 %v1087, %s1092
      %v1094 = vpop.permute.xlu0 %1093
      %s1096 = sor.u32 256, 16
      %1097 = vbcast.lane.b32.xlu0 %v1087, %s1096
      %v1098 = vpop.permute.xlu0 %1097
      %s1100 = sor.u32 256, 24
      %1101 = vbcast.lane.b32.xlu0 %v1087, %s1100
      %v1102 = vpop.permute.xlu0 %1101
      %v1103 = vlaneseq
      %v1104 = vshrl.u32 %v1103, 7
      %v1105 = vsub.s32 0, %v1104
      %v1106 = vrot.slane %v948, %v1105
      %1108 = vbcast.lane.b32.xlu0 %v1106, 256
      %v1109 = vpop.permute.xlu0 %1108
      %s1111 = sor.u32 256, 8
      %1112 = vbcast.lane.b32.xlu0 %v1106, %s1111
      %v1113 = vpop.permute.xlu0 %1112
      %s1115 = sor.u32 256, 16
      %1116 = vbcast.lane.b32.xlu0 %v1106, %s1115
      %v1117 = vpop.permute.xlu0 %1116
      %s1119 = sor.u32 256, 24
      %1120 = vbcast.lane.b32.xlu0 %v1106, %s1119
      %v1121 = vpop.permute.xlu0 %1120
      %v1122 = vlaneseq
      %v1123 = vshrl.u32 %v1122, 7
      %v1124 = vsub.s32 1, %v1123
      %v1125 = vrot.slane %v948, %v1124
      %1127 = vbcast.lane.b32.xlu0 %v1125, 256
      %v1128 = vpop.permute.xlu0 %1127
      %s1130 = sor.u32 256, 8
      %1131 = vbcast.lane.b32.xlu0 %v1125, %s1130
      %v1132 = vpop.permute.xlu0 %1131
      %s1134 = sor.u32 256, 16
      %1135 = vbcast.lane.b32.xlu0 %v1125, %s1134
      %v1136 = vpop.permute.xlu0 %1135
      %s1138 = sor.u32 256, 24
      %1139 = vbcast.lane.b32.xlu0 %v1125, %s1138
      %v1140 = vpop.permute.xlu0 %1139
      %v1141 = vlaneseq
      %v1142 = vshrl.u32 %v1141, 7
      %v1143 = vsub.s32 2, %v1142
      %v1144 = vrot.slane %v948, %v1143
      %1146 = vbcast.lane.b32.xlu0 %v1144, 256
      %v1147 = vpop.permute.xlu0 %1146
      %s1149 = sor.u32 256, 8
      %1150 = vbcast.lane.b32.xlu0 %v1144, %s1149
      %v1151 = vpop.permute.xlu0 %1150
      %s1153 = sor.u32 256, 16
      %1154 = vbcast.lane.b32.xlu0 %v1144, %s1153
      %v1155 = vpop.permute.xlu0 %1154
      %s1157 = sor.u32 256, 24
      %1158 = vbcast.lane.b32.xlu0 %v1144, %s1157
      %v1159 = vpop.permute.xlu0 %1158
      %v1160 = vlaneseq
      %v1161 = vshrl.u32 %v1160, 7
      %v1162 = vsub.s32 3, %v1161
      %v1163 = vrot.slane %v948, %v1162
      %1165 = vbcast.lane.b32.xlu0 %v1163, 256
      %v1166 = vpop.permute.xlu0 %1165
      %s1168 = sor.u32 256, 8
      %1169 = vbcast.lane.b32.xlu0 %v1163, %s1168
      %v1170 = vpop.permute.xlu0 %1169
      %s1172 = sor.u32 256, 16
      %1173 = vbcast.lane.b32.xlu0 %v1163, %s1172
      %v1174 = vpop.permute.xlu0 %1173
      %s1176 = sor.u32 256, 24
      %1177 = vbcast.lane.b32.xlu0 %v1163, %s1176
      %v1178 = vpop.permute.xlu0 %1177
      %v1179 = vlaneseq
      %v1180 = vshrl.u32 %v1179, 7
      %v1181 = vsub.s32 4, %v1180
      %v1182 = vrot.slane %v948, %v1181
      %1184 = vbcast.lane.b32.xlu0 %v1182, 256
      %v1185 = vpop.permute.xlu0 %1184
      %s1187 = sor.u32 256, 8
      %1188 = vbcast.lane.b32.xlu0 %v1182, %s1187
      %v1189 = vpop.permute.xlu0 %1188
      %s1191 = sor.u32 256, 16
      %1192 = vbcast.lane.b32.xlu0 %v1182, %s1191
      %v1193 = vpop.permute.xlu0 %1192
      %s1195 = sor.u32 256, 24
      %1196 = vbcast.lane.b32.xlu0 %v1182, %s1195
      %v1197 = vpop.permute.xlu0 %1196
      %v1198 = vlaneseq
      %v1199 = vshrl.u32 %v1198, 7
      %v1200 = vsub.s32 5, %v1199
      %v1201 = vrot.slane %v948, %v1200
      %1203 = vbcast.lane.b32.xlu0 %v1201, 256
      %v1204 = vpop.permute.xlu0 %1203
      %s1206 = sor.u32 256, 8
      %1207 = vbcast.lane.b32.xlu0 %v1201, %s1206
      %v1208 = vpop.permute.xlu0 %1207
      %s1210 = sor.u32 256, 16
      %1211 = vbcast.lane.b32.xlu0 %v1201, %s1210
      %v1212 = vpop.permute.xlu0 %1211
      %s1214 = sor.u32 256, 24
      %1215 = vbcast.lane.b32.xlu0 %v1201, %s1214
      %v1216 = vpop.permute.xlu0 %1215
      %v1217 = vlaneseq
      %v1218 = vshrl.u32 %v1217, 7
      %v1219 = vsub.s32 6, %v1218
      %v1220 = vrot.slane %v948, %v1219
      %1222 = vbcast.lane.b32.xlu0 %v1220, 256
      %v1223 = vpop.permute.xlu0 %1222
      %s1225 = sor.u32 256, 8
      %1226 = vbcast.lane.b32.xlu0 %v1220, %s1225
      %v1227 = vpop.permute.xlu0 %1226
      %s1229 = sor.u32 256, 16
      %1230 = vbcast.lane.b32.xlu0 %v1220, %s1229
      %v1231 = vpop.permute.xlu0 %1230
      %s1233 = sor.u32 256, 24
      %1234 = vbcast.lane.b32.xlu0 %v1220, %s1233
      %v1235 = vpop.permute.xlu0 %1234
      %v1236 = vlaneseq
      %v1237 = vshrl.u32 %v1236, 7
      %v1238 = vsub.s32 7, %v1237
      %v1239 = vrot.slane %v948, %v1238
      %1241 = vbcast.lane.b32.xlu0 %v1239, 256
      %v1242 = vpop.permute.xlu0 %1241
      %s1244 = sor.u32 256, 8
      %1245 = vbcast.lane.b32.xlu0 %v1239, %s1244
      %v1246 = vpop.permute.xlu0 %1245
      %s1248 = sor.u32 256, 16
      %1249 = vbcast.lane.b32.xlu0 %v1239, %s1248
      %v1250 = vpop.permute.xlu0 %1249
      %s1252 = sor.u32 256, 24
      %1253 = vbcast.lane.b32.xlu0 %v1239, %s1252
      %v1254 = vpop.permute.xlu0 %1253
      %v1319 = vadd.f32 %v820, %v957
      %v1320 = vadd.f32 %v822, %v961
      %v1321 = vadd.f32 %v824, %v965
      %v1322 = vadd.f32 %v826, %v969
      %v1323 = vadd.f32 %v828, %v976
      %v1324 = vadd.f32 %v830, %v980
      %v1325 = vadd.f32 %v832, %v984
      %v1326 = vadd.f32 %v834, %v988
      %v1327 = vadd.f32 %v836, %v995
      %v1328 = vadd.f32 %v838, %v999
      %v1329 = vadd.f32 %v840, %v1003
      %v1330 = vadd.f32 %v842, %v1007
      %v1331 = vadd.f32 %v844, %v1014
      %v1332 = vadd.f32 %v846, %v1018
      %v1333 = vadd.f32 %v848, %v1022
      %v1334 = vadd.f32 %v850, %v1026
      %v1335 = vadd.f32 %v852, %v1033
      %v1336 = vadd.f32 %v854, %v1037
      %v1337 = vadd.f32 %v856, %v1041
      %v1338 = vadd.f32 %v858, %v1045
      %v1339 = vadd.f32 %v860, %v1052
      %v1340 = vadd.f32 %v862, %v1056
      %v1341 = vadd.f32 %v864, %v1060
      %v1342 = vadd.f32 %v866, %v1064
      %v1343 = vadd.f32 %v868, %v1071
      %v1344 = vadd.f32 %v870, %v1075
      %v1345 = vadd.f32 %v872, %v1079
      %v1346 = vadd.f32 %v874, %v1083
      %v1347 = vadd.f32 %v876, %v1090
      %v1348 = vadd.f32 %v878, %v1094
      %v1349 = vadd.f32 %v880, %v1098
      %v1350 = vadd.f32 %v882, %v1102
      %v1351 = vadd.f32 %v884, %v1109
      %v1352 = vadd.f32 %v886, %v1113
      %v1353 = vadd.f32 %v888, %v1117
      %v1354 = vadd.f32 %v890, %v1121
      %v1355 = vadd.f32 %v892, %v1128
      %v1356 = vadd.f32 %v894, %v1132
      %v1357 = vadd.f32 %v896, %v1136
      %v1358 = vadd.f32 %v898, %v1140
      %v1359 = vadd.f32 %v900, %v1147
      %v1360 = vadd.f32 %v902, %v1151
      %v1361 = vadd.f32 %v904, %v1155
      %v1362 = vadd.f32 %v906, %v1159
      %v1363 = vadd.f32 %v908, %v1166
      %v1364 = vadd.f32 %v910, %v1170
      %v1365 = vadd.f32 %v912, %v1174
      %v1366 = vadd.f32 %v914, %v1178
      %v1367 = vadd.f32 %v916, %v1185
      %v1368 = vadd.f32 %v918, %v1189
      %v1369 = vadd.f32 %v920, %v1193
      %v1370 = vadd.f32 %v922, %v1197
      %v1371 = vadd.f32 %v924, %v1204
      %v1372 = vadd.f32 %v926, %v1208
      %v1373 = vadd.f32 %v928, %v1212
      %v1374 = vadd.f32 %v930, %v1216
      %v1375 = vadd.f32 %v932, %v1223
      %v1376 = vadd.f32 %v934, %v1227
      %v1377 = vadd.f32 %v936, %v1231
      %v1378 = vadd.f32 %v938, %v1235
      %v1379 = vadd.f32 %v940, %v1242
      %v1380 = vadd.f32 %v942, %v1246
      %v1381 = vadd.f32 %v944, %v1250
      %v1382 = vadd.f32 %v946, %v1254
      %1447 = vset.pattern.permute.xlu0 0
      %1448 = vperm.xlu0 %1447, %v1319
      %v1449 = vpop.permute.xlu0 %1448
      %1450 = vset.pattern.permute.xlu0 0
      %1451 = vperm.xlu0 %1450, %v1320
      %v1452 = vpop.permute.xlu0 %1451
      %1453 = vset.pattern.permute.xlu0 0
      %1454 = vperm.xlu0 %1453, %v1321
      %v1455 = vpop.permute.xlu0 %1454
      %1456 = vset.pattern.permute.xlu0 0
      %1457 = vperm.xlu0 %1456, %v1322
      %v1458 = vpop.permute.xlu0 %1457
      %1459 = vset.pattern.permute.xlu0 0
      %1460 = vperm.xlu0 %1459, %v1323
      %v1461 = vpop.permute.xlu0 %1460
      %1462 = vset.pattern.permute.xlu0 0
      %1463 = vperm.xlu0 %1462, %v1324
      %v1464 = vpop.permute.xlu0 %1463
      %1465 = vset.pattern.permute.xlu0 0
      %1466 = vperm.xlu0 %1465, %v1325
      %v1467 = vpop.permute.xlu0 %1466
      %1468 = vset.pattern.permute.xlu0 0
      %1469 = vperm.xlu0 %1468, %v1326
      %v1470 = vpop.permute.xlu0 %1469
      %1471 = vset.pattern.permute.xlu0 0
      %1472 = vperm.xlu0 %1471, %v1327
      %v1473 = vpop.permute.xlu0 %1472
      %1474 = vset.pattern.permute.xlu0 0
      %1475 = vperm.xlu0 %1474, %v1328
      %v1476 = vpop.permute.xlu0 %1475
      %1477 = vset.pattern.permute.xlu0 0
      %1478 = vperm.xlu0 %1477, %v1329
      %v1479 = vpop.permute.xlu0 %1478
      %1480 = vset.pattern.permute.xlu0 0
      %1481 = vperm.xlu0 %1480, %v1330
      %v1482 = vpop.permute.xlu0 %1481
      %1483 = vset.pattern.permute.xlu0 0
      %1484 = vperm.xlu0 %1483, %v1331
      %v1485 = vpop.permute.xlu0 %1484
      %1486 = vset.pattern.permute.xlu0 0
      %1487 = vperm.xlu0 %1486, %v1332
      %v1488 = vpop.permute.xlu0 %1487
      %1489 = vset.pattern.permute.xlu0 0
      %1490 = vperm.xlu0 %1489, %v1333
      %v1491 = vpop.permute.xlu0 %1490
      %1492 = vset.pattern.permute.xlu0 0
      %1493 = vperm.xlu0 %1492, %v1334
      %v1494 = vpop.permute.xlu0 %1493
      %1495 = vset.pattern.permute.xlu0 0
      %1496 = vperm.xlu0 %1495, %v1335
      %v1497 = vpop.permute.xlu0 %1496
      %1498 = vset.pattern.permute.xlu0 0
      %1499 = vperm.xlu0 %1498, %v1336
      %v1500 = vpop.permute.xlu0 %1499
      %1501 = vset.pattern.permute.xlu0 0
      %1502 = vperm.xlu0 %1501, %v1337
      %v1503 = vpop.permute.xlu0 %1502
      %1504 = vset.pattern.permute.xlu0 0
      %1505 = vperm.xlu0 %1504, %v1338
      %v1506 = vpop.permute.xlu0 %1505
      %1507 = vset.pattern.permute.xlu0 0
      %1508 = vperm.xlu0 %1507, %v1339
      %v1509 = vpop.permute.xlu0 %1508
      %1510 = vset.pattern.permute.xlu0 0
      %1511 = vperm.xlu0 %1510, %v1340
      %v1512 = vpop.permute.xlu0 %1511
      %1513 = vset.pattern.permute.xlu0 0
      %1514 = vperm.xlu0 %1513, %v1341
      %v1515 = vpop.permute.xlu0 %1514
      %1516 = vset.pattern.permute.xlu0 0
      %1517 = vperm.xlu0 %1516, %v1342
      %v1518 = vpop.permute.xlu0 %1517
      %1519 = vset.pattern.permute.xlu0 0
      %1520 = vperm.xlu0 %1519, %v1343
      %v1521 = vpop.permute.xlu0 %1520
      %1522 = vset.pattern.permute.xlu0 0
      %1523 = vperm.xlu0 %1522, %v1344
      %v1524 = vpop.permute.xlu0 %1523
      %1525 = vset.pattern.permute.xlu0 0
      %1526 = vperm.xlu0 %1525, %v1345
      %v1527 = vpop.permute.xlu0 %1526
      %1528 = vset.pattern.permute.xlu0 0
      %1529 = vperm.xlu0 %1528, %v1346
      %v1530 = vpop.permute.xlu0 %1529
      %1531 = vset.pattern.permute.xlu0 0
      %1532 = vperm.xlu0 %1531, %v1347
      %v1533 = vpop.permute.xlu0 %1532
      %1534 = vset.pattern.permute.xlu0 0
      %1535 = vperm.xlu0 %1534, %v1348
      %v1536 = vpop.permute.xlu0 %1535
      %1537 = vset.pattern.permute.xlu0 0
      %1538 = vperm.xlu0 %1537, %v1349
      %v1539 = vpop.permute.xlu0 %1538
      %1540 = vset.pattern.permute.xlu0 0
      %1541 = vperm.xlu0 %1540, %v1350
      %v1542 = vpop.permute.xlu0 %1541
      %1543 = vset.pattern.permute.xlu0 0
      %1544 = vperm.xlu0 %1543, %v1351
      %v1545 = vpop.permute.xlu0 %1544
      %1546 = vset.pattern.permute.xlu0 0
      %1547 = vperm.xlu0 %1546, %v1352
      %v1548 = vpop.permute.xlu0 %1547
      %1549 = vset.pattern.permute.xlu0 0
      %1550 = vperm.xlu0 %1549, %v1353
      %v1551 = vpop.permute.xlu0 %1550
      %1552 = vset.pattern.permute.xlu0 0
      %1553 = vperm.xlu0 %1552, %v1354
      %v1554 = vpop.permute.xlu0 %1553
      %1555 = vset.pattern.permute.xlu0 0
      %1556 = vperm.xlu0 %1555, %v1355
      %v1557 = vpop.permute.xlu0 %1556
      %1558 = vset.pattern.permute.xlu0 0
      %1559 = vperm.xlu0 %1558, %v1356
      %v1560 = vpop.permute.xlu0 %1559
      %1561 = vset.pattern.permute.xlu0 0
      %1562 = vperm.xlu0 %1561, %v1357
      %v1563 = vpop.permute.xlu0 %1562
      %1564 = vset.pattern.permute.xlu0 0
      %1565 = vperm.xlu0 %1564, %v1358
      %v1566 = vpop.permute.xlu0 %1565
      %1567 = vset.pattern.permute.xlu0 0
      %1568 = vperm.xlu0 %1567, %v1359
      %v1569 = vpop.permute.xlu0 %1568
      %1570 = vset.pattern.permute.xlu0 0
      %1571 = vperm.xlu0 %1570, %v1360
      %v1572 = vpop.permute.xlu0 %1571
      %1573 = vset.pattern.permute.xlu0 0
      %1574 = vperm.xlu0 %1573, %v1361
      %v1575 = vpop.permute.xlu0 %1574
      %1576 = vset.pattern.permute.xlu0 0
      %1577 = vperm.xlu0 %1576, %v1362
      %v1578 = vpop.permute.xlu0 %1577
      %1579 = vset.pattern.permute.xlu0 0
      %1580 = vperm.xlu0 %1579, %v1363
      %v1581 = vpop.permute.xlu0 %1580
      %1582 = vset.pattern.permute.xlu0 0
      %1583 = vperm.xlu0 %1582, %v1364
      %v1584 = vpop.permute.xlu0 %1583
      %1585 = vset.pattern.permute.xlu0 0
      %1586 = vperm.xlu0 %1585, %v1365
      %v1587 = vpop.permute.xlu0 %1586
      %1588 = vset.pattern.permute.xlu0 0
      %1589 = vperm.xlu0 %1588, %v1366
      %v1590 = vpop.permute.xlu0 %1589
      %1591 = vset.pattern.permute.xlu0 0
      %1592 = vperm.xlu0 %1591, %v1367
      %v1593 = vpop.permute.xlu0 %1592
      %1594 = vset.pattern.permute.xlu0 0
      %1595 = vperm.xlu0 %1594, %v1368
      %v1596 = vpop.permute.xlu0 %1595
      %1597 = vset.pattern.permute.xlu0 0
      %1598 = vperm.xlu0 %1597, %v1369
      %v1599 = vpop.permute.xlu0 %1598
      %1600 = vset.pattern.permute.xlu0 0
      %1601 = vperm.xlu0 %1600, %v1370
      %v1602 = vpop.permute.xlu0 %1601
      %1603 = vset.pattern.permute.xlu0 0
      %1604 = vperm.xlu0 %1603, %v1371
      %v1605 = vpop.permute.xlu0 %1604
      %1606 = vset.pattern.permute.xlu0 0
      %1607 = vperm.xlu0 %1606, %v1372
      %v1608 = vpop.permute.xlu0 %1607
      %1609 = vset.pattern.permute.xlu0 0
      %1610 = vperm.xlu0 %1609, %v1373
      %v1611 = vpop.permute.xlu0 %1610
      %1612 = vset.pattern.permute.xlu0 0
      %1613 = vperm.xlu0 %1612, %v1374
      %v1614 = vpop.permute.xlu0 %1613
      %1615 = vset.pattern.permute.xlu0 0
      %1616 = vperm.xlu0 %1615, %v1375
      %v1617 = vpop.permute.xlu0 %1616
      %1618 = vset.pattern.permute.xlu0 0
      %1619 = vperm.xlu0 %1618, %v1376
      %v1620 = vpop.permute.xlu0 %1619
      %1621 = vset.pattern.permute.xlu0 0
      %1622 = vperm.xlu0 %1621, %v1377
      %v1623 = vpop.permute.xlu0 %1622
      %1624 = vset.pattern.permute.xlu0 0
      %1625 = vperm.xlu0 %1624, %v1378
      %v1626 = vpop.permute.xlu0 %1625
      %1627 = vset.pattern.permute.xlu0 0
      %1628 = vperm.xlu0 %1627, %v1379
      %v1629 = vpop.permute.xlu0 %1628
      %1630 = vset.pattern.permute.xlu0 0
      %1631 = vperm.xlu0 %1630, %v1380
      %v1632 = vpop.permute.xlu0 %1631
      %1633 = vset.pattern.permute.xlu0 0
      %1634 = vperm.xlu0 %1633, %v1381
      %v1635 = vpop.permute.xlu0 %1634
      %1636 = vset.pattern.permute.xlu0 0
      %1637 = vperm.xlu0 %1636, %v1382
      %v1638 = vpop.permute.xlu0 %1637
      %v1639 = vlaneseq
      %v1640 = vand.u32 %v1639, 127
      %v1641 = vlaneseq
      %v1642 = vshrl.u32 %v1641, 7
      %v1643 = vsub.s32 %v1640, %v1642
      %v1644 = vrot.slane %v1449, %v1643
      %v1645 = vadd.s32 %v1640, 4294967288
      %v1646 = vlaneseq
      %v1647 = vshrl.u32 %v1646, 7
      %v1648 = vsub.s32 %v1645, %v1647
      %v1649 = vrot.slane %v1452, %v1648
      %vm1650 = vcmask 130112
      %v1651 = vsel %vm1650, %v1649, %v1644
      %v1652 = vadd.s32 %v1640, 4294967280
      %v1653 = vlaneseq
      %v1654 = vshrl.u32 %v1653, 7
      %v1655 = vsub.s32 %v1652, %v1654
      %v1656 = vrot.slane %v1455, %v1655
      %vm1657 = vcmask 195712
      %v1658 = vsel %vm1657, %v1656, %v1651
      %v1659 = vadd.s32 %v1640, 4294967272
      %v1660 = vlaneseq
      %v1661 = vshrl.u32 %v1660, 7
      %v1662 = vsub.s32 %v1659, %v1661
      %v1663 = vrot.slane %v1458, %v1662
      %vm1664 = vcmask 261312
      %v1665 = vsel %vm1664, %v1663, %v1658
      %v1666 = vlaneseq
      %v1667 = vshrl.u32 %v1666, 7
      %v1668 = vsub.s32 %v1640, %v1667
      %v1669 = vrot.slane %v1461, %v1668
      %v1670 = vlaneseq
      %v1671 = vshrl.u32 %v1670, 7
      %v1672 = vsub.s32 %v1645, %v1671
      %v1673 = vrot.slane %v1464, %v1672
      %v1674 = vsel %vm1650, %v1673, %v1669
      %v1675 = vlaneseq
      %v1676 = vshrl.u32 %v1675, 7
      %v1677 = vsub.s32 %v1652, %v1676
      %v1678 = vrot.slane %v1467, %v1677
      %v1679 = vsel %vm1657, %v1678, %v1674
      %v1680 = vlaneseq
      %v1681 = vshrl.u32 %v1680, 7
      %v1682 = vsub.s32 %v1659, %v1681
      %v1683 = vrot.slane %v1470, %v1682
      %v1684 = vsel %vm1664, %v1683, %v1679
      %v1685 = vlaneseq
      %v1686 = vshrl.u32 %v1685, 7
      %v1687 = vsub.s32 %v1640, %v1686
      %v1688 = vrot.slane %v1473, %v1687
      %v1689 = vlaneseq
      %v1690 = vshrl.u32 %v1689, 7
      %v1691 = vsub.s32 %v1645, %v1690
      %v1692 = vrot.slane %v1476, %v1691
      %v1693 = vsel %vm1650, %v1692, %v1688
      %v1694 = vlaneseq
      %v1695 = vshrl.u32 %v1694, 7
      %v1696 = vsub.s32 %v1652, %v1695
      %v1697 = vrot.slane %v1479, %v1696
      %v1698 = vsel %vm1657, %v1697, %v1693
      %v1699 = vlaneseq
      %v1700 = vshrl.u32 %v1699, 7
      %v1701 = vsub.s32 %v1659, %v1700
      %v1702 = vrot.slane %v1482, %v1701
      %v1703 = vsel %vm1664, %v1702, %v1698
      %v1704 = vlaneseq
      %v1705 = vshrl.u32 %v1704, 7
      %v1706 = vsub.s32 %v1640, %v1705
      %v1707 = vrot.slane %v1485, %v1706
      %v1708 = vlaneseq
      %v1709 = vshrl.u32 %v1708, 7
      %v1710 = vsub.s32 %v1645, %v1709
      %v1711 = vrot.slane %v1488, %v1710
      %v1712 = vsel %vm1650, %v1711, %v1707
      %v1713 = vlaneseq
      %v1714 = vshrl.u32 %v1713, 7
      %v1715 = vsub.s32 %v1652, %v1714
      %v1716 = vrot.slane %v1491, %v1715
      %v1717 = vsel %vm1657, %v1716, %v1712
      %v1718 = vlaneseq
      %v1719 = vshrl.u32 %v1718, 7
      %v1720 = vsub.s32 %v1659, %v1719
      %v1721 = vrot.slane %v1494, %v1720
      %v1722 = vsel %vm1664, %v1721, %v1717
      %v1723 = vlaneseq
      %v1724 = vshrl.u32 %v1723, 7
      %v1725 = vsub.s32 %v1640, %v1724
      %v1726 = vrot.slane %v1497, %v1725
      %v1727 = vlaneseq
      %v1728 = vshrl.u32 %v1727, 7
      %v1729 = vsub.s32 %v1645, %v1728
      %v1730 = vrot.slane %v1500, %v1729
      %v1731 = vsel %vm1650, %v1730, %v1726
      %v1732 = vlaneseq
      %v1733 = vshrl.u32 %v1732, 7
      %v1734 = vsub.s32 %v1652, %v1733
      %v1735 = vrot.slane %v1503, %v1734
      %v1736 = vsel %vm1657, %v1735, %v1731
      %v1737 = vlaneseq
      %v1738 = vshrl.u32 %v1737, 7
      %v1739 = vsub.s32 %v1659, %v1738
      %v1740 = vrot.slane %v1506, %v1739
      %v1741 = vsel %vm1664, %v1740, %v1736
      %v1742 = vlaneseq
      %v1743 = vshrl.u32 %v1742, 7
      %v1744 = vsub.s32 %v1640, %v1743
      %v1745 = vrot.slane %v1509, %v1744
      %v1746 = vlaneseq
      %v1747 = vshrl.u32 %v1746, 7
      %v1748 = vsub.s32 %v1645, %v1747
      %v1749 = vrot.slane %v1512, %v1748
      %v1750 = vsel %vm1650, %v1749, %v1745
      %v1751 = vlaneseq
      %v1752 = vshrl.u32 %v1751, 7
      %v1753 = vsub.s32 %v1652, %v1752
      %v1754 = vrot.slane %v1515, %v1753
      %v1755 = vsel %vm1657, %v1754, %v1750
      %v1756 = vlaneseq
      %v1757 = vshrl.u32 %v1756, 7
      %v1758 = vsub.s32 %v1659, %v1757
      %v1759 = vrot.slane %v1518, %v1758
      %v1760 = vsel %vm1664, %v1759, %v1755
      %v1761 = vlaneseq
      %v1762 = vshrl.u32 %v1761, 7
      %v1763 = vsub.s32 %v1640, %v1762
      %v1764 = vrot.slane %v1521, %v1763
      %v1765 = vlaneseq
      %v1766 = vshrl.u32 %v1765, 7
      %v1767 = vsub.s32 %v1645, %v1766
      %v1768 = vrot.slane %v1524, %v1767
      %v1769 = vsel %vm1650, %v1768, %v1764
      %v1770 = vlaneseq
      %v1771 = vshrl.u32 %v1770, 7
      %v1772 = vsub.s32 %v1652, %v1771
      %v1773 = vrot.slane %v1527, %v1772
      %v1774 = vsel %vm1657, %v1773, %v1769
      %v1775 = vlaneseq
      %v1776 = vshrl.u32 %v1775, 7
      %v1777 = vsub.s32 %v1659, %v1776
      %v1778 = vrot.slane %v1530, %v1777
      %v1779 = vsel %vm1664, %v1778, %v1774
      %v1780 = vlaneseq
      %v1781 = vshrl.u32 %v1780, 7
      %v1782 = vsub.s32 %v1640, %v1781
      %v1783 = vrot.slane %v1533, %v1782
      %v1784 = vlaneseq
      %v1785 = vshrl.u32 %v1784, 7
      %v1786 = vsub.s32 %v1645, %v1785
      %v1787 = vrot.slane %v1536, %v1786
      %v1788 = vsel %vm1650, %v1787, %v1783
      %v1789 = vlaneseq
      %v1790 = vshrl.u32 %v1789, 7
      %v1791 = vsub.s32 %v1652, %v1790
      %v1792 = vrot.slane %v1539, %v1791
      %v1793 = vsel %vm1657, %v1792, %v1788
      %v1794 = vlaneseq
      %v1795 = vshrl.u32 %v1794, 7
      %v1796 = vsub.s32 %v1659, %v1795
      %v1797 = vrot.slane %v1542, %v1796
      %v1798 = vsel %vm1664, %v1797, %v1793
      %v1799 = vlaneseq
      %v1800 = vshrl.u32 %v1799, 7
      %v1801 = vsub.s32 %v1640, %v1800
      %v1802 = vrot.slane %v1545, %v1801
      %v1803 = vlaneseq
      %v1804 = vshrl.u32 %v1803, 7
      %v1805 = vsub.s32 %v1645, %v1804
      %v1806 = vrot.slane %v1548, %v1805
      %v1807 = vsel %vm1650, %v1806, %v1802
      %v1808 = vlaneseq
      %v1809 = vshrl.u32 %v1808, 7
      %v1810 = vsub.s32 %v1652, %v1809
      %v1811 = vrot.slane %v1551, %v1810
      %v1812 = vsel %vm1657, %v1811, %v1807
      %v1813 = vlaneseq
      %v1814 = vshrl.u32 %v1813, 7
      %v1815 = vsub.s32 %v1659, %v1814
      %v1816 = vrot.slane %v1554, %v1815
      %v1817 = vsel %vm1664, %v1816, %v1812
      %v1818 = vlaneseq
      %v1819 = vshrl.u32 %v1818, 7
      %v1820 = vsub.s32 %v1640, %v1819
      %v1821 = vrot.slane %v1557, %v1820
      %v1822 = vlaneseq
      %v1823 = vshrl.u32 %v1822, 7
      %v1824 = vsub.s32 %v1645, %v1823
      %v1825 = vrot.slane %v1560, %v1824
      %v1826 = vsel %vm1650, %v1825, %v1821
      %v1827 = vlaneseq
      %v1828 = vshrl.u32 %v1827, 7
      %v1829 = vsub.s32 %v1652, %v1828
      %v1830 = vrot.slane %v1563, %v1829
      %v1831 = vsel %vm1657, %v1830, %v1826
      %v1832 = vlaneseq
      %v1833 = vshrl.u32 %v1832, 7
      %v1834 = vsub.s32 %v1659, %v1833
      %v1835 = vrot.slane %v1566, %v1834
      %v1836 = vsel %vm1664, %v1835, %v1831
      %v1837 = vlaneseq
      %v1838 = vshrl.u32 %v1837, 7
      %v1839 = vsub.s32 %v1640, %v1838
      %v1840 = vrot.slane %v1569, %v1839
      %v1841 = vlaneseq
      %v1842 = vshrl.u32 %v1841, 7
      %v1843 = vsub.s32 %v1645, %v1842
      %v1844 = vrot.slane %v1572, %v1843
      %v1845 = vsel %vm1650, %v1844, %v1840
      %v1846 = vlaneseq
      %v1847 = vshrl.u32 %v1846, 7
      %v1848 = vsub.s32 %v1652, %v1847
      %v1849 = vrot.slane %v1575, %v1848
      %v1850 = vsel %vm1657, %v1849, %v1845
      %v1851 = vlaneseq
      %v1852 = vshrl.u32 %v1851, 7
      %v1853 = vsub.s32 %v1659, %v1852
      %v1854 = vrot.slane %v1578, %v1853
      %v1855 = vsel %vm1664, %v1854, %v1850
      %v1856 = vlaneseq
      %v1857 = vshrl.u32 %v1856, 7
      %v1858 = vsub.s32 %v1640, %v1857
      %v1859 = vrot.slane %v1581, %v1858
      %v1860 = vlaneseq
      %v1861 = vshrl.u32 %v1860, 7
      %v1862 = vsub.s32 %v1645, %v1861
      %v1863 = vrot.slane %v1584, %v1862
      %v1864 = vsel %vm1650, %v1863, %v1859
      %v1865 = vlaneseq
      %v1866 = vshrl.u32 %v1865, 7
      %v1867 = vsub.s32 %v1652, %v1866
      %v1868 = vrot.slane %v1587, %v1867
      %v1869 = vsel %vm1657, %v1868, %v1864
      %v1870 = vlaneseq
      %v1871 = vshrl.u32 %v1870, 7
      %v1872 = vsub.s32 %v1659, %v1871
      %v1873 = vrot.slane %v1590, %v1872
      %v1874 = vsel %vm1664, %v1873, %v1869
      %v1875 = vlaneseq
      %v1876 = vshrl.u32 %v1875, 7
      %v1877 = vsub.s32 %v1640, %v1876
      %v1878 = vrot.slane %v1593, %v1877
      %v1879 = vlaneseq
      %v1880 = vshrl.u32 %v1879, 7
      %v1881 = vsub.s32 %v1645, %v1880
      %v1882 = vrot.slane %v1596, %v1881
      %v1883 = vsel %vm1650, %v1882, %v1878
      %v1884 = vlaneseq
      %v1885 = vshrl.u32 %v1884, 7
      %v1886 = vsub.s32 %v1652, %v1885
      %v1887 = vrot.slane %v1599, %v1886
      %v1888 = vsel %vm1657, %v1887, %v1883
      %v1889 = vlaneseq
      %v1890 = vshrl.u32 %v1889, 7
      %v1891 = vsub.s32 %v1659, %v1890
      %v1892 = vrot.slane %v1602, %v1891
      %v1893 = vsel %vm1664, %v1892, %v1888
      %v1894 = vlaneseq
      %v1895 = vshrl.u32 %v1894, 7
      %v1896 = vsub.s32 %v1640, %v1895
      %v1897 = vrot.slane %v1605, %v1896
      %v1898 = vlaneseq
      %v1899 = vshrl.u32 %v1898, 7
      %v1900 = vsub.s32 %v1645, %v1899
      %v1901 = vrot.slane %v1608, %v1900
      %v1902 = vsel %vm1650, %v1901, %v1897
      %v1903 = vlaneseq
      %v1904 = vshrl.u32 %v1903, 7
      %v1905 = vsub.s32 %v1652, %v1904
      %v1906 = vrot.slane %v1611, %v1905
      %v1907 = vsel %vm1657, %v1906, %v1902
      %v1908 = vlaneseq
      %v1909 = vshrl.u32 %v1908, 7
      %v1910 = vsub.s32 %v1659, %v1909
      %v1911 = vrot.slane %v1614, %v1910
      %v1912 = vsel %vm1664, %v1911, %v1907
      %v1913 = vlaneseq
      %v1914 = vshrl.u32 %v1913, 7
      %v1915 = vsub.s32 %v1640, %v1914
      %v1916 = vrot.slane %v1617, %v1915
      %v1917 = vlaneseq
      %v1918 = vshrl.u32 %v1917, 7
      %v1919 = vsub.s32 %v1645, %v1918
      %v1920 = vrot.slane %v1620, %v1919
      %v1921 = vsel %vm1650, %v1920, %v1916
      %v1922 = vlaneseq
      %v1923 = vshrl.u32 %v1922, 7
      %v1924 = vsub.s32 %v1652, %v1923
      %v1925 = vrot.slane %v1623, %v1924
      %v1926 = vsel %vm1657, %v1925, %v1921
      %v1927 = vlaneseq
      %v1928 = vshrl.u32 %v1927, 7
      %v1929 = vsub.s32 %v1659, %v1928
      %v1930 = vrot.slane %v1626, %v1929
      %v1931 = vsel %vm1664, %v1930, %v1926
      %v1932 = vlaneseq
      %v1933 = vshrl.u32 %v1932, 7
      %v1934 = vsub.s32 %v1640, %v1933
      %v1935 = vrot.slane %v1629, %v1934
      %v1936 = vlaneseq
      %v1937 = vshrl.u32 %v1936, 7
      %v1938 = vsub.s32 %v1645, %v1937
      %v1939 = vrot.slane %v1632, %v1938
      %v1940 = vsel %vm1650, %v1939, %v1935
      %v1941 = vlaneseq
      %v1942 = vshrl.u32 %v1941, 7
      %v1943 = vsub.s32 %v1652, %v1942
      %v1944 = vrot.slane %v1635, %v1943
      %v1945 = vsel %vm1657, %v1944, %v1940
      %v1946 = vlaneseq
      %v1947 = vshrl.u32 %v1946, 7
      %v1948 = vsub.s32 %v1659, %v1947
      %v1949 = vrot.slane %v1638, %v1948
      %v1950 = vsel %vm1664, %v1949, %v1945
      %vm1951 = vcmask 1041409
      %v1952 = vsel %vm1951, %v1684, %v1665
      %vm1953 = vcmask 1042434
      %v1954 = vsel %vm1953, %v1703, %v1952
      %vm1955 = vcmask 1043459
      %v1956 = vsel %vm1955, %v1722, %v1954
      %vm1957 = vcmask 1044484
      %v1958 = vsel %vm1957, %v1741, %v1956
      %vm1959 = vcmask 1045509
      %v1960 = vsel %vm1959, %v1760, %v1958
      %vm1961 = vcmask 1046534
      %v1962 = vsel %vm1961, %v1779, %v1960
      %vm1963 = vcmask 1047559
      %v1964 = vsel %vm1963, %v1798, %v1962
      %v1965 = vsel %vm1951, %v1836, %v1817
      %v1966 = vsel %vm1953, %v1855, %v1965
      %v1967 = vsel %vm1955, %v1874, %v1966
      %v1968 = vsel %vm1957, %v1893, %v1967
      %v1969 = vsel %vm1959, %v1912, %v1968
      %v1970 = vsel %vm1961, %v1931, %v1969
      %v1971 = vsel %vm1963, %v1950, %v1970
      %vm1974 = vcmask 261120
      %v1975 = vsel %vm1974, %v1964, -inf
      %1976 = vmax.xlane.f32.xlu0 %v1975
      %v1977 = vpop.xlane.xlu0 %1976
      %v1978 = vsel %vm1974, %v1971, -inf
      %1979 = vmax.xlane.f32.xlu0 %v1978
      %v1980 = vpop.xlane.xlu0 %1979
      %v1983 = vlaneseq
      %v1984 = vshrl.u32 %v1983, 7
      %v1985 = vsub.s32 0, %v1984
      %v1986 = vrot.slane %v1977, %v1985
      %v1987 = vlaneseq
      %v1988 = vshrl.u32 %v1987, 7
      %v1989 = vsub.s32 1, %v1988
      %v1990 = vrot.slane %v1977, %v1989
      %v1991 = vlaneseq
      %v1992 = vshrl.u32 %v1991, 7
      %v1993 = vsub.s32 2, %v1992
      %v1994 = vrot.slane %v1977, %v1993
      %v1995 = vlaneseq
      %v1996 = vshrl.u32 %v1995, 7
      %v1997 = vsub.s32 3, %v1996
      %v1998 = vrot.slane %v1977, %v1997
      %v1999 = vlaneseq
      %v2000 = vshrl.u32 %v1999, 7
      %v2001 = vsub.s32 4, %v2000
      %v2002 = vrot.slane %v1977, %v2001
      %v2003 = vlaneseq
      %v2004 = vshrl.u32 %v2003, 7
      %v2005 = vsub.s32 5, %v2004
      %v2006 = vrot.slane %v1977, %v2005
      %v2007 = vlaneseq
      %v2008 = vshrl.u32 %v2007, 7
      %v2009 = vsub.s32 6, %v2008
      %v2010 = vrot.slane %v1977, %v2009
      %v2011 = vlaneseq
      %v2012 = vshrl.u32 %v2011, 7
      %v2013 = vsub.s32 7, %v2012
      %v2014 = vrot.slane %v1977, %v2013
      %v2015 = vlaneseq
      %v2016 = vshrl.u32 %v2015, 7
      %v2017 = vsub.s32 0, %v2016
      %v2018 = vrot.slane %v1980, %v2017
      %v2019 = vlaneseq
      %v2020 = vshrl.u32 %v2019, 7
      %v2021 = vsub.s32 1, %v2020
      %v2022 = vrot.slane %v1980, %v2021
      %v2023 = vlaneseq
      %v2024 = vshrl.u32 %v2023, 7
      %v2025 = vsub.s32 2, %v2024
      %v2026 = vrot.slane %v1980, %v2025
      %v2027 = vlaneseq
      %v2028 = vshrl.u32 %v2027, 7
      %v2029 = vsub.s32 3, %v2028
      %v2030 = vrot.slane %v1980, %v2029
      %v2031 = vlaneseq
      %v2032 = vshrl.u32 %v2031, 7
      %v2033 = vsub.s32 4, %v2032
      %v2034 = vrot.slane %v1980, %v2033
      %v2035 = vlaneseq
      %v2036 = vshrl.u32 %v2035, 7
      %v2037 = vsub.s32 5, %v2036
      %v2038 = vrot.slane %v1980, %v2037
      %v2039 = vlaneseq
      %v2040 = vshrl.u32 %v2039, 7
      %v2041 = vsub.s32 6, %v2040
      %v2042 = vrot.slane %v1980, %v2041
      %v2043 = vlaneseq
      %v2044 = vshrl.u32 %v2043, 7
      %v2045 = vsub.s32 7, %v2044
      %v2046 = vrot.slane %v1980, %v2045
      %v2063 = vsub.f32 %v1319, %v1986
      %v2064 = vsub.f32 %v1320, %v1986
      %v2065 = vsub.f32 %v1321, %v1986
      %v2066 = vsub.f32 %v1322, %v1986
      %v2067 = vsub.f32 %v1323, %v1990
      %v2068 = vsub.f32 %v1324, %v1990
      %v2069 = vsub.f32 %v1325, %v1990
      %v2070 = vsub.f32 %v1326, %v1990
      %v2071 = vsub.f32 %v1327, %v1994
      %v2072 = vsub.f32 %v1328, %v1994
      %v2073 = vsub.f32 %v1329, %v1994
      %v2074 = vsub.f32 %v1330, %v1994
      %v2075 = vsub.f32 %v1331, %v1998
      %v2076 = vsub.f32 %v1332, %v1998
      %v2077 = vsub.f32 %v1333, %v1998
      %v2078 = vsub.f32 %v1334, %v1998
      %v2079 = vsub.f32 %v1335, %v2002
      %v2080 = vsub.f32 %v1336, %v2002
      %v2081 = vsub.f32 %v1337, %v2002
      %v2082 = vsub.f32 %v1338, %v2002
      %v2083 = vsub.f32 %v1339, %v2006
      %v2084 = vsub.f32 %v1340, %v2006
      %v2085 = vsub.f32 %v1341, %v2006
      %v2086 = vsub.f32 %v1342, %v2006
      %v2087 = vsub.f32 %v1343, %v2010
      %v2088 = vsub.f32 %v1344, %v2010
      %v2089 = vsub.f32 %v1345, %v2010
      %v2090 = vsub.f32 %v1346, %v2010
      %v2091 = vsub.f32 %v1347, %v2014
      %v2092 = vsub.f32 %v1348, %v2014
      %v2093 = vsub.f32 %v1349, %v2014
      %v2094 = vsub.f32 %v1350, %v2014
      %v2095 = vsub.f32 %v1351, %v2018
      %v2096 = vsub.f32 %v1352, %v2018
      %v2097 = vsub.f32 %v1353, %v2018
      %v2098 = vsub.f32 %v1354, %v2018
      %v2099 = vsub.f32 %v1355, %v2022
      %v2100 = vsub.f32 %v1356, %v2022
      %v2101 = vsub.f32 %v1357, %v2022
      %v2102 = vsub.f32 %v1358, %v2022
      %v2103 = vsub.f32 %v1359, %v2026
      %v2104 = vsub.f32 %v1360, %v2026
      %v2105 = vsub.f32 %v1361, %v2026
      %v2106 = vsub.f32 %v1362, %v2026
      %v2107 = vsub.f32 %v1363, %v2030
      %v2108 = vsub.f32 %v1364, %v2030
      %v2109 = vsub.f32 %v1365, %v2030
      %v2110 = vsub.f32 %v1366, %v2030
      %v2111 = vsub.f32 %v1367, %v2034
      %v2112 = vsub.f32 %v1368, %v2034
      %v2113 = vsub.f32 %v1369, %v2034
      %v2114 = vsub.f32 %v1370, %v2034
      %v2115 = vsub.f32 %v1371, %v2038
      %v2116 = vsub.f32 %v1372, %v2038
      %v2117 = vsub.f32 %v1373, %v2038
      %v2118 = vsub.f32 %v1374, %v2038
      %v2119 = vsub.f32 %v1375, %v2042
      %v2120 = vsub.f32 %v1376, %v2042
      %v2121 = vsub.f32 %v1377, %v2042
      %v2122 = vsub.f32 %v1378, %v2042
      %v2123 = vsub.f32 %v1379, %v2046
      %v2124 = vsub.f32 %v1380, %v2046
      %v2125 = vsub.f32 %v1381, %v2046
      %v2126 = vsub.f32 %v1382, %v2046
      %v2127 = vmul.f32 %v2063, 1.442695
      %v2128 = vpow.pop %v2127
      %v2129 = vmul.f32 %v2064, 1.442695
      %v2130 = vpow.pop %v2129
      %v2131 = vmul.f32 %v2065, 1.442695
      %v2132 = vpow.pop %v2131
      %v2133 = vmul.f32 %v2066, 1.442695
      %v2134 = vpow.pop %v2133
      %v2135 = vmul.f32 %v2067, 1.442695
      %v2136 = vpow.pop %v2135
      %v2137 = vmul.f32 %v2068, 1.442695
      %v2138 = vpow.pop %v2137
      %v2139 = vmul.f32 %v2069, 1.442695
      %v2140 = vpow.pop %v2139
      %v2141 = vmul.f32 %v2070, 1.442695
      %v2142 = vpow.pop %v2141
      %v2143 = vmul.f32 %v2071, 1.442695
      %v2144 = vpow.pop %v2143
      %v2145 = vmul.f32 %v2072, 1.442695
      %v2146 = vpow.pop %v2145
      %v2147 = vmul.f32 %v2073, 1.442695
      %v2148 = vpow.pop %v2147
      %v2149 = vmul.f32 %v2074, 1.442695
      %v2150 = vpow.pop %v2149
      %v2151 = vmul.f32 %v2075, 1.442695
      %v2152 = vpow.pop %v2151
      %v2153 = vmul.f32 %v2076, 1.442695
      %v2154 = vpow.pop %v2153
      %v2155 = vmul.f32 %v2077, 1.442695
      %v2156 = vpow.pop %v2155
      %v2157 = vmul.f32 %v2078, 1.442695
      %v2158 = vpow.pop %v2157
      %v2159 = vmul.f32 %v2079, 1.442695
      %v2160 = vpow.pop %v2159
      %v2161 = vmul.f32 %v2080, 1.442695
      %v2162 = vpow.pop %v2161
      %v2163 = vmul.f32 %v2081, 1.442695
      %v2164 = vpow.pop %v2163
      %v2165 = vmul.f32 %v2082, 1.442695
      %v2166 = vpow.pop %v2165
      %v2167 = vmul.f32 %v2083, 1.442695
      %v2168 = vpow.pop %v2167
      %v2169 = vmul.f32 %v2084, 1.442695
      %v2170 = vpow.pop %v2169
      %v2171 = vmul.f32 %v2085, 1.442695
      %v2172 = vpow.pop %v2171
      %v2173 = vmul.f32 %v2086, 1.442695
      %v2174 = vpow.pop %v2173
      %v2175 = vmul.f32 %v2087, 1.442695
      %v2176 = vpow.pop %v2175
      %v2177 = vmul.f32 %v2088, 1.442695
      %v2178 = vpow.pop %v2177
      %v2179 = vmul.f32 %v2089, 1.442695
      %v2180 = vpow.pop %v2179
      %v2181 = vmul.f32 %v2090, 1.442695
      %v2182 = vpow.pop %v2181
      %v2183 = vmul.f32 %v2091, 1.442695
      %v2184 = vpow.pop %v2183
      %v2185 = vmul.f32 %v2092, 1.442695
      %v2186 = vpow.pop %v2185
      %v2187 = vmul.f32 %v2093, 1.442695
      %v2188 = vpow.pop %v2187
      %v2189 = vmul.f32 %v2094, 1.442695
      %v2190 = vpow.pop %v2189
      %v2191 = vmul.f32 %v2095, 1.442695
      %v2192 = vpow.pop %v2191
      %v2193 = vmul.f32 %v2096, 1.442695
      %v2194 = vpow.pop %v2193
      %v2195 = vmul.f32 %v2097, 1.442695
      %v2196 = vpow.pop %v2195
      %v2197 = vmul.f32 %v2098, 1.442695
      %v2198 = vpow.pop %v2197
      %v2199 = vmul.f32 %v2099, 1.442695
      %v2200 = vpow.pop %v2199
      %v2201 = vmul.f32 %v2100, 1.442695
      %v2202 = vpow.pop %v2201
      %v2203 = vmul.f32 %v2101, 1.442695
      %v2204 = vpow.pop %v2203
      %v2205 = vmul.f32 %v2102, 1.442695
      %v2206 = vpow.pop %v2205
      %v2207 = vmul.f32 %v2103, 1.442695
      %v2208 = vpow.pop %v2207
      %v2209 = vmul.f32 %v2104, 1.442695
      %v2210 = vpow.pop %v2209
      %v2211 = vmul.f32 %v2105, 1.442695
      %v2212 = vpow.pop %v2211
      %v2213 = vmul.f32 %v2106, 1.442695
      %v2214 = vpow.pop %v2213
      %v2215 = vmul.f32 %v2107, 1.442695
      %v2216 = vpow.pop %v2215
      %v2217 = vmul.f32 %v2108, 1.442695
      %v2218 = vpow.pop %v2217
      %v2219 = vmul.f32 %v2109, 1.442695
      %v2220 = vpow.pop %v2219
      %v2221 = vmul.f32 %v2110, 1.442695
      %v2222 = vpow.pop %v2221
      %v2223 = vmul.f32 %v2111, 1.442695
      %v2224 = vpow.pop %v2223
      %v2225 = vmul.f32 %v2112, 1.442695
      %v2226 = vpow.pop %v2225
      %v2227 = vmul.f32 %v2113, 1.442695
      %v2228 = vpow.pop %v2227
      %v2229 = vmul.f32 %v2114, 1.442695
      %v2230 = vpow.pop %v2229
      %v2231 = vmul.f32 %v2115, 1.442695
      %v2232 = vpow.pop %v2231
      %v2233 = vmul.f32 %v2116, 1.442695
      %v2234 = vpow.pop %v2233
      %v2235 = vmul.f32 %v2117, 1.442695
      %v2236 = vpow.pop %v2235
      %v2237 = vmul.f32 %v2118, 1.442695
      %v2238 = vpow.pop %v2237
      %v2239 = vmul.f32 %v2119, 1.442695
      %v2240 = vpow.pop %v2239
      %v2241 = vmul.f32 %v2120, 1.442695
      %v2242 = vpow.pop %v2241
      %v2243 = vmul.f32 %v2121, 1.442695
      %v2244 = vpow.pop %v2243
      %v2245 = vmul.f32 %v2122, 1.442695
      %v2246 = vpow.pop %v2245
      %v2247 = vmul.f32 %v2123, 1.442695
      %v2248 = vpow.pop %v2247
      %v2249 = vmul.f32 %v2124, 1.442695
      %v2250 = vpow.pop %v2249
      %v2251 = vmul.f32 %v2125, 1.442695
      %v2252 = vpow.pop %v2251
      %v2253 = vmul.f32 %v2126, 1.442695
      %v2254 = vpow.pop %v2253
      %2319 = vset.pattern.permute.xlu0 0
      %2320 = vperm.xlu0 %2319, %v2128
      %v2321 = vpop.permute.xlu0 %2320
      %2322 = vset.pattern.permute.xlu0 0
      %2323 = vperm.xlu0 %2322, %v2130
      %v2324 = vpop.permute.xlu0 %2323
      %2325 = vset.pattern.permute.xlu0 0
      %2326 = vperm.xlu0 %2325, %v2132
      %v2327 = vpop.permute.xlu0 %2326
      %2328 = vset.pattern.permute.xlu0 0
      %2329 = vperm.xlu0 %2328, %v2134
      %v2330 = vpop.permute.xlu0 %2329
      %2331 = vset.pattern.permute.xlu0 0
      %2332 = vperm.xlu0 %2331, %v2136
      %v2333 = vpop.permute.xlu0 %2332
      %2334 = vset.pattern.permute.xlu0 0
      %2335 = vperm.xlu0 %2334, %v2138
      %v2336 = vpop.permute.xlu0 %2335
      %2337 = vset.pattern.permute.xlu0 0
      %2338 = vperm.xlu0 %2337, %v2140
      %v2339 = vpop.permute.xlu0 %2338
      %2340 = vset.pattern.permute.xlu0 0
      %2341 = vperm.xlu0 %2340, %v2142
      %v2342 = vpop.permute.xlu0 %2341
      %2343 = vset.pattern.permute.xlu0 0
      %2344 = vperm.xlu0 %2343, %v2144
      %v2345 = vpop.permute.xlu0 %2344
      %2346 = vset.pattern.permute.xlu0 0
      %2347 = vperm.xlu0 %2346, %v2146
      %v2348 = vpop.permute.xlu0 %2347
      %2349 = vset.pattern.permute.xlu0 0
      %2350 = vperm.xlu0 %2349, %v2148
      %v2351 = vpop.permute.xlu0 %2350
      %2352 = vset.pattern.permute.xlu0 0
      %2353 = vperm.xlu0 %2352, %v2150
      %v2354 = vpop.permute.xlu0 %2353
      %2355 = vset.pattern.permute.xlu0 0
      %2356 = vperm.xlu0 %2355, %v2152
      %v2357 = vpop.permute.xlu0 %2356
      %2358 = vset.pattern.permute.xlu0 0
      %2359 = vperm.xlu0 %2358, %v2154
      %v2360 = vpop.permute.xlu0 %2359
      %2361 = vset.pattern.permute.xlu0 0
      %2362 = vperm.xlu0 %2361, %v2156
      %v2363 = vpop.permute.xlu0 %2362
      %2364 = vset.pattern.permute.xlu0 0
      %2365 = vperm.xlu0 %2364, %v2158
      %v2366 = vpop.permute.xlu0 %2365
      %2367 = vset.pattern.permute.xlu0 0
      %2368 = vperm.xlu0 %2367, %v2160
      %v2369 = vpop.permute.xlu0 %2368
      %2370 = vset.pattern.permute.xlu0 0
      %2371 = vperm.xlu0 %2370, %v2162
      %v2372 = vpop.permute.xlu0 %2371
      %2373 = vset.pattern.permute.xlu0 0
      %2374 = vperm.xlu0 %2373, %v2164
      %v2375 = vpop.permute.xlu0 %2374
      %2376 = vset.pattern.permute.xlu0 0
      %2377 = vperm.xlu0 %2376, %v2166
      %v2378 = vpop.permute.xlu0 %2377
      %2379 = vset.pattern.permute.xlu0 0
      %2380 = vperm.xlu0 %2379, %v2168
      %v2381 = vpop.permute.xlu0 %2380
      %2382 = vset.pattern.permute.xlu0 0
      %2383 = vperm.xlu0 %2382, %v2170
      %v2384 = vpop.permute.xlu0 %2383
      %2385 = vset.pattern.permute.xlu0 0
      %2386 = vperm.xlu0 %2385, %v2172
      %v2387 = vpop.permute.xlu0 %2386
      %2388 = vset.pattern.permute.xlu0 0
      %2389 = vperm.xlu0 %2388, %v2174
      %v2390 = vpop.permute.xlu0 %2389
      %2391 = vset.pattern.permute.xlu0 0
      %2392 = vperm.xlu0 %2391, %v2176
      %v2393 = vpop.permute.xlu0 %2392
      %2394 = vset.pattern.permute.xlu0 0
      %2395 = vperm.xlu0 %2394, %v2178
      %v2396 = vpop.permute.xlu0 %2395
      %2397 = vset.pattern.permute.xlu0 0
      %2398 = vperm.xlu0 %2397, %v2180
      %v2399 = vpop.permute.xlu0 %2398
      %2400 = vset.pattern.permute.xlu0 0
      %2401 = vperm.xlu0 %2400, %v2182
      %v2402 = vpop.permute.xlu0 %2401
      %2403 = vset.pattern.permute.xlu0 0
      %2404 = vperm.xlu0 %2403, %v2184
      %v2405 = vpop.permute.xlu0 %2404
      %2406 = vset.pattern.permute.xlu0 0
      %2407 = vperm.xlu0 %2406, %v2186
      %v2408 = vpop.permute.xlu0 %2407
      %2409 = vset.pattern.permute.xlu0 0
      %2410 = vperm.xlu0 %2409, %v2188
      %v2411 = vpop.permute.xlu0 %2410
      %2412 = vset.pattern.permute.xlu0 0
      %2413 = vperm.xlu0 %2412, %v2190
      %v2414 = vpop.permute.xlu0 %2413
      %2415 = vset.pattern.permute.xlu0 0
      %2416 = vperm.xlu0 %2415, %v2192
      %v2417 = vpop.permute.xlu0 %2416
      %2418 = vset.pattern.permute.xlu0 0
      %2419 = vperm.xlu0 %2418, %v2194
      %v2420 = vpop.permute.xlu0 %2419
      %2421 = vset.pattern.permute.xlu0 0
      %2422 = vperm.xlu0 %2421, %v2196
      %v2423 = vpop.permute.xlu0 %2422
      %2424 = vset.pattern.permute.xlu0 0
      %2425 = vperm.xlu0 %2424, %v2198
      %v2426 = vpop.permute.xlu0 %2425
      %2427 = vset.pattern.permute.xlu0 0
      %2428 = vperm.xlu0 %2427, %v2200
      %v2429 = vpop.permute.xlu0 %2428
      %2430 = vset.pattern.permute.xlu0 0
      %2431 = vperm.xlu0 %2430, %v2202
      %v2432 = vpop.permute.xlu0 %2431
      %2433 = vset.pattern.permute.xlu0 0
      %2434 = vperm.xlu0 %2433, %v2204
      %v2435 = vpop.permute.xlu0 %2434
      %2436 = vset.pattern.permute.xlu0 0
      %2437 = vperm.xlu0 %2436, %v2206
      %v2438 = vpop.permute.xlu0 %2437
      %2439 = vset.pattern.permute.xlu0 0
      %2440 = vperm.xlu0 %2439, %v2208
      %v2441 = vpop.permute.xlu0 %2440
      %2442 = vset.pattern.permute.xlu0 0
      %2443 = vperm.xlu0 %2442, %v2210
      %v2444 = vpop.permute.xlu0 %2443
      %2445 = vset.pattern.permute.xlu0 0
      %2446 = vperm.xlu0 %2445, %v2212
      %v2447 = vpop.permute.xlu0 %2446
      %2448 = vset.pattern.permute.xlu0 0
      %2449 = vperm.xlu0 %2448, %v2214
      %v2450 = vpop.permute.xlu0 %2449
      %2451 = vset.pattern.permute.xlu0 0
      %2452 = vperm.xlu0 %2451, %v2216
      %v2453 = vpop.permute.xlu0 %2452
      %2454 = vset.pattern.permute.xlu0 0
      %2455 = vperm.xlu0 %2454, %v2218
      %v2456 = vpop.permute.xlu0 %2455
      %2457 = vset.pattern.permute.xlu0 0
      %2458 = vperm.xlu0 %2457, %v2220
      %v2459 = vpop.permute.xlu0 %2458
      %2460 = vset.pattern.permute.xlu0 0
      %2461 = vperm.xlu0 %2460, %v2222
      %v2462 = vpop.permute.xlu0 %2461
      %2463 = vset.pattern.permute.xlu0 0
      %2464 = vperm.xlu0 %2463, %v2224
      %v2465 = vpop.permute.xlu0 %2464
      %2466 = vset.pattern.permute.xlu0 0
      %2467 = vperm.xlu0 %2466, %v2226
      %v2468 = vpop.permute.xlu0 %2467
      %2469 = vset.pattern.permute.xlu0 0
      %2470 = vperm.xlu0 %2469, %v2228
      %v2471 = vpop.permute.xlu0 %2470
      %2472 = vset.pattern.permute.xlu0 0
      %2473 = vperm.xlu0 %2472, %v2230
      %v2474 = vpop.permute.xlu0 %2473
      %2475 = vset.pattern.permute.xlu0 0
      %2476 = vperm.xlu0 %2475, %v2232
      %v2477 = vpop.permute.xlu0 %2476
      %2478 = vset.pattern.permute.xlu0 0
      %2479 = vperm.xlu0 %2478, %v2234
      %v2480 = vpop.permute.xlu0 %2479
      %2481 = vset.pattern.permute.xlu0 0
      %2482 = vperm.xlu0 %2481, %v2236
      %v2483 = vpop.permute.xlu0 %2482
      %2484 = vset.pattern.permute.xlu0 0
      %2485 = vperm.xlu0 %2484, %v2238
      %v2486 = vpop.permute.xlu0 %2485
      %2487 = vset.pattern.permute.xlu0 0
      %2488 = vperm.xlu0 %2487, %v2240
      %v2489 = vpop.permute.xlu0 %2488
      %2490 = vset.pattern.permute.xlu0 0
      %2491 = vperm.xlu0 %2490, %v2242
      %v2492 = vpop.permute.xlu0 %2491
      %2493 = vset.pattern.permute.xlu0 0
      %2494 = vperm.xlu0 %2493, %v2244
      %v2495 = vpop.permute.xlu0 %2494
      %2496 = vset.pattern.permute.xlu0 0
      %2497 = vperm.xlu0 %2496, %v2246
      %v2498 = vpop.permute.xlu0 %2497
      %2499 = vset.pattern.permute.xlu0 0
      %2500 = vperm.xlu0 %2499, %v2248
      %v2501 = vpop.permute.xlu0 %2500
      %2502 = vset.pattern.permute.xlu0 0
      %2503 = vperm.xlu0 %2502, %v2250
      %v2504 = vpop.permute.xlu0 %2503
      %2505 = vset.pattern.permute.xlu0 0
      %2506 = vperm.xlu0 %2505, %v2252
      %v2507 = vpop.permute.xlu0 %2506
      %2508 = vset.pattern.permute.xlu0 0
      %2509 = vperm.xlu0 %2508, %v2254
      %v2510 = vpop.permute.xlu0 %2509
      %v2511 = vlaneseq
      %v2512 = vshrl.u32 %v2511, 7
      %v2513 = vsub.s32 %v1640, %v2512
      %v2514 = vrot.slane %v2321, %v2513
      %v2515 = vlaneseq
      %v2516 = vshrl.u32 %v2515, 7
      %v2517 = vsub.s32 %v1645, %v2516
      %v2518 = vrot.slane %v2324, %v2517
      %v2519 = vsel %vm1650, %v2518, %v2514
      %v2520 = vlaneseq
      %v2521 = vshrl.u32 %v2520, 7
      %v2522 = vsub.s32 %v1652, %v2521
      %v2523 = vrot.slane %v2327, %v2522
      %v2524 = vsel %vm1657, %v2523, %v2519
      %v2525 = vlaneseq
      %v2526 = vshrl.u32 %v2525, 7
      %v2527 = vsub.s32 %v1659, %v2526
      %v2528 = vrot.slane %v2330, %v2527
      %v2529 = vsel %vm1664, %v2528, %v2524
      %v2530 = vlaneseq
      %v2531 = vshrl.u32 %v2530, 7
      %v2532 = vsub.s32 %v1640, %v2531
      %v2533 = vrot.slane %v2333, %v2532
      %v2534 = vlaneseq
      %v2535 = vshrl.u32 %v2534, 7
      %v2536 = vsub.s32 %v1645, %v2535
      %v2537 = vrot.slane %v2336, %v2536
      %v2538 = vsel %vm1650, %v2537, %v2533
      %v2539 = vlaneseq
      %v2540 = vshrl.u32 %v2539, 7
      %v2541 = vsub.s32 %v1652, %v2540
      %v2542 = vrot.slane %v2339, %v2541
      %v2543 = vsel %vm1657, %v2542, %v2538
      %v2544 = vlaneseq
      %v2545 = vshrl.u32 %v2544, 7
      %v2546 = vsub.s32 %v1659, %v2545
      %v2547 = vrot.slane %v2342, %v2546
      %v2548 = vsel %vm1664, %v2547, %v2543
      %v2549 = vlaneseq
      %v2550 = vshrl.u32 %v2549, 7
      %v2551 = vsub.s32 %v1640, %v2550
      %v2552 = vrot.slane %v2345, %v2551
      %v2553 = vlaneseq
      %v2554 = vshrl.u32 %v2553, 7
      %v2555 = vsub.s32 %v1645, %v2554
      %v2556 = vrot.slane %v2348, %v2555
      %v2557 = vsel %vm1650, %v2556, %v2552
      %v2558 = vlaneseq
      %v2559 = vshrl.u32 %v2558, 7
      %v2560 = vsub.s32 %v1652, %v2559
      %v2561 = vrot.slane %v2351, %v2560
      %v2562 = vsel %vm1657, %v2561, %v2557
      %v2563 = vlaneseq
      %v2564 = vshrl.u32 %v2563, 7
      %v2565 = vsub.s32 %v1659, %v2564
      %v2566 = vrot.slane %v2354, %v2565
      %v2567 = vsel %vm1664, %v2566, %v2562
      %v2568 = vlaneseq
      %v2569 = vshrl.u32 %v2568, 7
      %v2570 = vsub.s32 %v1640, %v2569
      %v2571 = vrot.slane %v2357, %v2570
      %v2572 = vlaneseq
      %v2573 = vshrl.u32 %v2572, 7
      %v2574 = vsub.s32 %v1645, %v2573
      %v2575 = vrot.slane %v2360, %v2574
      %v2576 = vsel %vm1650, %v2575, %v2571
      %v2577 = vlaneseq
      %v2578 = vshrl.u32 %v2577, 7
      %v2579 = vsub.s32 %v1652, %v2578
      %v2580 = vrot.slane %v2363, %v2579
      %v2581 = vsel %vm1657, %v2580, %v2576
      %v2582 = vlaneseq
      %v2583 = vshrl.u32 %v2582, 7
      %v2584 = vsub.s32 %v1659, %v2583
      %v2585 = vrot.slane %v2366, %v2584
      %v2586 = vsel %vm1664, %v2585, %v2581
      %v2587 = vlaneseq
      %v2588 = vshrl.u32 %v2587, 7
      %v2589 = vsub.s32 %v1640, %v2588
      %v2590 = vrot.slane %v2369, %v2589
      %v2591 = vlaneseq
      %v2592 = vshrl.u32 %v2591, 7
      %v2593 = vsub.s32 %v1645, %v2592
      %v2594 = vrot.slane %v2372, %v2593
      %v2595 = vsel %vm1650, %v2594, %v2590
      %v2596 = vlaneseq
      %v2597 = vshrl.u32 %v2596, 7
      %v2598 = vsub.s32 %v1652, %v2597
      %v2599 = vrot.slane %v2375, %v2598
      %v2600 = vsel %vm1657, %v2599, %v2595
      %v2601 = vlaneseq
      %v2602 = vshrl.u32 %v2601, 7
      %v2603 = vsub.s32 %v1659, %v2602
      %v2604 = vrot.slane %v2378, %v2603
      %v2605 = vsel %vm1664, %v2604, %v2600
      %v2606 = vlaneseq
      %v2607 = vshrl.u32 %v2606, 7
      %v2608 = vsub.s32 %v1640, %v2607
      %v2609 = vrot.slane %v2381, %v2608
      %v2610 = vlaneseq
      %v2611 = vshrl.u32 %v2610, 7
      %v2612 = vsub.s32 %v1645, %v2611
      %v2613 = vrot.slane %v2384, %v2612
      %v2614 = vsel %vm1650, %v2613, %v2609
      %v2615 = vlaneseq
      %v2616 = vshrl.u32 %v2615, 7
      %v2617 = vsub.s32 %v1652, %v2616
      %v2618 = vrot.slane %v2387, %v2617
      %v2619 = vsel %vm1657, %v2618, %v2614
      %v2620 = vlaneseq
      %v2621 = vshrl.u32 %v2620, 7
      %v2622 = vsub.s32 %v1659, %v2621
      %v2623 = vrot.slane %v2390, %v2622
      %v2624 = vsel %vm1664, %v2623, %v2619
      %v2625 = vlaneseq
      %v2626 = vshrl.u32 %v2625, 7
      %v2627 = vsub.s32 %v1640, %v2626
      %v2628 = vrot.slane %v2393, %v2627
      %v2629 = vlaneseq
      %v2630 = vshrl.u32 %v2629, 7
      %v2631 = vsub.s32 %v1645, %v2630
      %v2632 = vrot.slane %v2396, %v2631
      %v2633 = vsel %vm1650, %v2632, %v2628
      %v2634 = vlaneseq
      %v2635 = vshrl.u32 %v2634, 7
      %v2636 = vsub.s32 %v1652, %v2635
      %v2637 = vrot.slane %v2399, %v2636
      %v2638 = vsel %vm1657, %v2637, %v2633
      %v2639 = vlaneseq
      %v2640 = vshrl.u32 %v2639, 7
      %v2641 = vsub.s32 %v1659, %v2640
      %v2642 = vrot.slane %v2402, %v2641
      %v2643 = vsel %vm1664, %v2642, %v2638
      %v2644 = vlaneseq
      %v2645 = vshrl.u32 %v2644, 7
      %v2646 = vsub.s32 %v1640, %v2645
      %v2647 = vrot.slane %v2405, %v2646
      %v2648 = vlaneseq
      %v2649 = vshrl.u32 %v2648, 7
      %v2650 = vsub.s32 %v1645, %v2649
      %v2651 = vrot.slane %v2408, %v2650
      %v2652 = vsel %vm1650, %v2651, %v2647
      %v2653 = vlaneseq
      %v2654 = vshrl.u32 %v2653, 7
      %v2655 = vsub.s32 %v1652, %v2654
      %v2656 = vrot.slane %v2411, %v2655
      %v2657 = vsel %vm1657, %v2656, %v2652
      %v2658 = vlaneseq
      %v2659 = vshrl.u32 %v2658, 7
      %v2660 = vsub.s32 %v1659, %v2659
      %v2661 = vrot.slane %v2414, %v2660
      %v2662 = vsel %vm1664, %v2661, %v2657
      %v2663 = vlaneseq
      %v2664 = vshrl.u32 %v2663, 7
      %v2665 = vsub.s32 %v1640, %v2664
      %v2666 = vrot.slane %v2417, %v2665
      %v2667 = vlaneseq
      %v2668 = vshrl.u32 %v2667, 7
      %v2669 = vsub.s32 %v1645, %v2668
      %v2670 = vrot.slane %v2420, %v2669
      %v2671 = vsel %vm1650, %v2670, %v2666
      %v2672 = vlaneseq
      %v2673 = vshrl.u32 %v2672, 7
      %v2674 = vsub.s32 %v1652, %v2673
      %v2675 = vrot.slane %v2423, %v2674
      %v2676 = vsel %vm1657, %v2675, %v2671
      %v2677 = vlaneseq
      %v2678 = vshrl.u32 %v2677, 7
      %v2679 = vsub.s32 %v1659, %v2678
      %v2680 = vrot.slane %v2426, %v2679
      %v2681 = vsel %vm1664, %v2680, %v2676
      %v2682 = vlaneseq
      %v2683 = vshrl.u32 %v2682, 7
      %v2684 = vsub.s32 %v1640, %v2683
      %v2685 = vrot.slane %v2429, %v2684
      %v2686 = vlaneseq
      %v2687 = vshrl.u32 %v2686, 7
      %v2688 = vsub.s32 %v1645, %v2687
      %v2689 = vrot.slane %v2432, %v2688
      %v2690 = vsel %vm1650, %v2689, %v2685
      %v2691 = vlaneseq
      %v2692 = vshrl.u32 %v2691, 7
      %v2693 = vsub.s32 %v1652, %v2692
      %v2694 = vrot.slane %v2435, %v2693
      %v2695 = vsel %vm1657, %v2694, %v2690
      %v2696 = vlaneseq
      %v2697 = vshrl.u32 %v2696, 7
      %v2698 = vsub.s32 %v1659, %v2697
      %v2699 = vrot.slane %v2438, %v2698
      %v2700 = vsel %vm1664, %v2699, %v2695
      %v2701 = vlaneseq
      %v2702 = vshrl.u32 %v2701, 7
      %v2703 = vsub.s32 %v1640, %v2702
      %v2704 = vrot.slane %v2441, %v2703
      %v2705 = vlaneseq
      %v2706 = vshrl.u32 %v2705, 7
      %v2707 = vsub.s32 %v1645, %v2706
      %v2708 = vrot.slane %v2444, %v2707
      %v2709 = vsel %vm1650, %v2708, %v2704
      %v2710 = vlaneseq
      %v2711 = vshrl.u32 %v2710, 7
      %v2712 = vsub.s32 %v1652, %v2711
      %v2713 = vrot.slane %v2447, %v2712
      %v2714 = vsel %vm1657, %v2713, %v2709
      %v2715 = vlaneseq
      %v2716 = vshrl.u32 %v2715, 7
      %v2717 = vsub.s32 %v1659, %v2716
      %v2718 = vrot.slane %v2450, %v2717
      %v2719 = vsel %vm1664, %v2718, %v2714
      %v2720 = vlaneseq
      %v2721 = vshrl.u32 %v2720, 7
      %v2722 = vsub.s32 %v1640, %v2721
      %v2723 = vrot.slane %v2453, %v2722
      %v2724 = vlaneseq
      %v2725 = vshrl.u32 %v2724, 7
      %v2726 = vsub.s32 %v1645, %v2725
      %v2727 = vrot.slane %v2456, %v2726
      %v2728 = vsel %vm1650, %v2727, %v2723
      %v2729 = vlaneseq
      %v2730 = vshrl.u32 %v2729, 7
      %v2731 = vsub.s32 %v1652, %v2730
      %v2732 = vrot.slane %v2459, %v2731
      %v2733 = vsel %vm1657, %v2732, %v2728
      %v2734 = vlaneseq
      %v2735 = vshrl.u32 %v2734, 7
      %v2736 = vsub.s32 %v1659, %v2735
      %v2737 = vrot.slane %v2462, %v2736
      %v2738 = vsel %vm1664, %v2737, %v2733
      %v2739 = vlaneseq
      %v2740 = vshrl.u32 %v2739, 7
      %v2741 = vsub.s32 %v1640, %v2740
      %v2742 = vrot.slane %v2465, %v2741
      %v2743 = vlaneseq
      %v2744 = vshrl.u32 %v2743, 7
      %v2745 = vsub.s32 %v1645, %v2744
      %v2746 = vrot.slane %v2468, %v2745
      %v2747 = vsel %vm1650, %v2746, %v2742
      %v2748 = vlaneseq
      %v2749 = vshrl.u32 %v2748, 7
      %v2750 = vsub.s32 %v1652, %v2749
      %v2751 = vrot.slane %v2471, %v2750
      %v2752 = vsel %vm1657, %v2751, %v2747
      %v2753 = vlaneseq
      %v2754 = vshrl.u32 %v2753, 7
      %v2755 = vsub.s32 %v1659, %v2754
      %v2756 = vrot.slane %v2474, %v2755
      %v2757 = vsel %vm1664, %v2756, %v2752
      %v2758 = vlaneseq
      %v2759 = vshrl.u32 %v2758, 7
      %v2760 = vsub.s32 %v1640, %v2759
      %v2761 = vrot.slane %v2477, %v2760
      %v2762 = vlaneseq
      %v2763 = vshrl.u32 %v2762, 7
      %v2764 = vsub.s32 %v1645, %v2763
      %v2765 = vrot.slane %v2480, %v2764
      %v2766 = vsel %vm1650, %v2765, %v2761
      %v2767 = vlaneseq
      %v2768 = vshrl.u32 %v2767, 7
      %v2769 = vsub.s32 %v1652, %v2768
      %v2770 = vrot.slane %v2483, %v2769
      %v2771 = vsel %vm1657, %v2770, %v2766
      %v2772 = vlaneseq
      %v2773 = vshrl.u32 %v2772, 7
      %v2774 = vsub.s32 %v1659, %v2773
      %v2775 = vrot.slane %v2486, %v2774
      %v2776 = vsel %vm1664, %v2775, %v2771
      %v2777 = vlaneseq
      %v2778 = vshrl.u32 %v2777, 7
      %v2779 = vsub.s32 %v1640, %v2778
      %v2780 = vrot.slane %v2489, %v2779
      %v2781 = vlaneseq
      %v2782 = vshrl.u32 %v2781, 7
      %v2783 = vsub.s32 %v1645, %v2782
      %v2784 = vrot.slane %v2492, %v2783
      %v2785 = vsel %vm1650, %v2784, %v2780
      %v2786 = vlaneseq
      %v2787 = vshrl.u32 %v2786, 7
      %v2788 = vsub.s32 %v1652, %v2787
      %v2789 = vrot.slane %v2495, %v2788
      %v2790 = vsel %vm1657, %v2789, %v2785
      %v2791 = vlaneseq
      %v2792 = vshrl.u32 %v2791, 7
      %v2793 = vsub.s32 %v1659, %v2792
      %v2794 = vrot.slane %v2498, %v2793
      %v2795 = vsel %vm1664, %v2794, %v2790
      %v2796 = vlaneseq
      %v2797 = vshrl.u32 %v2796, 7
      %v2798 = vsub.s32 %v1640, %v2797
      %v2799 = vrot.slane %v2501, %v2798
      %v2800 = vlaneseq
      %v2801 = vshrl.u32 %v2800, 7
      %v2802 = vsub.s32 %v1645, %v2801
      %v2803 = vrot.slane %v2504, %v2802
      %v2804 = vsel %vm1650, %v2803, %v2799
      %v2805 = vlaneseq
      %v2806 = vshrl.u32 %v2805, 7
      %v2807 = vsub.s32 %v1652, %v2806
      %v2808 = vrot.slane %v2507, %v2807
      %v2809 = vsel %vm1657, %v2808, %v2804
      %v2810 = vlaneseq
      %v2811 = vshrl.u32 %v2810, 7
      %v2812 = vsub.s32 %v1659, %v2811
      %v2813 = vrot.slane %v2510, %v2812
      %v2814 = vsel %vm1664, %v2813, %v2809
      %v2815 = vsel %vm1951, %v2548, %v2529
      %v2816 = vsel %vm1953, %v2567, %v2815
      %v2817 = vsel %vm1955, %v2586, %v2816
      %v2818 = vsel %vm1957, %v2605, %v2817
      %v2819 = vsel %vm1959, %v2624, %v2818
      %v2820 = vsel %vm1961, %v2643, %v2819
      %v2821 = vsel %vm1963, %v2662, %v2820
      %v2822 = vsel %vm1951, %v2700, %v2681
      %v2823 = vsel %vm1953, %v2719, %v2822
      %v2824 = vsel %vm1955, %v2738, %v2823
      %v2825 = vsel %vm1957, %v2757, %v2824
      %v2826 = vsel %vm1959, %v2776, %v2825
      %v2827 = vsel %vm1961, %v2795, %v2826
      %v2828 = vsel %vm1963, %v2814, %v2827
      %v2831 = vsel %vm1974, %v2821, 0.0
      %2832 = vadd.xlane.f32.xlu0 %v2831
      %v2833 = vpop.xlane.xlu0 %2832
      %v2834 = vsel %vm1974, %v2828, 0.0
      %2835 = vadd.xlane.f32.xlu0 %v2834
      %v2836 = vpop.xlane.xlu0 %2835
      %v2837 = vrcp.pop %v2833
      %v2838 = vrcp.pop %v2836
      %v2841 = vlaneseq
      %v2842 = vshrl.u32 %v2841, 7
      %v2843 = vsub.s32 0, %v2842
      %v2844 = vrot.slane %v2837, %v2843
      %v2845 = vlaneseq
      %v2846 = vshrl.u32 %v2845, 7
      %v2847 = vsub.s32 1, %v2846
      %v2848 = vrot.slane %v2837, %v2847
      %v2849 = vlaneseq
      %v2850 = vshrl.u32 %v2849, 7
      %v2851 = vsub.s32 2, %v2850
      %v2852 = vrot.slane %v2837, %v2851
      %v2853 = vlaneseq
      %v2854 = vshrl.u32 %v2853, 7
      %v2855 = vsub.s32 3, %v2854
      %v2856 = vrot.slane %v2837, %v2855
      %v2857 = vlaneseq
      %v2858 = vshrl.u32 %v2857, 7
      %v2859 = vsub.s32 4, %v2858
      %v2860 = vrot.slane %v2837, %v2859
      %v2861 = vlaneseq
      %v2862 = vshrl.u32 %v2861, 7
      %v2863 = vsub.s32 5, %v2862
      %v2864 = vrot.slane %v2837, %v2863
      %v2865 = vlaneseq
      %v2866 = vshrl.u32 %v2865, 7
      %v2867 = vsub.s32 6, %v2866
      %v2868 = vrot.slane %v2837, %v2867
      %v2869 = vlaneseq
      %v2870 = vshrl.u32 %v2869, 7
      %v2871 = vsub.s32 7, %v2870
      %v2872 = vrot.slane %v2837, %v2871
      %v2873 = vlaneseq
      %v2874 = vshrl.u32 %v2873, 7
      %v2875 = vsub.s32 0, %v2874
      %v2876 = vrot.slane %v2838, %v2875
      %v2877 = vlaneseq
      %v2878 = vshrl.u32 %v2877, 7
      %v2879 = vsub.s32 1, %v2878
      %v2880 = vrot.slane %v2838, %v2879
      %v2881 = vlaneseq
      %v2882 = vshrl.u32 %v2881, 7
      %v2883 = vsub.s32 2, %v2882
      %v2884 = vrot.slane %v2838, %v2883
      %v2885 = vlaneseq
      %v2886 = vshrl.u32 %v2885, 7
      %v2887 = vsub.s32 3, %v2886
      %v2888 = vrot.slane %v2838, %v2887
      %v2889 = vlaneseq
      %v2890 = vshrl.u32 %v2889, 7
      %v2891 = vsub.s32 4, %v2890
      %v2892 = vrot.slane %v2838, %v2891
      %v2893 = vlaneseq
      %v2894 = vshrl.u32 %v2893, 7
      %v2895 = vsub.s32 5, %v2894
      %v2896 = vrot.slane %v2838, %v2895
      %v2897 = vlaneseq
      %v2898 = vshrl.u32 %v2897, 7
      %v2899 = vsub.s32 6, %v2898
      %v2900 = vrot.slane %v2838, %v2899
      %v2901 = vlaneseq
      %v2902 = vshrl.u32 %v2901, 7
      %v2903 = vsub.s32 7, %v2902
      %v2904 = vrot.slane %v2838, %v2903
      %v2921 = vmul.f32 %v2128, %v2844
      %v2922 = vmul.f32 %v2130, %v2844
      %v2923 = vmul.f32 %v2132, %v2844
      %v2924 = vmul.f32 %v2134, %v2844
      %v2925 = vmul.f32 %v2136, %v2848
      %v2926 = vmul.f32 %v2138, %v2848
      %v2927 = vmul.f32 %v2140, %v2848
      %v2928 = vmul.f32 %v2142, %v2848
      %v2929 = vmul.f32 %v2144, %v2852
      %v2930 = vmul.f32 %v2146, %v2852
      %v2931 = vmul.f32 %v2148, %v2852
      %v2932 = vmul.f32 %v2150, %v2852
      %v2933 = vmul.f32 %v2152, %v2856
      %v2934 = vmul.f32 %v2154, %v2856
      %v2935 = vmul.f32 %v2156, %v2856
      %v2936 = vmul.f32 %v2158, %v2856
      %v2937 = vmul.f32 %v2160, %v2860
      %v2938 = vmul.f32 %v2162, %v2860
      %v2939 = vmul.f32 %v2164, %v2860
      %v2940 = vmul.f32 %v2166, %v2860
      %v2941 = vmul.f32 %v2168, %v2864
      %v2942 = vmul.f32 %v2170, %v2864
      %v2943 = vmul.f32 %v2172, %v2864
      %v2944 = vmul.f32 %v2174, %v2864
      %v2945 = vmul.f32 %v2176, %v2868
      %v2946 = vmul.f32 %v2178, %v2868
      %v2947 = vmul.f32 %v2180, %v2868
      %v2948 = vmul.f32 %v2182, %v2868
      %v2949 = vmul.f32 %v2184, %v2872
      %v2950 = vmul.f32 %v2186, %v2872
      %v2951 = vmul.f32 %v2188, %v2872
      %v2952 = vmul.f32 %v2190, %v2872
      %v2953 = vmul.f32 %v2192, %v2876
      %v2954 = vmul.f32 %v2194, %v2876
      %v2955 = vmul.f32 %v2196, %v2876
      %v2956 = vmul.f32 %v2198, %v2876
      %v2957 = vmul.f32 %v2200, %v2880
      %v2958 = vmul.f32 %v2202, %v2880
      %v2959 = vmul.f32 %v2204, %v2880
      %v2960 = vmul.f32 %v2206, %v2880
      %v2961 = vmul.f32 %v2208, %v2884
      %v2962 = vmul.f32 %v2210, %v2884
      %v2963 = vmul.f32 %v2212, %v2884
      %v2964 = vmul.f32 %v2214, %v2884
      %v2965 = vmul.f32 %v2216, %v2888
      %v2966 = vmul.f32 %v2218, %v2888
      %v2967 = vmul.f32 %v2220, %v2888
      %v2968 = vmul.f32 %v2222, %v2888
      %v2969 = vmul.f32 %v2224, %v2892
      %v2970 = vmul.f32 %v2226, %v2892
      %v2971 = vmul.f32 %v2228, %v2892
      %v2972 = vmul.f32 %v2230, %v2892
      %v2973 = vmul.f32 %v2232, %v2896
      %v2974 = vmul.f32 %v2234, %v2896
      %v2975 = vmul.f32 %v2236, %v2896
      %v2976 = vmul.f32 %v2238, %v2896
      %v2977 = vmul.f32 %v2240, %v2900
      %v2978 = vmul.f32 %v2242, %v2900
      %v2979 = vmul.f32 %v2244, %v2900
      %v2980 = vmul.f32 %v2246, %v2900
      %v2981 = vmul.f32 %v2248, %v2904
      %v2982 = vmul.f32 %v2250, %v2904
      %v2983 = vmul.f32 %v2252, %v2904
      %v2984 = vmul.f32 %v2254, %v2904
      %v2985 = vld [vmem:[%s4] sm:$0x1]
      %v2987 = vlaneseq
      %v2988 = vshrl.u32 %v2987, 7
      %v2989 = vsub.s32 0, %v2988
      %v2990 = vrot.slane %v2985, %v2989
      %3056 = vset.pattern.permute.xlu0 0
      %3057 = vperm.xlu0 %3056, %v2921
      %v3058 = vpop.permute.xlu0 %3057
      %3059 = vset.pattern.permute.xlu0 0
      %3060 = vperm.xlu0 %3059, %v2922
      %v3061 = vpop.permute.xlu0 %3060
      %3062 = vset.pattern.permute.xlu0 0
      %3063 = vperm.xlu0 %3062, %v2923
      %v3064 = vpop.permute.xlu0 %3063
      %3065 = vset.pattern.permute.xlu0 0
      %3066 = vperm.xlu0 %3065, %v2924
      %v3067 = vpop.permute.xlu0 %3066
      %3068 = vset.pattern.permute.xlu0 0
      %3069 = vperm.xlu0 %3068, %v2925
      %v3070 = vpop.permute.xlu0 %3069
      %3071 = vset.pattern.permute.xlu0 0
      %3072 = vperm.xlu0 %3071, %v2926
      %v3073 = vpop.permute.xlu0 %3072
      %3074 = vset.pattern.permute.xlu0 0
      %3075 = vperm.xlu0 %3074, %v2927
      %v3076 = vpop.permute.xlu0 %3075
      %3077 = vset.pattern.permute.xlu0 0
      %3078 = vperm.xlu0 %3077, %v2928
      %v3079 = vpop.permute.xlu0 %3078
      %3080 = vset.pattern.permute.xlu0 0
      %3081 = vperm.xlu0 %3080, %v2929
      %v3082 = vpop.permute.xlu0 %3081
      %3083 = vset.pattern.permute.xlu0 0
      %3084 = vperm.xlu0 %3083, %v2930
      %v3085 = vpop.permute.xlu0 %3084
      %3086 = vset.pattern.permute.xlu0 0
      %3087 = vperm.xlu0 %3086, %v2931
      %v3088 = vpop.permute.xlu0 %3087
      %3089 = vset.pattern.permute.xlu0 0
      %3090 = vperm.xlu0 %3089, %v2932
      %v3091 = vpop.permute.xlu0 %3090
      %3092 = vset.pattern.permute.xlu0 0
      %3093 = vperm.xlu0 %3092, %v2933
      %v3094 = vpop.permute.xlu0 %3093
      %3095 = vset.pattern.permute.xlu0 0
      %3096 = vperm.xlu0 %3095, %v2934
      %v3097 = vpop.permute.xlu0 %3096
      %3098 = vset.pattern.permute.xlu0 0
      %3099 = vperm.xlu0 %3098, %v2935
      %v3100 = vpop.permute.xlu0 %3099
      %3101 = vset.pattern.permute.xlu0 0
      %3102 = vperm.xlu0 %3101, %v2936
      %v3103 = vpop.permute.xlu0 %3102
      %3104 = vset.pattern.permute.xlu0 0
      %3105 = vperm.xlu0 %3104, %v2937
      %v3106 = vpop.permute.xlu0 %3105
      %3107 = vset.pattern.permute.xlu0 0
      %3108 = vperm.xlu0 %3107, %v2938
      %v3109 = vpop.permute.xlu0 %3108
      %3110 = vset.pattern.permute.xlu0 0
      %3111 = vperm.xlu0 %3110, %v2939
      %v3112 = vpop.permute.xlu0 %3111
      %3113 = vset.pattern.permute.xlu0 0
      %3114 = vperm.xlu0 %3113, %v2940
      %v3115 = vpop.permute.xlu0 %3114
      %3116 = vset.pattern.permute.xlu0 0
      %3117 = vperm.xlu0 %3116, %v2941
      %v3118 = vpop.permute.xlu0 %3117
      %3119 = vset.pattern.permute.xlu0 0
      %3120 = vperm.xlu0 %3119, %v2942
      %v3121 = vpop.permute.xlu0 %3120
      %3122 = vset.pattern.permute.xlu0 0
      %3123 = vperm.xlu0 %3122, %v2943
      %v3124 = vpop.permute.xlu0 %3123
      %3125 = vset.pattern.permute.xlu0 0
      %3126 = vperm.xlu0 %3125, %v2944
      %v3127 = vpop.permute.xlu0 %3126
      %3128 = vset.pattern.permute.xlu0 0
      %3129 = vperm.xlu0 %3128, %v2945
      %v3130 = vpop.permute.xlu0 %3129
      %3131 = vset.pattern.permute.xlu0 0
      %3132 = vperm.xlu0 %3131, %v2946
      %v3133 = vpop.permute.xlu0 %3132
      %3134 = vset.pattern.permute.xlu0 0
      %3135 = vperm.xlu0 %3134, %v2947
      %v3136 = vpop.permute.xlu0 %3135
      %3137 = vset.pattern.permute.xlu0 0
      %3138 = vperm.xlu0 %3137, %v2948
      %v3139 = vpop.permute.xlu0 %3138
      %3140 = vset.pattern.permute.xlu0 0
      %3141 = vperm.xlu0 %3140, %v2949
      %v3142 = vpop.permute.xlu0 %3141
      %3143 = vset.pattern.permute.xlu0 0
      %3144 = vperm.xlu0 %3143, %v2950
      %v3145 = vpop.permute.xlu0 %3144
      %3146 = vset.pattern.permute.xlu0 0
      %3147 = vperm.xlu0 %3146, %v2951
      %v3148 = vpop.permute.xlu0 %3147
      %3149 = vset.pattern.permute.xlu0 0
      %3150 = vperm.xlu0 %3149, %v2952
      %v3151 = vpop.permute.xlu0 %3150
      %3152 = vset.pattern.permute.xlu0 0
      %3153 = vperm.xlu0 %3152, %v2953
      %v3154 = vpop.permute.xlu0 %3153
      %3155 = vset.pattern.permute.xlu0 0
      %3156 = vperm.xlu0 %3155, %v2954
      %v3157 = vpop.permute.xlu0 %3156
      %3158 = vset.pattern.permute.xlu0 0
      %3159 = vperm.xlu0 %3158, %v2955
      %v3160 = vpop.permute.xlu0 %3159
      %3161 = vset.pattern.permute.xlu0 0
      %3162 = vperm.xlu0 %3161, %v2956
      %v3163 = vpop.permute.xlu0 %3162
      %3164 = vset.pattern.permute.xlu0 0
      %3165 = vperm.xlu0 %3164, %v2957
      %v3166 = vpop.permute.xlu0 %3165
      %3167 = vset.pattern.permute.xlu0 0
      %3168 = vperm.xlu0 %3167, %v2958
      %v3169 = vpop.permute.xlu0 %3168
      %3170 = vset.pattern.permute.xlu0 0
      %3171 = vperm.xlu0 %3170, %v2959
      %v3172 = vpop.permute.xlu0 %3171
      %3173 = vset.pattern.permute.xlu0 0
      %3174 = vperm.xlu0 %3173, %v2960
      %v3175 = vpop.permute.xlu0 %3174
      %3176 = vset.pattern.permute.xlu0 0
      %3177 = vperm.xlu0 %3176, %v2961
      %v3178 = vpop.permute.xlu0 %3177
      %3179 = vset.pattern.permute.xlu0 0
      %3180 = vperm.xlu0 %3179, %v2962
      %v3181 = vpop.permute.xlu0 %3180
      %3182 = vset.pattern.permute.xlu0 0
      %3183 = vperm.xlu0 %3182, %v2963
      %v3184 = vpop.permute.xlu0 %3183
      %3185 = vset.pattern.permute.xlu0 0
      %3186 = vperm.xlu0 %3185, %v2964
      %v3187 = vpop.permute.xlu0 %3186
      %3188 = vset.pattern.permute.xlu0 0
      %3189 = vperm.xlu0 %3188, %v2965
      %v3190 = vpop.permute.xlu0 %3189
      %3191 = vset.pattern.permute.xlu0 0
      %3192 = vperm.xlu0 %3191, %v2966
      %v3193 = vpop.permute.xlu0 %3192
      %3194 = vset.pattern.permute.xlu0 0
      %3195 = vperm.xlu0 %3194, %v2967
      %v3196 = vpop.permute.xlu0 %3195
      %3197 = vset.pattern.permute.xlu0 0
      %3198 = vperm.xlu0 %3197, %v2968
      %v3199 = vpop.permute.xlu0 %3198
      %3200 = vset.pattern.permute.xlu0 0
      %3201 = vperm.xlu0 %3200, %v2969
      %v3202 = vpop.permute.xlu0 %3201
      %3203 = vset.pattern.permute.xlu0 0
      %3204 = vperm.xlu0 %3203, %v2970
      %v3205 = vpop.permute.xlu0 %3204
      %3206 = vset.pattern.permute.xlu0 0
      %3207 = vperm.xlu0 %3206, %v2971
      %v3208 = vpop.permute.xlu0 %3207
      %3209 = vset.pattern.permute.xlu0 0
      %3210 = vperm.xlu0 %3209, %v2972
      %v3211 = vpop.permute.xlu0 %3210
      %3212 = vset.pattern.permute.xlu0 0
      %3213 = vperm.xlu0 %3212, %v2973
      %v3214 = vpop.permute.xlu0 %3213
      %3215 = vset.pattern.permute.xlu0 0
      %3216 = vperm.xlu0 %3215, %v2974
      %v3217 = vpop.permute.xlu0 %3216
      %3218 = vset.pattern.permute.xlu0 0
      %3219 = vperm.xlu0 %3218, %v2975
      %v3220 = vpop.permute.xlu0 %3219
      %3221 = vset.pattern.permute.xlu0 0
      %3222 = vperm.xlu0 %3221, %v2976
      %v3223 = vpop.permute.xlu0 %3222
      %3224 = vset.pattern.permute.xlu0 0
      %3225 = vperm.xlu0 %3224, %v2977
      %v3226 = vpop.permute.xlu0 %3225
      %3227 = vset.pattern.permute.xlu0 0
      %3228 = vperm.xlu0 %3227, %v2978
      %v3229 = vpop.permute.xlu0 %3228
      %3230 = vset.pattern.permute.xlu0 0
      %3231 = vperm.xlu0 %3230, %v2979
      %v3232 = vpop.permute.xlu0 %3231
      %3233 = vset.pattern.permute.xlu0 0
      %3234 = vperm.xlu0 %3233, %v2980
      %v3235 = vpop.permute.xlu0 %3234
      %3236 = vset.pattern.permute.xlu0 0
      %3237 = vperm.xlu0 %3236, %v2981
      %v3238 = vpop.permute.xlu0 %3237
      %3239 = vset.pattern.permute.xlu0 0
      %3240 = vperm.xlu0 %3239, %v2982
      %v3241 = vpop.permute.xlu0 %3240
      %3242 = vset.pattern.permute.xlu0 0
      %3243 = vperm.xlu0 %3242, %v2983
      %v3244 = vpop.permute.xlu0 %3243
      %3245 = vset.pattern.permute.xlu0 0
      %3246 = vperm.xlu0 %3245, %v2984
      %v3247 = vpop.permute.xlu0 %3246
      %v3248 = vlaneseq
      %v3249 = vshrl.u32 %v3248, 7
      %v3250 = vsub.s32 %v1640, %v3249
      %v3251 = vrot.slane %v3058, %v3250
      %v3252 = vlaneseq
      %v3253 = vshrl.u32 %v3252, 7
      %v3254 = vsub.s32 %v1645, %v3253
      %v3255 = vrot.slane %v3061, %v3254
      %v3256 = vsel %vm1650, %v3255, %v3251
      %v3257 = vlaneseq
      %v3258 = vshrl.u32 %v3257, 7
      %v3259 = vsub.s32 %v1652, %v3258
      %v3260 = vrot.slane %v3064, %v3259
      %v3261 = vsel %vm1657, %v3260, %v3256
      %v3262 = vlaneseq
      %v3263 = vshrl.u32 %v3262, 7
      %v3264 = vsub.s32 %v1659, %v3263
      %v3265 = vrot.slane %v3067, %v3264
      %v3266 = vsel %vm1664, %v3265, %v3261
      %v3267 = vlaneseq
      %v3268 = vshrl.u32 %v3267, 7
      %v3269 = vsub.s32 %v1640, %v3268
      %v3270 = vrot.slane %v3070, %v3269
      %v3271 = vlaneseq
      %v3272 = vshrl.u32 %v3271, 7
      %v3273 = vsub.s32 %v1645, %v3272
      %v3274 = vrot.slane %v3073, %v3273
      %v3275 = vsel %vm1650, %v3274, %v3270
      %v3276 = vlaneseq
      %v3277 = vshrl.u32 %v3276, 7
      %v3278 = vsub.s32 %v1652, %v3277
      %v3279 = vrot.slane %v3076, %v3278
      %v3280 = vsel %vm1657, %v3279, %v3275
      %v3281 = vlaneseq
      %v3282 = vshrl.u32 %v3281, 7
      %v3283 = vsub.s32 %v1659, %v3282
      %v3284 = vrot.slane %v3079, %v3283
      %v3285 = vsel %vm1664, %v3284, %v3280
      %v3286 = vlaneseq
      %v3287 = vshrl.u32 %v3286, 7
      %v3288 = vsub.s32 %v1640, %v3287
      %v3289 = vrot.slane %v3082, %v3288
      %v3290 = vlaneseq
      %v3291 = vshrl.u32 %v3290, 7
      %v3292 = vsub.s32 %v1645, %v3291
      %v3293 = vrot.slane %v3085, %v3292
      %v3294 = vsel %vm1650, %v3293, %v3289
      %v3295 = vlaneseq
      %v3296 = vshrl.u32 %v3295, 7
      %v3297 = vsub.s32 %v1652, %v3296
      %v3298 = vrot.slane %v3088, %v3297
      %v3299 = vsel %vm1657, %v3298, %v3294
      %v3300 = vlaneseq
      %v3301 = vshrl.u32 %v3300, 7
      %v3302 = vsub.s32 %v1659, %v3301
      %v3303 = vrot.slane %v3091, %v3302
      %v3304 = vsel %vm1664, %v3303, %v3299
      %v3305 = vlaneseq
      %v3306 = vshrl.u32 %v3305, 7
      %v3307 = vsub.s32 %v1640, %v3306
      %v3308 = vrot.slane %v3094, %v3307
      %v3309 = vlaneseq
      %v3310 = vshrl.u32 %v3309, 7
      %v3311 = vsub.s32 %v1645, %v3310
      %v3312 = vrot.slane %v3097, %v3311
      %v3313 = vsel %vm1650, %v3312, %v3308
      %v3314 = vlaneseq
      %v3315 = vshrl.u32 %v3314, 7
      %v3316 = vsub.s32 %v1652, %v3315
      %v3317 = vrot.slane %v3100, %v3316
      %v3318 = vsel %vm1657, %v3317, %v3313
      %v3319 = vlaneseq
      %v3320 = vshrl.u32 %v3319, 7
      %v3321 = vsub.s32 %v1659, %v3320
      %v3322 = vrot.slane %v3103, %v3321
      %v3323 = vsel %vm1664, %v3322, %v3318
      %v3324 = vlaneseq
      %v3325 = vshrl.u32 %v3324, 7
      %v3326 = vsub.s32 %v1640, %v3325
      %v3327 = vrot.slane %v3106, %v3326
      %v3328 = vlaneseq
      %v3329 = vshrl.u32 %v3328, 7
      %v3330 = vsub.s32 %v1645, %v3329
      %v3331 = vrot.slane %v3109, %v3330
      %v3332 = vsel %vm1650, %v3331, %v3327
      %v3333 = vlaneseq
      %v3334 = vshrl.u32 %v3333, 7
      %v3335 = vsub.s32 %v1652, %v3334
      %v3336 = vrot.slane %v3112, %v3335
      %v3337 = vsel %vm1657, %v3336, %v3332
      %v3338 = vlaneseq
      %v3339 = vshrl.u32 %v3338, 7
      %v3340 = vsub.s32 %v1659, %v3339
      %v3341 = vrot.slane %v3115, %v3340
      %v3342 = vsel %vm1664, %v3341, %v3337
      %v3343 = vlaneseq
      %v3344 = vshrl.u32 %v3343, 7
      %v3345 = vsub.s32 %v1640, %v3344
      %v3346 = vrot.slane %v3118, %v3345
      %v3347 = vlaneseq
      %v3348 = vshrl.u32 %v3347, 7
      %v3349 = vsub.s32 %v1645, %v3348
      %v3350 = vrot.slane %v3121, %v3349
      %v3351 = vsel %vm1650, %v3350, %v3346
      %v3352 = vlaneseq
      %v3353 = vshrl.u32 %v3352, 7
      %v3354 = vsub.s32 %v1652, %v3353
      %v3355 = vrot.slane %v3124, %v3354
      %v3356 = vsel %vm1657, %v3355, %v3351
      %v3357 = vlaneseq
      %v3358 = vshrl.u32 %v3357, 7
      %v3359 = vsub.s32 %v1659, %v3358
      %v3360 = vrot.slane %v3127, %v3359
      %v3361 = vsel %vm1664, %v3360, %v3356
      %v3362 = vlaneseq
      %v3363 = vshrl.u32 %v3362, 7
      %v3364 = vsub.s32 %v1640, %v3363
      %v3365 = vrot.slane %v3130, %v3364
      %v3366 = vlaneseq
      %v3367 = vshrl.u32 %v3366, 7
      %v3368 = vsub.s32 %v1645, %v3367
      %v3369 = vrot.slane %v3133, %v3368
      %v3370 = vsel %vm1650, %v3369, %v3365
      %v3371 = vlaneseq
      %v3372 = vshrl.u32 %v3371, 7
      %v3373 = vsub.s32 %v1652, %v3372
      %v3374 = vrot.slane %v3136, %v3373
      %v3375 = vsel %vm1657, %v3374, %v3370
      %v3376 = vlaneseq
      %v3377 = vshrl.u32 %v3376, 7
      %v3378 = vsub.s32 %v1659, %v3377
      %v3379 = vrot.slane %v3139, %v3378
      %v3380 = vsel %vm1664, %v3379, %v3375
      %v3381 = vlaneseq
      %v3382 = vshrl.u32 %v3381, 7
      %v3383 = vsub.s32 %v1640, %v3382
      %v3384 = vrot.slane %v3142, %v3383
      %v3385 = vlaneseq
      %v3386 = vshrl.u32 %v3385, 7
      %v3387 = vsub.s32 %v1645, %v3386
      %v3388 = vrot.slane %v3145, %v3387
      %v3389 = vsel %vm1650, %v3388, %v3384
      %v3390 = vlaneseq
      %v3391 = vshrl.u32 %v3390, 7
      %v3392 = vsub.s32 %v1652, %v3391
      %v3393 = vrot.slane %v3148, %v3392
      %v3394 = vsel %vm1657, %v3393, %v3389
      %v3395 = vlaneseq
      %v3396 = vshrl.u32 %v3395, 7
      %v3397 = vsub.s32 %v1659, %v3396
      %v3398 = vrot.slane %v3151, %v3397
      %v3399 = vsel %vm1664, %v3398, %v3394
      %v3400 = vlaneseq
      %v3401 = vshrl.u32 %v3400, 7
      %v3402 = vsub.s32 %v1640, %v3401
      %v3403 = vrot.slane %v3154, %v3402
      %v3404 = vlaneseq
      %v3405 = vshrl.u32 %v3404, 7
      %v3406 = vsub.s32 %v1645, %v3405
      %v3407 = vrot.slane %v3157, %v3406
      %v3408 = vsel %vm1650, %v3407, %v3403
      %v3409 = vlaneseq
      %v3410 = vshrl.u32 %v3409, 7
      %v3411 = vsub.s32 %v1652, %v3410
      %v3412 = vrot.slane %v3160, %v3411
      %v3413 = vsel %vm1657, %v3412, %v3408
      %v3414 = vlaneseq
      %v3415 = vshrl.u32 %v3414, 7
      %v3416 = vsub.s32 %v1659, %v3415
      %v3417 = vrot.slane %v3163, %v3416
      %v3418 = vsel %vm1664, %v3417, %v3413
      %v3419 = vlaneseq
      %v3420 = vshrl.u32 %v3419, 7
      %v3421 = vsub.s32 %v1640, %v3420
      %v3422 = vrot.slane %v3166, %v3421
      %v3423 = vlaneseq
      %v3424 = vshrl.u32 %v3423, 7
      %v3425 = vsub.s32 %v1645, %v3424
      %v3426 = vrot.slane %v3169, %v3425
      %v3427 = vsel %vm1650, %v3426, %v3422
      %v3428 = vlaneseq
      %v3429 = vshrl.u32 %v3428, 7
      %v3430 = vsub.s32 %v1652, %v3429
      %v3431 = vrot.slane %v3172, %v3430
      %v3432 = vsel %vm1657, %v3431, %v3427
      %v3433 = vlaneseq
      %v3434 = vshrl.u32 %v3433, 7
      %v3435 = vsub.s32 %v1659, %v3434
      %v3436 = vrot.slane %v3175, %v3435
      %v3437 = vsel %vm1664, %v3436, %v3432
      %v3438 = vlaneseq
      %v3439 = vshrl.u32 %v3438, 7
      %v3440 = vsub.s32 %v1640, %v3439
      %v3441 = vrot.slane %v3178, %v3440
      %v3442 = vlaneseq
      %v3443 = vshrl.u32 %v3442, 7
      %v3444 = vsub.s32 %v1645, %v3443
      %v3445 = vrot.slane %v3181, %v3444
      %v3446 = vsel %vm1650, %v3445, %v3441
      %v3447 = vlaneseq
      %v3448 = vshrl.u32 %v3447, 7
      %v3449 = vsub.s32 %v1652, %v3448
      %v3450 = vrot.slane %v3184, %v3449
      %v3451 = vsel %vm1657, %v3450, %v3446
      %v3452 = vlaneseq
      %v3453 = vshrl.u32 %v3452, 7
      %v3454 = vsub.s32 %v1659, %v3453
      %v3455 = vrot.slane %v3187, %v3454
      %v3456 = vsel %vm1664, %v3455, %v3451
      %v3457 = vlaneseq
      %v3458 = vshrl.u32 %v3457, 7
      %v3459 = vsub.s32 %v1640, %v3458
      %v3460 = vrot.slane %v3190, %v3459
      %v3461 = vlaneseq
      %v3462 = vshrl.u32 %v3461, 7
      %v3463 = vsub.s32 %v1645, %v3462
      %v3464 = vrot.slane %v3193, %v3463
      %v3465 = vsel %vm1650, %v3464, %v3460
      %v3466 = vlaneseq
      %v3467 = vshrl.u32 %v3466, 7
      %v3468 = vsub.s32 %v1652, %v3467
      %v3469 = vrot.slane %v3196, %v3468
      %v3470 = vsel %vm1657, %v3469, %v3465
      %v3471 = vlaneseq
      %v3472 = vshrl.u32 %v3471, 7
      %v3473 = vsub.s32 %v1659, %v3472
      %v3474 = vrot.slane %v3199, %v3473
      %v3475 = vsel %vm1664, %v3474, %v3470
      %v3476 = vlaneseq
      %v3477 = vshrl.u32 %v3476, 7
      %v3478 = vsub.s32 %v1640, %v3477
      %v3479 = vrot.slane %v3202, %v3478
      %v3480 = vlaneseq
      %v3481 = vshrl.u32 %v3480, 7
      %v3482 = vsub.s32 %v1645, %v3481
      %v3483 = vrot.slane %v3205, %v3482
      %v3484 = vsel %vm1650, %v3483, %v3479
      %v3485 = vlaneseq
      %v3486 = vshrl.u32 %v3485, 7
      %v3487 = vsub.s32 %v1652, %v3486
      %v3488 = vrot.slane %v3208, %v3487
      %v3489 = vsel %vm1657, %v3488, %v3484
      %v3490 = vlaneseq
      %v3491 = vshrl.u32 %v3490, 7
      %v3492 = vsub.s32 %v1659, %v3491
      %v3493 = vrot.slane %v3211, %v3492
      %v3494 = vsel %vm1664, %v3493, %v3489
      %v3495 = vlaneseq
      %v3496 = vshrl.u32 %v3495, 7
      %v3497 = vsub.s32 %v1640, %v3496
      %v3498 = vrot.slane %v3214, %v3497
      %v3499 = vlaneseq
      %v3500 = vshrl.u32 %v3499, 7
      %v3501 = vsub.s32 %v1645, %v3500
      %v3502 = vrot.slane %v3217, %v3501
      %v3503 = vsel %vm1650, %v3502, %v3498
      %v3504 = vlaneseq
      %v3505 = vshrl.u32 %v3504, 7
      %v3506 = vsub.s32 %v1652, %v3505
      %v3507 = vrot.slane %v3220, %v3506
      %v3508 = vsel %vm1657, %v3507, %v3503
      %v3509 = vlaneseq
      %v3510 = vshrl.u32 %v3509, 7
      %v3511 = vsub.s32 %v1659, %v3510
      %v3512 = vrot.slane %v3223, %v3511
      %v3513 = vsel %vm1664, %v3512, %v3508
      %v3514 = vlaneseq
      %v3515 = vshrl.u32 %v3514, 7
      %v3516 = vsub.s32 %v1640, %v3515
      %v3517 = vrot.slane %v3226, %v3516
      %v3518 = vlaneseq
      %v3519 = vshrl.u32 %v3518, 7
      %v3520 = vsub.s32 %v1645, %v3519
      %v3521 = vrot.slane %v3229, %v3520
      %v3522 = vsel %vm1650, %v3521, %v3517
      %v3523 = vlaneseq
      %v3524 = vshrl.u32 %v3523, 7
      %v3525 = vsub.s32 %v1652, %v3524
      %v3526 = vrot.slane %v3232, %v3525
      %v3527 = vsel %vm1657, %v3526, %v3522
      %v3528 = vlaneseq
      %v3529 = vshrl.u32 %v3528, 7
      %v3530 = vsub.s32 %v1659, %v3529
      %v3531 = vrot.slane %v3235, %v3530
      %v3532 = vsel %vm1664, %v3531, %v3527
      %v3533 = vlaneseq
      %v3534 = vshrl.u32 %v3533, 7
      %v3535 = vsub.s32 %v1640, %v3534
      %v3536 = vrot.slane %v3238, %v3535
      %v3537 = vlaneseq
      %v3538 = vshrl.u32 %v3537, 7
      %v3539 = vsub.s32 %v1645, %v3538
      %v3540 = vrot.slane %v3241, %v3539
      %v3541 = vsel %vm1650, %v3540, %v3536
      %v3542 = vlaneseq
      %v3543 = vshrl.u32 %v3542, 7
      %v3544 = vsub.s32 %v1652, %v3543
      %v3545 = vrot.slane %v3244, %v3544
      %v3546 = vsel %vm1657, %v3545, %v3541
      %v3547 = vlaneseq
      %v3548 = vshrl.u32 %v3547, 7
      %v3549 = vsub.s32 %v1659, %v3548
      %v3550 = vrot.slane %v3247, %v3549
      %v3551 = vsel %vm1664, %v3550, %v3546
      %v3552 = vsel %vm1951, %v3285, %v3266
      %v3553 = vsel %vm1953, %v3304, %v3552
      %v3554 = vsel %vm1955, %v3323, %v3553
      %v3555 = vsel %vm1957, %v3342, %v3554
      %v3556 = vsel %vm1959, %v3361, %v3555
      %v3557 = vsel %vm1961, %v3380, %v3556
      %v3558 = vsel %vm1963, %v3399, %v3557
      %v3559 = vsel %vm1951, %v3437, %v3418
      %v3560 = vsel %vm1953, %v3456, %v3559
      %v3561 = vsel %vm1955, %v3475, %v3560
      %v3562 = vsel %vm1957, %v3494, %v3561
      %v3563 = vsel %vm1959, %v3513, %v3562
      %v3564 = vsel %vm1961, %v3532, %v3563
      %v3565 = vsel %vm1963, %v3551, %v3564
      %v3566 = vsel %vm1974, %v3558, 0
      %v3568 = vsel %vm1974, %v3565, 0
      %3570 = vmatprep.subr.mxu0 0.0
      %3571 = vmatpush1.msra.mxu0 %v308
      %3572 = vmatprep.subr.mxu0 0.0
      %3573 = vmatpush1.msra.mxu0 %v309
      %3574 = vmatprep.subr.mxu0 0.0
      %3575 = vmatpush1.msra.mxu0 %v310
      %3576 = vmatprep.subr.mxu0 0.0
      %3577 = vmatpush1.msra.mxu0 %v311
      %3578 = vmatprep.subr.mxu0 0.0
      %3579 = vmatpush1.msra.mxu0 0.0
      %3580 = vmatprep.subr.mxu0 0.0
      %3581 = vmatpush1.msra.mxu0 0.0
      %3582 = vmatprep.subr.mxu0 0.0
      %3583 = vmatpush1.msra.mxu0 0.0
      %3584 = vmatprep.subr.mxu0 0.0
      %3585 = vmatpush1.msra.mxu0 0.0
      %3586 = vmatprep.subr.mxu0 0.0
      %3587 = vmatpush1.msra.mxu0 0.0
      %3588 = vmatprep.subr.mxu0 0.0
      %3589 = vmatpush1.msra.mxu0 0.0
      %3590 = vmatprep.subr.mxu0 0.0
      %3591 = vmatpush1.msra.mxu0 0.0
      %3592 = vmatprep.subr.mxu0 0.0
      %3593 = vmatpush1.msra.mxu0 0.0
      %3594 = vmatprep.subr.mxu0 0.0
      %3595 = vmatpush1.msra.mxu0 0.0
      %3596 = vmatprep.subr.mxu0 0.0
      %3597 = vmatpush1.msra.mxu0 0.0
      %3598 = vmatprep.subr.mxu0 0.0
      %3599 = vmatpush1.msra.mxu0 0.0
      %3600 = vmatprep.subr.mxu0 0.0
      %3601 = vmatpush1.msra.mxu0 0.0
      %3602 = vmatprep.subr.mxu0 0.0
      %3603 = vmatpush1.msra.mxu0 0.0
      %3604 = vmatprep.subr.mxu0 0.0
      %3605 = vmatpush1.msra.mxu0 0.0
      %3606 = vmatprep.subr.mxu0 0.0
      %3607 = vmatpush1.msra.mxu0 0.0
      %3608 = vmatprep.subr.mxu0 0.0
      %3609 = vmatpush1.msra.mxu0 0.0
      %3610 = vmatprep.subr.mxu0 0.0
      %3611 = vmatpush1.msra.mxu0 0.0
      %3612 = vmatprep.subr.mxu0 0.0
      %3613 = vmatpush1.msra.mxu0 0.0
      %3614 = vmatprep.subr.mxu0 0.0
      %3615 = vmatpush1.msra.mxu0 0.0
      %3616 = vmatprep.subr.mxu0 0.0
      %3617 = vmatpush1.msra.mxu0 0.0
      %3618 = vmatprep.subr.mxu0 0.0
      %3619 = vmatpush1.msra.mxu0 0.0
      %3620 = vmatprep.subr.mxu0 0.0
      %3621 = vmatpush1.msra.mxu0 0.0
      %3622 = vmatprep.subr.mxu0 0.0
      %3623 = vmatpush1.msra.mxu0 0.0
      %3624 = vmatprep.subr.mxu0 0.0
      %3625 = vmatpush1.msra.mxu0 0.0
      %3626 = vmatprep.subr.mxu0 0.0
      %3627 = vmatpush1.msra.mxu0 0.0
      %3628 = vmatprep.subr.mxu0 0.0
      %3629 = vmatpush1.msra.mxu0 0.0
      %3630 = vmatprep.subr.mxu0 0.0
      %3631 = vmatpush1.msra.mxu0 0.0
      %3632 = vmatprep.subr.mxu0 0.0
      %3633 = vmatpush1.msra.mxu0 0.0
      %3634 = vmatprep.mubr.f32.mxu0 0.0
      %3635 = vmatmul.mubr.f32.gmra.mrb[0].mxu0 %v3566
      %v3636 = vpop.f32.mrb[0].mxu0
      %v3637 = vadd.f32 %v2990, %v3636
      %v3638 = vpop.f32.mrb[0].mxu0
      %3639 = vmatprep.mubr.f32.mxu0 0.0
      %3640 = vmatmul.mubr.f32.gmra.mrb[0].mxu0 %v3568
      %v3641 = vpop.f32.mrb[0].mxu0
      %v3642 = vadd.f32 %v2990, %v3641
      %v3643 = vpop.f32.mrb[0].mxu0
      %3644 = vdwg.mxu0
      %3645 = vst [vmem:[%s304] sm:$0xff] %v3637
      %3646 = vst [vmem:[%s304 + $0x8] sm:$0xff] %v3642
      %s3647 = smul.u32 2, %s21
      %p3648 = scmp.lt.s32.totalorder %s20, 1
      %s3649 = scalar_select %p3648, %s20, 1
      %p3650 = scmp.lt.s32.totalorder %s3647, 3
      %s3651 = scalar_select %p3650, %s3647, 3
      %s3652 = smul.addr %s3649, 4
      %s3653 = sadd.s32 %s3651, %s3652
      %s3654 = smul.addr %s3653, 8
      %s3655 = scalar_lea.vmem %s5, %s3654
      // Predicated region
      $region41: #{gatv2_f_forward.3} parent=39 // pred_check
        %p3656 = pneg %p170
      $region42: #{gatv2_f_forward.3} parent=39 // pred_check_branch
        %3658 = sbr.rel (%p3656) target = $region44
      $region43: #{gatv2_f_forward.3} parent=39 // pred_region
        %s3659 = smul.u32 2, %s21
      $region44: #{gatv2_f_forward.3} parent=39 // pred_fallthru
        _
    $region40: #{gatv2_f_forward.3} parent=5 // pred_fallthru
      _
    %p3660 = scmp.le.s32.totalorder 2, %s11
    // Predicated region
    $region45: #{gatv2_f_forward.3} parent=5 // pred_check
      %p3661 = pneg %p3660
    $region46: #{gatv2_f_forward.3} parent=5 // pred_check_branch
      %3663 = sbr.rel (%p3661) target = $region48
    $region47: #{gatv2_f_forward.3} parent=5 // pred_region
      %s3664 = ssub.s32 %s11, 2
      // Predicated region
      $region49: #{gatv2_f_forward.3} parent=47 // pred_check
        %p3665 = pneg %p176
      $region50: #{gatv2_f_forward.3} parent=47 // pred_check_branch
        %3667 = sbr.rel (%p3665) target = $region52
      $region51: #{gatv2_f_forward.3} parent=47 // pred_region
        %s3668 = smul.u32 2, %s23
        %p3669 = scmp.lt.s32.totalorder %s22, 1
        %s3670 = scalar_select %p3669, %s22, 1
        %p3671 = scmp.lt.s32.totalorder %s3668, 3
        %s3672 = scalar_select %p3671, %s3668, 3
        %s3673 = smul.addr %s3670, 4
        %s3674 = sadd.s32 %s3672, %s3673
        %s3675 = smul.addr %s3674, 8
        %s3676 = scalar_lea.vmem %s5, %s3675
      $region52: #{gatv2_f_forward.3} parent=47 // pred_fallthru
        _
    $region48: #{gatv2_f_forward.3} parent=5 // pred_fallthru
      _
  $region6: #{gatv2_f_forward.3} parent=0 // loop_footer
    %s15 = sadd.s32 1, %s11
  $region7: #{gatv2_f_forward.3} parent=0 // loop_footer_branch
    %10 = sbr.rel target = $region3
  $region8: #{gatv2_f_forward.3} parent=0 // loop_exit
    _

</llo_original>
